<compile_context>
chip_gen: v7x
topology: tpu7x:2x2x1
jax: 0.10.0
libtpu: 0.0.40
codegen_flags: <defaults>
</compile_context>

<pallas_src>
import jax
import jax.numpy as jnp
from jax import lax
from jax.experimental import pallas as pl
from jax.experimental.pallas import tpu as pltpu

_EPS = 1e-5
_SLOPE = 0.01          # nn.LeakyReLU default negative_slope
_C = 128               # channel width through the deconv stack
_STAGES = 3            # ConvTranspose2d(128->128,(1,2),s=2) blocks
_W0 = 2                # width after Unflatten(1, (128, 1, 2))
_WF = _W0 * (2 ** _STAGES)   # = 16 final time steps
_PITCH = 128

_VMEM = pl.BlockSpec(memory_space=pltpu.MemorySpace.VMEM)


def _lrelu(y):
    return jnp.where(y >= 0.0, y, _SLOPE * y)


def _bn1d_lrelu(y, g, beta, n_rows):
    """BatchNorm1d (batch stats, biased var, single pass) + LeakyReLU on (N, D)."""
    inv_n = 1.0 / n_rows
    mean = jnp.sum(y, axis=0, keepdims=True) * inv_n
    msq = jnp.sum(y * y, axis=0, keepdims=True) * inv_n
    var = jnp.maximum(msq - mean * mean, 0.0)
    scale = lax.rsqrt(var + _EPS) * g
    return _lrelu(y * scale + (beta - mean * scale))


# ---------------------------------------------------------------------------
# Single fused kernel
# ---------------------------------------------------------------------------
def _generator_kernel(x_ref, w1_ref, g1_ref, be1_ref,
                      w2_ref, g2_ref, be2_ref,
                      wd_ref, gd_ref, bed_ref,
                      wf_ref, o_ref):
    n = x_ref.shape[0]
    f32 = jnp.float32
    bf16 = jnp.bfloat16

    # ---- fc1: Linear(input, 1024) + BN1d + LeakyReLU ------------------------
    # (bias dropped: exactly cancelled by the batch-stat BatchNorm that follows)
    x = x_ref[...].astype(bf16)
    h = jnp.dot(x, w1_ref[...], preferred_element_type=f32)
    h = _bn1d_lrelu(h, g1_ref[...], be1_ref[...], n)

    # ---- fc2: Linear(1024, 256) + BN1d + LeakyReLU ---------------------------
    # (columns pre-permuted at prep time -> output is channels-last, w-major)
    h = jnp.dot(h.astype(bf16), w2_ref[...], preferred_element_type=f32)
    h = _bn1d_lrelu(h, g2_ref[...], be2_ref[...], n)

    # slab of shape (W*N, 128), row = w*N + n; starts at W = 2
    z = jnp.concatenate([h[:, 0:_C], h[:, _C:2 * _C]], axis=0)

    # ---- 3 x [ConvTranspose2d(128->128,(1,2),s=2) + BN2d + LeakyReLU] --------
    for s in range(_STAGES):
        w_rows = z.shape[0]                     # W * N
        wcat = wd_ref[s]                        # (128, 256) bf16: cols 0:128 -> k=0
        g = gd_ref[s]                           # (1, 128) f32
        beta = bed_ref[s]                       # (1, 128) f32

        # single MXU matmul per stage
        y = jnp.dot(z.astype(bf16), wcat, preferred_element_type=f32)   # (W*N, 256)

        # BN2d channel stats in one pass (sum + sum of squares over all positions)
        inv_cnt = 1.0 / float(2 * w_rows)       # N*H*W positions per channel
        csum = jnp.sum(y, axis=0, keepdims=True)          # (1, 256)
        csq = jnp.sum(y * y, axis=0, keepdims=True)       # (1, 256)
        mean = (csum[:, 0:_C] + csum[:, _C:2 * _C]) * inv_cnt
        msq = (csq[:, 0:_C] + csq[:, _C:2 * _C]) * inv_cnt
        var = jnp.maximum(msq - mean * mean, 0.0)
        scale = lax.rsqrt(var + _EPS) * g
        shift = beta - mean * scale

        # deinterleave (W*N,256) -> (2W*N,128); slices are (8,128)-vreg aligned
        W = w_rows // n
        parts = []
        for w in range(W):
            rows = y[w * n:(w + 1) * n, :]
            parts.append(rows[:, 0:_C])          # output width 2w
            parts.append(rows[:, _C:2 * _C])     # output width 2w + 1
        z = jnp.concatenate(parts, axis=0)       # (2W*N, 128)

        # single normalize + LeakyReLU pass (one broadcast of scale/shift)
        z = _lrelu(z * scale + shift)

    # ---- final ConvTranspose2d(128->1,(128,1)) + monophonic ------------------
    # ONE (16N,128)x(128,128) matmul; final bias + LeakyReLU dropped (monotone /
    # constant shift cannot change the argmax one-hot).
    logits = jnp.dot(z.astype(bf16), wf_ref[...], preferred_element_type=f32)

    # TODO(synk): MonophonicLayer assumed = hard per-timestep argmax one-hot.
    col = lax.broadcasted_iota(jnp.int32, logits.shape, 1)
    m = jnp.max(logits, axis=-1, keepdims=True)
    first = jnp.min(jnp.where(logits >= m, col, _PITCH), axis=-1, keepdims=True)
    o_ref[...] = (col == first).astype(f32)      # one full lane-dense store


# ---------------------------------------------------------------------------
# Wrapper
# ---------------------------------------------------------------------------
def _cost_estimate(N, input_size):
    flops = 2 * N * (input_size * 1024 + 1024 * 2 * _C)
    for s in range(_STAGES):
        flops += 2 * (_W0 * (2 ** s) * N) * _C * (2 * _C)
    flops += 2 * (_WF * N) * _C * _PITCH
    bytes_accessed = (
        N * input_size * 4
        + (input_size * 1024 + 1024 * 2 * _C + _STAGES * _C * 2 * _C + _C * _PITCH) * 2
        + (1024 + 2 * _C + _STAGES * _C) * 2 * 4
        + _WF * N * _PITCH * 4)
    return pl.CostEstimate(flops=flops,
                           transcendentals=1024 + 2 * _C + _STAGES * _C,
                           bytes_accessed=bytes_accessed)


def generator_forward(x, prep):
    N, input_size = x.shape
    out = pl.pallas_call(
        _generator_kernel,
        out_shape=jax.ShapeDtypeStruct((_WF * N, _PITCH), jnp.float32),
        in_specs=[_VMEM] * 11,
        out_specs=_VMEM,
        cost_estimate=_cost_estimate(N, input_size),
    )(x,
      prep["w1"], prep["g1"], prep["beta1"],
      prep["w2"], prep["g2"], prep["beta2"],
      prep["wd"], prep["gd"], prep["betad"],
      prep["wf"])
    # kernel output rows are width-major (row = w*N + n); tiny XLA transpose
    # outside the kernel to PyTorch NCHW (N, 1, 128 pitch, 16 time).
    return out.reshape(_WF, N, _PITCH).transpose(1, 2, 0)[:, None, :, :]


# ---------------------------------------------------------------------------
# Parameter init (deterministic, synthetic, PyTorch layout)
# ---------------------------------------------------------------------------
def init_params(key, input_size):
    ks = jax.random.split(key, 12)
    s = 0.05
    p = {}
    p["w1"] = s * jax.random.normal(ks[0], (input_size, 1024), jnp.float32)
    p["b1"] = s * jax.random.normal(ks[1], (1024,), jnp.float32)
    p["g1"] = jnp.ones((1024,), jnp.float32)
    p["beta1"] = jnp.zeros((1024,), jnp.float32)
    p["w2"] = s * jax.random.normal(ks[2], (1024, 256), jnp.float32)
    p["b2"] = s * jax.random.normal(ks[3], (256,), jnp.float32)
    p["g2"] = jnp.ones((256,), jnp.float32)
    p["beta2"] = jnp.zeros((256,), jnp.float32)
    p["deconv"] = []
    for i in range(_STAGES):
        kk = jax.random.split(ks[4 + i], 3)
        p["deconv"].append(dict(
            w0=s * jax.random.normal(kk[0], (_C, _C), jnp.float32),   # k=0 tap
            w1=s * jax.random.normal(kk[1], (_C, _C), jnp.float32),   # k=1 tap
            b=s * jax.random.normal(kk[2], (_C,), jnp.float32),
            g=jnp.ones((_C,), jnp.float32),
            beta=jnp.zeros((_C,), jnp.float32),
        ))
    p["wf"] = s * jax.random.normal(ks[8], (_C, _PITCH), jnp.float32)  # (Cin, pitch)
    p["bf"] = s * jax.random.normal(ks[9], (1,), jnp.float32)
    return p


def prepare_params(p):
    """Trace/init-time layout plumbing: fc2 column permutation, deconv weight
    concatenation, bf16 weight casts, BN row reshapes.

    Biases b1/b2/bd are exactly cancelled by the following batch-statistics
    BatchNorms, and the final-conv bias (+ LeakyReLU) cannot change the argmax
    one-hot, so none of them are forwarded to the kernel (identical output)."""
    # fc2 column permutation: kernel col j = w*128 + c  <-  PyTorch feature c*2 + w
    j = jnp.arange(2 * _C)
    perm = (j % _C) * 2 + (j // _C)
    wd = jnp.stack([jnp.concatenate([d["w0"], d["w1"]], axis=1) for d in p["deconv"]])
    gd = jnp.stack([d["g"][None, :] for d in p["deconv"]])
    betad = jnp.stack([d["beta"][None, :] for d in p["deconv"]])
    return dict(
        w1=p["w1"].astype(jnp.bfloat16),
        g1=p["g1"][None, :], beta1=p["beta1"][None, :],
        w2=p["w2"][:, perm].astype(jnp.bfloat16),
        g2=p["g2"][perm][None, :], beta2=p["beta2"][perm][None, :],
        wd=wd.astype(jnp.bfloat16),            # (3, 128, 256)
        gd=gd, betad=betad,                    # (3, 1, 128)
        wf=p["wf"].astype(jnp.bfloat16),       # (128, 128)
    )


if __name__ == "__main__":
    key = jax.random.PRNGKey(0)
    k_x, k_p = jax.random.split(key)
    N, input_size = 8, 64
    x = jax.random.normal(k_x, (N, input_size), jnp.float32)
    raw = init_params(k_p, input_size)
    prep = prepare_params(raw)

    fwd = jax.jit(generator_forward)
    y = jax.block_until_ready(fwd(x, prep))

    assert y.shape == (N, 1, _PITCH, _WF), y.shape
    assert bool(jnp.all(y <= 1.0)), "Found a value bigger than one"
    # monophonic: every time step has exactly one active note
    assert bool(jnp.all(jnp.sum(y, axis=2) >= 1.0))
    print("KERNEL_OK")
</pallas_src>

<mosaic_0001>
module attributes {stable_mosaic.version = 11 : i64} {
  func.func @_generator_kernel(%arg0: memref<8x64xf32, #tpu.memory_space<vmem>>, %arg1: memref<64x1024xbf16, #tpu.memory_space<vmem>>, %arg2: memref<1x1024xf32, #tpu.memory_space<vmem>>, %arg3: memref<1x1024xf32, #tpu.memory_space<vmem>>, %arg4: memref<1024x256xbf16, #tpu.memory_space<vmem>>, %arg5: memref<1x256xf32, #tpu.memory_space<vmem>>, %arg6: memref<1x256xf32, #tpu.memory_space<vmem>>, %arg7: memref<3x128x256xbf16, #tpu.memory_space<vmem>>, %arg8: memref<3x1x128xf32, #tpu.memory_space<vmem>>, %arg9: memref<3x1x128xf32, #tpu.memory_space<vmem>>, %arg10: memref<128x128xbf16, #tpu.memory_space<vmem>>, %arg11: memref<128x128xf32, #tpu.memory_space<vmem>>) attributes {dimension_semantics = [], scalar_prefetch = 0 : i64, scratch_operands = 0 : i64, tpu.core_type = #tpu.core_type<tc>} {
    %c0 = arith.constant 0 : index
    %c0_0 = arith.constant 0 : index
    %0 = vector.load %arg0[%c0, %c0_0] : memref<8x64xf32, #tpu.memory_space<vmem>>, vector<8x64xf32>
    %1 = arith.truncf %0 : vector<8x64xf32> to vector<8x64xbf16>
    %c0_1 = arith.constant 0 : index
    %c0_2 = arith.constant 0 : index
    %2 = vector.load %arg1[%c0_1, %c0_2] : memref<64x1024xbf16, #tpu.memory_space<vmem>>, vector<64x1024xbf16>
    %cst = arith.constant dense<0.000000e+00> : vector<8x1024xf32>
    %3 = tpu.matmul %1, %2, %cst {dimension_numbers = #tpu.dot_dimension_numbers<[1], [0], [0], [1], [0, 0, 1, 1], [], []>} : vector<8x64xbf16>, vector<64x1024xbf16>, vector<8x1024xf32> -> vector<8x1024xf32>
    %c0_3 = arith.constant 0 : index
    %c0_4 = arith.constant 0 : index
    %4 = vector.load %arg2[%c0_3, %c0_4] : memref<1x1024xf32, #tpu.memory_space<vmem>>, vector<1x1024xf32>
    %c0_5 = arith.constant 0 : index
    %c0_6 = arith.constant 0 : index
    %5 = vector.load %arg3[%c0_5, %c0_6] : memref<1x1024xf32, #tpu.memory_space<vmem>>, vector<1x1024xf32>
    %cst_7 = arith.constant dense<0.000000e+00> : vector<1024xf32>
    %6 = vector.multi_reduction <add>, %3, %cst_7 [0] : vector<8x1024xf32> to vector<1024xf32>
    %7 = vector.shape_cast %6 : vector<1024xf32> to vector<1x1024xf32>
    %cst_8 = arith.constant 1.250000e-01 : f32
    %8 = vector.broadcast %cst_8 : f32 to vector<1x1024xf32>
    %9 = arith.mulf %7, %8 : vector<1x1024xf32>
    %10 = arith.mulf %3, %3 : vector<8x1024xf32>
    %cst_9 = arith.constant dense<0.000000e+00> : vector<1024xf32>
    %11 = vector.multi_reduction <add>, %10, %cst_9 [0] : vector<8x1024xf32> to vector<1024xf32>
    %12 = vector.shape_cast %11 : vector<1024xf32> to vector<1x1024xf32>
    %cst_10 = arith.constant 1.250000e-01 : f32
    %13 = vector.broadcast %cst_10 : f32 to vector<1x1024xf32>
    %14 = arith.mulf %12, %13 : vector<1x1024xf32>
    %15 = arith.mulf %9, %9 : vector<1x1024xf32>
    %16 = arith.subf %14, %15 : vector<1x1024xf32>
    %cst_11 = arith.constant 0.000000e+00 : f32
    %17 = vector.broadcast %cst_11 : f32 to vector<1x1024xf32>
    %18 = arith.maximumf %16, %17 : vector<1x1024xf32>
    %cst_12 = arith.constant 9.99999974E-6 : f32
    %19 = vector.broadcast %cst_12 : f32 to vector<1x1024xf32>
    %20 = arith.addf %18, %19 : vector<1x1024xf32>
    %21 = math.rsqrt %20 : vector<1x1024xf32>
    %22 = arith.mulf %21, %4 : vector<1x1024xf32>
    %23 = vector.broadcast %22 : vector<1x1024xf32> to vector<8x1024xf32>
    %24 = arith.mulf %3, %23 : vector<8x1024xf32>
    %25 = arith.mulf %9, %22 : vector<1x1024xf32>
    %26 = arith.subf %5, %25 : vector<1x1024xf32>
    %27 = vector.broadcast %26 : vector<1x1024xf32> to vector<8x1024xf32>
    %28 = arith.addf %24, %27 : vector<8x1024xf32>
    %cst_13 = arith.constant 0.000000e+00 : f32
    %29 = vector.broadcast %cst_13 : f32 to vector<8x1024xf32>
    %30 = arith.cmpf oge, %28, %29 : vector<8x1024xf32>
    %cst_14 = arith.constant 0.00999999977 : f32
    %31 = vector.broadcast %cst_14 : f32 to vector<8x1024xf32>
    %32 = arith.mulf %31, %28 : vector<8x1024xf32>
    %33 = arith.select %30, %28, %32 : vector<8x1024xi1>, vector<8x1024xf32>
    %34 = arith.truncf %33 : vector<8x1024xf32> to vector<8x1024xbf16>
    %c0_15 = arith.constant 0 : index
    %c0_16 = arith.constant 0 : index
    %35 = vector.load %arg4[%c0_15, %c0_16] : memref<1024x256xbf16, #tpu.memory_space<vmem>>, vector<1024x256xbf16>
    %cst_17 = arith.constant dense<0.000000e+00> : vector<8x256xf32>
    %36 = tpu.matmul %34, %35, %cst_17 {dimension_numbers = #tpu.dot_dimension_numbers<[1], [0], [0], [1], [0, 0, 1, 1], [], []>} : vector<8x1024xbf16>, vector<1024x256xbf16>, vector<8x256xf32> -> vector<8x256xf32>
    %c0_18 = arith.constant 0 : index
    %c0_19 = arith.constant 0 : index
    %37 = vector.load %arg5[%c0_18, %c0_19] : memref<1x256xf32, #tpu.memory_space<vmem>>, vector<1x256xf32>
    %c0_20 = arith.constant 0 : index
    %c0_21 = arith.constant 0 : index
    %38 = vector.load %arg6[%c0_20, %c0_21] : memref<1x256xf32, #tpu.memory_space<vmem>>, vector<1x256xf32>
    %cst_22 = arith.constant dense<0.000000e+00> : vector<256xf32>
    %39 = vector.multi_reduction <add>, %36, %cst_22 [0] : vector<8x256xf32> to vector<256xf32>
    %40 = vector.shape_cast %39 : vector<256xf32> to vector<1x256xf32>
    %cst_23 = arith.constant 1.250000e-01 : f32
    %41 = vector.broadcast %cst_23 : f32 to vector<1x256xf32>
    %42 = arith.mulf %40, %41 : vector<1x256xf32>
    %43 = arith.mulf %36, %36 : vector<8x256xf32>
    %cst_24 = arith.constant dense<0.000000e+00> : vector<256xf32>
    %44 = vector.multi_reduction <add>, %43, %cst_24 [0] : vector<8x256xf32> to vector<256xf32>
    %45 = vector.shape_cast %44 : vector<256xf32> to vector<1x256xf32>
    %cst_25 = arith.constant 1.250000e-01 : f32
    %46 = vector.broadcast %cst_25 : f32 to vector<1x256xf32>
    %47 = arith.mulf %45, %46 : vector<1x256xf32>
    %48 = arith.mulf %42, %42 : vector<1x256xf32>
    %49 = arith.subf %47, %48 : vector<1x256xf32>
    %cst_26 = arith.constant 0.000000e+00 : f32
    %50 = vector.broadcast %cst_26 : f32 to vector<1x256xf32>
    %51 = arith.maximumf %49, %50 : vector<1x256xf32>
    %cst_27 = arith.constant 9.99999974E-6 : f32
    %52 = vector.broadcast %cst_27 : f32 to vector<1x256xf32>
    %53 = arith.addf %51, %52 : vector<1x256xf32>
    %54 = math.rsqrt %53 : vector<1x256xf32>
    %55 = arith.mulf %54, %37 : vector<1x256xf32>
    %56 = vector.broadcast %55 : vector<1x256xf32> to vector<8x256xf32>
    %57 = arith.mulf %36, %56 : vector<8x256xf32>
    %58 = arith.mulf %42, %55 : vector<1x256xf32>
    %59 = arith.subf %38, %58 : vector<1x256xf32>
    %60 = vector.broadcast %59 : vector<1x256xf32> to vector<8x256xf32>
    %61 = arith.addf %57, %60 : vector<8x256xf32>
    %cst_28 = arith.constant 0.000000e+00 : f32
    %62 = vector.broadcast %cst_28 : f32 to vector<8x256xf32>
    %63 = arith.cmpf oge, %61, %62 : vector<8x256xf32>
    %cst_29 = arith.constant 0.00999999977 : f32
    %64 = vector.broadcast %cst_29 : f32 to vector<8x256xf32>
    %65 = arith.mulf %64, %61 : vector<8x256xf32>
    %66 = arith.select %63, %61, %65 : vector<8x256xi1>, vector<8x256xf32>
    %67 = vector.extract_strided_slice %66 {offsets = [0, 0], sizes = [8, 128], strides = [1, 1]} : vector<8x256xf32> to vector<8x128xf32>
    %68 = vector.extract_strided_slice %66 {offsets = [0, 128], sizes = [8, 128], strides = [1, 1]} : vector<8x256xf32> to vector<8x128xf32>
    %69 = tpu.concatenate %67, %68 in 0 : vector<8x128xf32>, vector<8x128xf32> -> vector<16x128xf32>
    %c0_30 = arith.constant 0 : index
    %c0_31 = arith.constant 0 : index
    %c0_32 = arith.constant 0 : index
    %70 = vector.load %arg7[%c0_30, %c0_31, %c0_32] : memref<3x128x256xbf16, #tpu.memory_space<vmem>>, vector<1x128x256xbf16>
    %71 = vector.shape_cast %70 : vector<1x128x256xbf16> to vector<128x256xbf16>
    %c0_33 = arith.constant 0 : index
    %c0_34 = arith.constant 0 : index
    %c0_35 = arith.constant 0 : index
    %72 = vector.load %arg8[%c0_33, %c0_34, %c0_35] : memref<3x1x128xf32, #tpu.memory_space<vmem>>, vector<1x1x128xf32>
    %73 = vector.shape_cast %72 : vector<1x1x128xf32> to vector<1x128xf32>
    %c0_36 = arith.constant 0 : index
    %c0_37 = arith.constant 0 : index
    %c0_38 = arith.constant 0 : index
    %74 = vector.load %arg9[%c0_36, %c0_37, %c0_38] : memref<3x1x128xf32, #tpu.memory_space<vmem>>, vector<1x1x128xf32>
    %75 = vector.shape_cast %74 : vector<1x1x128xf32> to vector<1x128xf32>
    %76 = arith.truncf %69 : vector<16x128xf32> to vector<16x128xbf16>
    %cst_39 = arith.constant dense<0.000000e+00> : vector<16x256xf32>
    %77 = tpu.matmul %76, %71, %cst_39 {dimension_numbers = #tpu.dot_dimension_numbers<[1], [0], [0], [1], [0, 0, 1, 1], [], []>} : vector<16x128xbf16>, vector<128x256xbf16>, vector<16x256xf32> -> vector<16x256xf32>
    %cst_40 = arith.constant dense<0.000000e+00> : vector<256xf32>
    %78 = vector.multi_reduction <add>, %77, %cst_40 [0] : vector<16x256xf32> to vector<256xf32>
    %79 = vector.shape_cast %78 : vector<256xf32> to vector<1x256xf32>
    %80 = arith.mulf %77, %77 : vector<16x256xf32>
    %cst_41 = arith.constant dense<0.000000e+00> : vector<256xf32>
    %81 = vector.multi_reduction <add>, %80, %cst_41 [0] : vector<16x256xf32> to vector<256xf32>
    %82 = vector.shape_cast %81 : vector<256xf32> to vector<1x256xf32>
    %83 = vector.extract_strided_slice %79 {offsets = [0, 0], sizes = [1, 128], strides = [1, 1]} : vector<1x256xf32> to vector<1x128xf32>
    %84 = vector.extract_strided_slice %79 {offsets = [0, 128], sizes = [1, 128], strides = [1, 1]} : vector<1x256xf32> to vector<1x128xf32>
    %85 = arith.addf %83, %84 : vector<1x128xf32>
    %cst_42 = arith.constant 3.125000e-02 : f32
    %86 = vector.broadcast %cst_42 : f32 to vector<1x128xf32>
    %87 = arith.mulf %85, %86 : vector<1x128xf32>
    %88 = vector.extract_strided_slice %82 {offsets = [0, 0], sizes = [1, 128], strides = [1, 1]} : vector<1x256xf32> to vector<1x128xf32>
    %89 = vector.extract_strided_slice %82 {offsets = [0, 128], sizes = [1, 128], strides = [1, 1]} : vector<1x256xf32> to vector<1x128xf32>
    %90 = arith.addf %88, %89 : vector<1x128xf32>
    %cst_43 = arith.constant 3.125000e-02 : f32
    %91 = vector.broadcast %cst_43 : f32 to vector<1x128xf32>
    %92 = arith.mulf %90, %91 : vector<1x128xf32>
    %93 = arith.mulf %87, %87 : vector<1x128xf32>
    %94 = arith.subf %92, %93 : vector<1x128xf32>
    %cst_44 = arith.constant 0.000000e+00 : f32
    %95 = vector.broadcast %cst_44 : f32 to vector<1x128xf32>
    %96 = arith.maximumf %94, %95 : vector<1x128xf32>
    %cst_45 = arith.constant 9.99999974E-6 : f32
    %97 = vector.broadcast %cst_45 : f32 to vector<1x128xf32>
    %98 = arith.addf %96, %97 : vector<1x128xf32>
    %99 = math.rsqrt %98 : vector<1x128xf32>
    %100 = arith.mulf %99, %73 : vector<1x128xf32>
    %101 = arith.mulf %87, %100 : vector<1x128xf32>
    %102 = arith.subf %75, %101 : vector<1x128xf32>
    %103 = vector.extract_strided_slice %77 {offsets = [0, 0], sizes = [8, 256], strides = [1, 1]} : vector<16x256xf32> to vector<8x256xf32>
    %104 = vector.extract_strided_slice %103 {offsets = [0, 0], sizes = [8, 128], strides = [1, 1]} : vector<8x256xf32> to vector<8x128xf32>
    %105 = vector.extract_strided_slice %103 {offsets = [0, 128], sizes = [8, 128], strides = [1, 1]} : vector<8x256xf32> to vector<8x128xf32>
    %106 = vector.extract_strided_slice %77 {offsets = [8, 0], sizes = [8, 256], strides = [1, 1]} : vector<16x256xf32> to vector<8x256xf32>
    %107 = vector.extract_strided_slice %106 {offsets = [0, 0], sizes = [8, 128], strides = [1, 1]} : vector<8x256xf32> to vector<8x128xf32>
    %108 = vector.extract_strided_slice %106 {offsets = [0, 128], sizes = [8, 128], strides = [1, 1]} : vector<8x256xf32> to vector<8x128xf32>
    %109 = tpu.concatenate %104, %105, %107, %108 in 0 : vector<8x128xf32>, vector<8x128xf32>, vector<8x128xf32>, vector<8x128xf32> -> vector<32x128xf32>
    %110 = vector.broadcast %100 : vector<1x128xf32> to vector<32x128xf32>
    %111 = arith.mulf %109, %110 : vector<32x128xf32>
    %112 = vector.broadcast %102 : vector<1x128xf32> to vector<32x128xf32>
    %113 = arith.addf %111, %112 : vector<32x128xf32>
    %cst_46 = arith.constant 0.000000e+00 : f32
    %114 = vector.broadcast %cst_46 : f32 to vector<32x128xf32>
    %115 = arith.cmpf oge, %113, %114 : vector<32x128xf32>
    %cst_47 = arith.constant 0.00999999977 : f32
    %116 = vector.broadcast %cst_47 : f32 to vector<32x128xf32>
    %117 = arith.mulf %116, %113 : vector<32x128xf32>
    %118 = arith.select %115, %113, %117 : vector<32x128xi1>, vector<32x128xf32>
    %c1 = arith.constant 1 : index
    %c0_48 = arith.constant 0 : index
    %c0_49 = arith.constant 0 : index
    %119 = vector.load %arg7[%c1, %c0_48, %c0_49] : memref<3x128x256xbf16, #tpu.memory_space<vmem>>, vector<1x128x256xbf16>
    %120 = vector.shape_cast %119 : vector<1x128x256xbf16> to vector<128x256xbf16>
    %c1_50 = arith.constant 1 : index
    %c0_51 = arith.constant 0 : index
    %c0_52 = arith.constant 0 : index
    %121 = vector.load %arg8[%c1_50, %c0_51, %c0_52] : memref<3x1x128xf32, #tpu.memory_space<vmem>>, vector<1x1x128xf32>
    %122 = vector.shape_cast %121 : vector<1x1x128xf32> to vector<1x128xf32>
    %c1_53 = arith.constant 1 : index
    %c0_54 = arith.constant 0 : index
    %c0_55 = arith.constant 0 : index
    %123 = vector.load %arg9[%c1_53, %c0_54, %c0_55] : memref<3x1x128xf32, #tpu.memory_space<vmem>>, vector<1x1x128xf32>
    %124 = vector.shape_cast %123 : vector<1x1x128xf32> to vector<1x128xf32>
    %125 = arith.truncf %118 : vector<32x128xf32> to vector<32x128xbf16>
    %cst_56 = arith.constant dense<0.000000e+00> : vector<32x256xf32>
    %126 = tpu.matmul %125, %120, %cst_56 {dimension_numbers = #tpu.dot_dimension_numbers<[1], [0], [0], [1], [0, 0, 1, 1], [], []>} : vector<32x128xbf16>, vector<128x256xbf16>, vector<32x256xf32> -> vector<32x256xf32>
    %cst_57 = arith.constant dense<0.000000e+00> : vector<256xf32>
    %127 = vector.multi_reduction <add>, %126, %cst_57 [0] : vector<32x256xf32> to vector<256xf32>
    %128 = vector.shape_cast %127 : vector<256xf32> to vector<1x256xf32>
    %129 = arith.mulf %126, %126 : vector<32x256xf32>
    %cst_58 = arith.constant dense<0.000000e+00> : vector<256xf32>
    %130 = vector.multi_reduction <add>, %129, %cst_58 [0] : vector<32x256xf32> to vector<256xf32>
    %131 = vector.shape_cast %130 : vector<256xf32> to vector<1x256xf32>
    %132 = vector.extract_strided_slice %128 {offsets = [0, 0], sizes = [1, 128], strides = [1, 1]} : vector<1x256xf32> to vector<1x128xf32>
    %133 = vector.extract_strided_slice %128 {offsets = [0, 128], sizes = [1, 128], strides = [1, 1]} : vector<1x256xf32> to vector<1x128xf32>
    %134 = arith.addf %132, %133 : vector<1x128xf32>
    %cst_59 = arith.constant 1.562500e-02 : f32
    %135 = vector.broadcast %cst_59 : f32 to vector<1x128xf32>
    %136 = arith.mulf %134, %135 : vector<1x128xf32>
    %137 = vector.extract_strided_slice %131 {offsets = [0, 0], sizes = [1, 128], strides = [1, 1]} : vector<1x256xf32> to vector<1x128xf32>
    %138 = vector.extract_strided_slice %131 {offsets = [0, 128], sizes = [1, 128], strides = [1, 1]} : vector<1x256xf32> to vector<1x128xf32>
    %139 = arith.addf %137, %138 : vector<1x128xf32>
    %cst_60 = arith.constant 1.562500e-02 : f32
    %140 = vector.broadcast %cst_60 : f32 to vector<1x128xf32>
    %141 = arith.mulf %139, %140 : vector<1x128xf32>
    %142 = arith.mulf %136, %136 : vector<1x128xf32>
    %143 = arith.subf %141, %142 : vector<1x128xf32>
    %cst_61 = arith.constant 0.000000e+00 : f32
    %144 = vector.broadcast %cst_61 : f32 to vector<1x128xf32>
    %145 = arith.maximumf %143, %144 : vector<1x128xf32>
    %cst_62 = arith.constant 9.99999974E-6 : f32
    %146 = vector.broadcast %cst_62 : f32 to vector<1x128xf32>
    %147 = arith.addf %145, %146 : vector<1x128xf32>
    %148 = math.rsqrt %147 : vector<1x128xf32>
    %149 = arith.mulf %148, %122 : vector<1x128xf32>
    %150 = arith.mulf %136, %149 : vector<1x128xf32>
    %151 = arith.subf %124, %150 : vector<1x128xf32>
    %152 = vector.extract_strided_slice %126 {offsets = [0, 0], sizes = [8, 256], strides = [1, 1]} : vector<32x256xf32> to vector<8x256xf32>
    %153 = vector.extract_strided_slice %152 {offsets = [0, 0], sizes = [8, 128], strides = [1, 1]} : vector<8x256xf32> to vector<8x128xf32>
    %154 = vector.extract_strided_slice %152 {offsets = [0, 128], sizes = [8, 128], strides = [1, 1]} : vector<8x256xf32> to vector<8x128xf32>
    %155 = vector.extract_strided_slice %126 {offsets = [8, 0], sizes = [8, 256], strides = [1, 1]} : vector<32x256xf32> to vector<8x256xf32>
    %156 = vector.extract_strided_slice %155 {offsets = [0, 0], sizes = [8, 128], strides = [1, 1]} : vector<8x256xf32> to vector<8x128xf32>
    %157 = vector.extract_strided_slice %155 {offsets = [0, 128], sizes = [8, 128], strides = [1, 1]} : vector<8x256xf32> to vector<8x128xf32>
    %158 = vector.extract_strided_slice %126 {offsets = [16, 0], sizes = [8, 256], strides = [1, 1]} : vector<32x256xf32> to vector<8x256xf32>
    %159 = vector.extract_strided_slice %158 {offsets = [0, 0], sizes = [8, 128], strides = [1, 1]} : vector<8x256xf32> to vector<8x128xf32>
    %160 = vector.extract_strided_slice %158 {offsets = [0, 128], sizes = [8, 128], strides = [1, 1]} : vector<8x256xf32> to vector<8x128xf32>
    %161 = vector.extract_strided_slice %126 {offsets = [24, 0], sizes = [8, 256], strides = [1, 1]} : vector<32x256xf32> to vector<8x256xf32>
    %162 = vector.extract_strided_slice %161 {offsets = [0, 0], sizes = [8, 128], strides = [1, 1]} : vector<8x256xf32> to vector<8x128xf32>
    %163 = vector.extract_strided_slice %161 {offsets = [0, 128], sizes = [8, 128], strides = [1, 1]} : vector<8x256xf32> to vector<8x128xf32>
    %164 = tpu.concatenate %153, %154, %156, %157, %159, %160, %162, %163 in 0 : vector<8x128xf32>, vector<8x128xf32>, vector<8x128xf32>, vector<8x128xf32>, vector<8x128xf32>, vector<8x128xf32>, vector<8x128xf32>, vector<8x128xf32> -> vector<64x128xf32>
    %165 = vector.broadcast %149 : vector<1x128xf32> to vector<64x128xf32>
    %166 = arith.mulf %164, %165 : vector<64x128xf32>
    %167 = vector.broadcast %151 : vector<1x128xf32> to vector<64x128xf32>
    %168 = arith.addf %166, %167 : vector<64x128xf32>
    %cst_63 = arith.constant 0.000000e+00 : f32
    %169 = vector.broadcast %cst_63 : f32 to vector<64x128xf32>
    %170 = arith.cmpf oge, %168, %169 : vector<64x128xf32>
    %cst_64 = arith.constant 0.00999999977 : f32
    %171 = vector.broadcast %cst_64 : f32 to vector<64x128xf32>
    %172 = arith.mulf %171, %168 : vector<64x128xf32>
    %173 = arith.select %170, %168, %172 : vector<64x128xi1>, vector<64x128xf32>
    %c2 = arith.constant 2 : index
    %c0_65 = arith.constant 0 : index
    %c0_66 = arith.constant 0 : index
    %174 = vector.load %arg7[%c2, %c0_65, %c0_66] : memref<3x128x256xbf16, #tpu.memory_space<vmem>>, vector<1x128x256xbf16>
    %175 = vector.shape_cast %174 : vector<1x128x256xbf16> to vector<128x256xbf16>
    %c2_67 = arith.constant 2 : index
    %c0_68 = arith.constant 0 : index
    %c0_69 = arith.constant 0 : index
    %176 = vector.load %arg8[%c2_67, %c0_68, %c0_69] : memref<3x1x128xf32, #tpu.memory_space<vmem>>, vector<1x1x128xf32>
    %177 = vector.shape_cast %176 : vector<1x1x128xf32> to vector<1x128xf32>
    %c2_70 = arith.constant 2 : index
    %c0_71 = arith.constant 0 : index
    %c0_72 = arith.constant 0 : index
    %178 = vector.load %arg9[%c2_70, %c0_71, %c0_72] : memref<3x1x128xf32, #tpu.memory_space<vmem>>, vector<1x1x128xf32>
    %179 = vector.shape_cast %178 : vector<1x1x128xf32> to vector<1x128xf32>
    %180 = arith.truncf %173 : vector<64x128xf32> to vector<64x128xbf16>
    %cst_73 = arith.constant dense<0.000000e+00> : vector<64x256xf32>
    %181 = tpu.matmul %180, %175, %cst_73 {dimension_numbers = #tpu.dot_dimension_numbers<[1], [0], [0], [1], [0, 0, 1, 1], [], []>} : vector<64x128xbf16>, vector<128x256xbf16>, vector<64x256xf32> -> vector<64x256xf32>
    %cst_74 = arith.constant dense<0.000000e+00> : vector<256xf32>
    %182 = vector.multi_reduction <add>, %181, %cst_74 [0] : vector<64x256xf32> to vector<256xf32>
    %183 = vector.shape_cast %182 : vector<256xf32> to vector<1x256xf32>
    %184 = arith.mulf %181, %181 : vector<64x256xf32>
    %cst_75 = arith.constant dense<0.000000e+00> : vector<256xf32>
    %185 = vector.multi_reduction <add>, %184, %cst_75 [0] : vector<64x256xf32> to vector<256xf32>
    %186 = vector.shape_cast %185 : vector<256xf32> to vector<1x256xf32>
    %187 = vector.extract_strided_slice %183 {offsets = [0, 0], sizes = [1, 128], strides = [1, 1]} : vector<1x256xf32> to vector<1x128xf32>
    %188 = vector.extract_strided_slice %183 {offsets = [0, 128], sizes = [1, 128], strides = [1, 1]} : vector<1x256xf32> to vector<1x128xf32>
    %189 = arith.addf %187, %188 : vector<1x128xf32>
    %cst_76 = arith.constant 7.812500e-03 : f32
    %190 = vector.broadcast %cst_76 : f32 to vector<1x128xf32>
    %191 = arith.mulf %189, %190 : vector<1x128xf32>
    %192 = vector.extract_strided_slice %186 {offsets = [0, 0], sizes = [1, 128], strides = [1, 1]} : vector<1x256xf32> to vector<1x128xf32>
    %193 = vector.extract_strided_slice %186 {offsets = [0, 128], sizes = [1, 128], strides = [1, 1]} : vector<1x256xf32> to vector<1x128xf32>
    %194 = arith.addf %192, %193 : vector<1x128xf32>
    %cst_77 = arith.constant 7.812500e-03 : f32
    %195 = vector.broadcast %cst_77 : f32 to vector<1x128xf32>
    %196 = arith.mulf %194, %195 : vector<1x128xf32>
    %197 = arith.mulf %191, %191 : vector<1x128xf32>
    %198 = arith.subf %196, %197 : vector<1x128xf32>
    %cst_78 = arith.constant 0.000000e+00 : f32
    %199 = vector.broadcast %cst_78 : f32 to vector<1x128xf32>
    %200 = arith.maximumf %198, %199 : vector<1x128xf32>
    %cst_79 = arith.constant 9.99999974E-6 : f32
    %201 = vector.broadcast %cst_79 : f32 to vector<1x128xf32>
    %202 = arith.addf %200, %201 : vector<1x128xf32>
    %203 = math.rsqrt %202 : vector<1x128xf32>
    %204 = arith.mulf %203, %177 : vector<1x128xf32>
    %205 = arith.mulf %191, %204 : vector<1x128xf32>
    %206 = arith.subf %179, %205 : vector<1x128xf32>
    %207 = vector.extract_strided_slice %181 {offsets = [0, 0], sizes = [8, 256], strides = [1, 1]} : vector<64x256xf32> to vector<8x256xf32>
    %208 = vector.extract_strided_slice %207 {offsets = [0, 0], sizes = [8, 128], strides = [1, 1]} : vector<8x256xf32> to vector<8x128xf32>
    %209 = vector.extract_strided_slice %207 {offsets = [0, 128], sizes = [8, 128], strides = [1, 1]} : vector<8x256xf32> to vector<8x128xf32>
    %210 = vector.extract_strided_slice %181 {offsets = [8, 0], sizes = [8, 256], strides = [1, 1]} : vector<64x256xf32> to vector<8x256xf32>
    %211 = vector.extract_strided_slice %210 {offsets = [0, 0], sizes = [8, 128], strides = [1, 1]} : vector<8x256xf32> to vector<8x128xf32>
    %212 = vector.extract_strided_slice %210 {offsets = [0, 128], sizes = [8, 128], strides = [1, 1]} : vector<8x256xf32> to vector<8x128xf32>
    %213 = vector.extract_strided_slice %181 {offsets = [16, 0], sizes = [8, 256], strides = [1, 1]} : vector<64x256xf32> to vector<8x256xf32>
    %214 = vector.extract_strided_slice %213 {offsets = [0, 0], sizes = [8, 128], strides = [1, 1]} : vector<8x256xf32> to vector<8x128xf32>
    %215 = vector.extract_strided_slice %213 {offsets = [0, 128], sizes = [8, 128], strides = [1, 1]} : vector<8x256xf32> to vector<8x128xf32>
    %216 = vector.extract_strided_slice %181 {offsets = [24, 0], sizes = [8, 256], strides = [1, 1]} : vector<64x256xf32> to vector<8x256xf32>
    %217 = vector.extract_strided_slice %216 {offsets = [0, 0], sizes = [8, 128], strides = [1, 1]} : vector<8x256xf32> to vector<8x128xf32>
    %218 = vector.extract_strided_slice %216 {offsets = [0, 128], sizes = [8, 128], strides = [1, 1]} : vector<8x256xf32> to vector<8x128xf32>
    %219 = vector.extract_strided_slice %181 {offsets = [32, 0], sizes = [8, 256], strides = [1, 1]} : vector<64x256xf32> to vector<8x256xf32>
    %220 = vector.extract_strided_slice %219 {offsets = [0, 0], sizes = [8, 128], strides = [1, 1]} : vector<8x256xf32> to vector<8x128xf32>
    %221 = vector.extract_strided_slice %219 {offsets = [0, 128], sizes = [8, 128], strides = [1, 1]} : vector<8x256xf32> to vector<8x128xf32>
    %222 = vector.extract_strided_slice %181 {offsets = [40, 0], sizes = [8, 256], strides = [1, 1]} : vector<64x256xf32> to vector<8x256xf32>
    %223 = vector.extract_strided_slice %222 {offsets = [0, 0], sizes = [8, 128], strides = [1, 1]} : vector<8x256xf32> to vector<8x128xf32>
    %224 = vector.extract_strided_slice %222 {offsets = [0, 128], sizes = [8, 128], strides = [1, 1]} : vector<8x256xf32> to vector<8x128xf32>
    %225 = vector.extract_strided_slice %181 {offsets = [48, 0], sizes = [8, 256], strides = [1, 1]} : vector<64x256xf32> to vector<8x256xf32>
    %226 = vector.extract_strided_slice %225 {offsets = [0, 0], sizes = [8, 128], strides = [1, 1]} : vector<8x256xf32> to vector<8x128xf32>
    %227 = vector.extract_strided_slice %225 {offsets = [0, 128], sizes = [8, 128], strides = [1, 1]} : vector<8x256xf32> to vector<8x128xf32>
    %228 = vector.extract_strided_slice %181 {offsets = [56, 0], sizes = [8, 256], strides = [1, 1]} : vector<64x256xf32> to vector<8x256xf32>
    %229 = vector.extract_strided_slice %228 {offsets = [0, 0], sizes = [8, 128], strides = [1, 1]} : vector<8x256xf32> to vector<8x128xf32>
    %230 = vector.extract_strided_slice %228 {offsets = [0, 128], sizes = [8, 128], strides = [1, 1]} : vector<8x256xf32> to vector<8x128xf32>
    %231 = tpu.concatenate %208, %209, %211, %212, %214, %215, %217, %218, %220, %221, %223, %224, %226, %227, %229, %230 in 0 : vector<8x128xf32>, vector<8x128xf32>, vector<8x128xf32>, vector<8x128xf32>, vector<8x128xf32>, vector<8x128xf32>, vector<8x128xf32>, vector<8x128xf32>, vector<8x128xf32>, vector<8x128xf32>, vector<8x128xf32>, vector<8x128xf32>, vector<8x128xf32>, vector<8x128xf32>, vector<8x128xf32>, vector<8x128xf32> -> vector<128x128xf32>
    %232 = vector.broadcast %204 : vector<1x128xf32> to vector<128x128xf32>
    %233 = arith.mulf %231, %232 : vector<128x128xf32>
    %234 = vector.broadcast %206 : vector<1x128xf32> to vector<128x128xf32>
    %235 = arith.addf %233, %234 : vector<128x128xf32>
    %cst_80 = arith.constant 0.000000e+00 : f32
    %236 = vector.broadcast %cst_80 : f32 to vector<128x128xf32>
    %237 = arith.cmpf oge, %235, %236 : vector<128x128xf32>
    %cst_81 = arith.constant 0.00999999977 : f32
    %238 = vector.broadcast %cst_81 : f32 to vector<128x128xf32>
    %239 = arith.mulf %238, %235 : vector<128x128xf32>
    %240 = arith.select %237, %235, %239 : vector<128x128xi1>, vector<128x128xf32>
    %241 = arith.truncf %240 : vector<128x128xf32> to vector<128x128xbf16>
    %c0_82 = arith.constant 0 : index
    %c0_83 = arith.constant 0 : index
    %242 = vector.load %arg10[%c0_82, %c0_83] : memref<128x128xbf16, #tpu.memory_space<vmem>>, vector<128x128xbf16>
    %cst_84 = arith.constant dense<0.000000e+00> : vector<128x128xf32>
    %243 = tpu.matmul %241, %242, %cst_84 {dimension_numbers = #tpu.dot_dimension_numbers<[1], [0], [0], [1], [0, 0, 1, 1], [], []>} : vector<128x128xbf16>, vector<128x128xbf16>, vector<128x128xf32> -> vector<128x128xf32>
    %244 = tpu.iota {dimensions = array<i32: 1>} : vector<128x128xi32>
    %cst_85 = arith.constant dense<0xFF800000> : vector<128xf32>
    %245 = vector.multi_reduction <maximumf>, %243, %cst_85 [1] : vector<128x128xf32> to vector<128xf32>
    %246 = vector.shape_cast %245 : vector<128xf32> to vector<128x1xf32>
    %247 = vector.broadcast %246 : vector<128x1xf32> to vector<128x128xf32>
    %248 = arith.cmpf oge, %243, %247 : vector<128x128xf32>
    %c128_i32 = arith.constant 128 : i32
    %249 = vector.broadcast %c128_i32 : i32 to vector<128x128xi32>
    %250 = arith.select %248, %244, %249 : vector<128x128xi1>, vector<128x128xi32>
    %cst_86 = arith.constant dense<2147483647> : vector<128xi32>
    %251 = vector.multi_reduction <minsi>, %250, %cst_86 [1] : vector<128x128xi32> to vector<128xi32>
    %252 = vector.shape_cast %251 : vector<128xi32> to vector<128x1xi32>
    %253 = vector.broadcast %252 : vector<128x1xi32> to vector<128x128xi32>
    %254 = arith.cmpi eq, %244, %253 : vector<128x128xi32>
    %255 = arith.extui %254 : vector<128x128xi1> to vector<128x128xi32>
    %256 = arith.sitofp %255 : vector<128x128xi32> to vector<128x128xf32>
    %c0_87 = arith.constant 0 : index
    %c0_88 = arith.constant 0 : index
    %257 = vector.load %arg11[%c0_87, %c0_88] : memref<128x128xf32, #tpu.memory_space<vmem>>, vector<128x128xf32>
    tpu.vector_store %arg11[%c0_87, %c0_88], %256 {strides = array<i32>} : memref<128x128xf32, #tpu.memory_space<vmem>>, vector<128x128xf32>,
    return
  }
}

</mosaic_0001>

<llo_original>
// kernel: generator_forward.1
$region0: #{generator_forward.1}
  #allocation0 [shape = 'u32[]', space=smem, size = 0x4, offset = 0x4, fixed_abs, tag = 'smem constant byte address 0x4 - core index']
  #allocation1 [shape = 'u32[144,128]{1,0:T(1,128)}', space=vmem, size = 0x12000, scoped, tag = 'internal scratch']
  %s0 = inlined_call_operand.hbm [shape: f32[8,64], index: 0, kind: input, shape index: {}]
  %s1 = inlined_call_operand.hbm [shape: bf16[64,1024], index: 1, kind: input, shape index: {}]
  %s2 = inlined_call_operand.vmem [shape: f32[1,1024], index: 2, kind: input, shape index: {}]
  %s3 = inlined_call_operand.hbm [shape: f32[1,1024], index: 3, kind: input, shape index: {}]
  %s4 = inlined_call_operand.hbm [shape: bf16[1024,256], index: 4, kind: input, shape index: {}]
  %s5 = inlined_call_operand.vmem [shape: f32[1,256], index: 5, kind: input, shape index: {}]
  %s6 = inlined_call_operand.hbm [shape: f32[1,256], index: 6, kind: input, shape index: {}]
  %s7 = inlined_call_operand.hbm [shape: bf16[3,128,256], index: 7, kind: input, shape index: {}]
  %s8 = inlined_call_operand.vmem [shape: f32[3,1,128], index: 8, kind: input, shape index: {}]
  %s9 = inlined_call_operand.vmem [shape: f32[3,1,128], index: 9, kind: input, shape index: {}]
  %s10 = inlined_call_operand.hbm [shape: bf16[128,128], index: 10, kind: input, shape index: {}]
  %s11 = inlined_call_operand.vmem [shape: f32[128,128], index: 11, kind: output, shape index: {}]
  %s12 = sld [smem:[#allocation0]]
  $region82: #{generator_forward.1} parent=0
    _
  %s14 = ssub.s32 1, %s12
  %s15 = scalar_select 0, %s14, %s12
  $region1: #{generator_forward.1} parent=0
    #allocation2 [shape = 'u8[4096]{0}', space=vmem, size = 0x1000, scoped, tag = 'input window, operand 0, single buffered']
    #allocation3 [shape = 's32[1]{0}', space=sflag, size = 0x4, scoped, tag = 'scoped memory for generator_forward.1']
    #allocation4 [shape = 'u8[131072]{0}', space=vmem, size = 0x20000, scoped, tag = 'input window, operand 1, single buffered']
    #allocation5 [shape = 's32[1]{0}', space=sflag, size = 0x4, scoped, tag = 'scoped memory for generator_forward.1']
    #allocation6 [shape = 'u8[4096]{0}', space=vmem, size = 0x1000, scoped, tag = 'input window, operand 3, single buffered']
    #allocation7 [shape = 'u8[524288]{0}', space=vmem, size = 0x80000, scoped, tag = 'input window, operand 4, single buffered']
    #allocation8 [shape = 's32[1]{0}', space=sflag, size = 0x4, scoped, tag = 'scoped memory for generator_forward.1']
    #allocation9 [shape = 'u8[1024]{0}', space=vmem, size = 0x400, scoped, tag = 'input window, operand 6, single buffered']
    #allocation10 [shape = 'u8[196608]{0}', space=vmem, size = 0x30000, scoped, tag = 'input window, operand 7, single buffered']
    #allocation11 [shape = 's32[1]{0}', space=sflag, size = 0x4, scoped, tag = 'scoped memory for generator_forward.1']
    #allocation12 [shape = 'u8[32768]{0}', space=vmem, size = 0x8000, scoped, tag = 'input window, operand 10, single buffered']
    %16 = vsyncpa [#allocation3], 0
    %17 = vsyncpa [#allocation5], 0
    %18 = vsyncpa [#allocation8], 0
    %19 = vsyncpa [#allocation11], 0
    // Predicated region
    $region2: #{generator_forward.1} parent=1 // pred_check
      _
    $region3: #{generator_forward.1} parent=1 // pred_check_branch
      %21 = sbr.rel (0) target = $region5
    $region4: #{generator_forward.1} parent=1 // pred_region
      %s23 = ssub.s32 128, 128
      %24 = vsyncadd [#allocation3], %s23
      %s26 = sshll.u32 [#allocation2], 4
      %s27 = int_to_ptr.vmem [resolvable:$true] %s26
      %29 = dma.hbm_to_vmem [thread:$0]  %s0, 128, %s27, [#allocation3]
    $region5: #{generator_forward.1} parent=1 // pred_fallthru
      _
    // Predicated region
    $region6: #{generator_forward.1} parent=1 // pred_check
      _
    $region7: #{generator_forward.1} parent=1 // pred_check_branch
      %31 = sbr.rel (0) target = $region9
    $region8: #{generator_forward.1} parent=1 // pred_region
      %s33 = ssub.s32 4096, 4096
      %34 = vsyncadd [#allocation5], %s33
      %s35 = sshll.u32 [#allocation4], 4
      %s36 = int_to_ptr.vmem [resolvable:$true] %s35
      %41 = dma.hbm_to_vmem [thread:$0]  %s1, 4096, %s36, [#allocation5], 512, 512, 32
    $region9: #{generator_forward.1} parent=1 // pred_fallthru
      _
    // Predicated region
    $region10: #{generator_forward.1} parent=1 // pred_check
      _
    $region11: #{generator_forward.1} parent=1 // pred_check_branch
      %43 = sbr.rel (0) target = $region13
    $region12: #{generator_forward.1} parent=1 // pred_region
      _
    $region13: #{generator_forward.1} parent=1 // pred_fallthru
      _
    // Predicated region
    $region14: #{generator_forward.1} parent=1 // pred_check
      _
    $region15: #{generator_forward.1} parent=1 // pred_check_branch
      %45 = sbr.rel (0) target = $region17
    $region16: #{generator_forward.1} parent=1 // pred_region
      %s47 = ssub.s32 128, 128
      %48 = vsyncadd [#allocation5], %s47
      %s50 = sshll.u32 [#allocation6], 4
      %s51 = int_to_ptr.vmem [resolvable:$true] %s50
      %53 = dma.hbm_to_vmem [thread:$0]  %s3, 128, %s51, [#allocation5]
    $region17: #{generator_forward.1} parent=1 // pred_fallthru
      _
    // Predicated region
    $region18: #{generator_forward.1} parent=1 // pred_check
      _
    $region19: #{generator_forward.1} parent=1 // pred_check_branch
      %55 = sbr.rel (0) target = $region21
    $region20: #{generator_forward.1} parent=1 // pred_region
      %s57 = ssub.s32 16384, 16384
      %58 = vsyncadd [#allocation8], %s57
      %s59 = sshll.u32 [#allocation7], 4
      %s60 = int_to_ptr.vmem [resolvable:$true] %s59
      %65 = dma.hbm_to_vmem [thread:$0]  %s4, 16384, %s60, [#allocation8], 128, 128, 8
    $region21: #{generator_forward.1} parent=1 // pred_fallthru
      _
    // Predicated region
    $region22: #{generator_forward.1} parent=1 // pred_check
      _
    $region23: #{generator_forward.1} parent=1 // pred_check_branch
      %67 = sbr.rel (0) target = $region25
    $region24: #{generator_forward.1} parent=1 // pred_region
      _
    $region25: #{generator_forward.1} parent=1 // pred_fallthru
      _
    // Predicated region
    $region26: #{generator_forward.1} parent=1 // pred_check
      _
    $region27: #{generator_forward.1} parent=1 // pred_check_branch
      %69 = sbr.rel (0) target = $region29
    $region28: #{generator_forward.1} parent=1 // pred_region
      %s71 = ssub.s32 32, 32
      %72 = vsyncadd [#allocation8], %s71
      %s74 = sshll.u32 [#allocation9], 4
      %s75 = int_to_ptr.vmem [resolvable:$true] %s74
      %77 = dma.hbm_to_vmem [thread:$0]  %s6, 32, %s75, [#allocation8]
    $region29: #{generator_forward.1} parent=1 // pred_fallthru
      _
    // Predicated region
    $region30: #{generator_forward.1} parent=1 // pred_check
      _
    $region31: #{generator_forward.1} parent=1 // pred_check_branch
      %79 = sbr.rel (0) target = $region33
    $region32: #{generator_forward.1} parent=1 // pred_region
      %s81 = ssub.s32 6144, 6144
      %82 = vsyncadd [#allocation11], %s81
      %s83 = sshll.u32 [#allocation10], 4
      %s84 = int_to_ptr.vmem [resolvable:$true] %s83
      %89 = dma.hbm_to_vmem [thread:$0]  %s7, 6144, %s84, [#allocation11], 128, 128, 8
    $region33: #{generator_forward.1} parent=1 // pred_fallthru
      _
    // Predicated region
    $region34: #{generator_forward.1} parent=1 // pred_check
      _
    $region35: #{generator_forward.1} parent=1 // pred_check_branch
      %91 = sbr.rel (0) target = $region37
    $region36: #{generator_forward.1} parent=1 // pred_region
      _
    $region37: #{generator_forward.1} parent=1 // pred_fallthru
      _
    // Predicated region
    $region38: #{generator_forward.1} parent=1 // pred_check
      _
    $region39: #{generator_forward.1} parent=1 // pred_check_branch
      %93 = sbr.rel (0) target = $region41
    $region40: #{generator_forward.1} parent=1 // pred_region
      _
    $region41: #{generator_forward.1} parent=1 // pred_fallthru
      _
    // Predicated region
    $region42: #{generator_forward.1} parent=1 // pred_check
      _
    $region43: #{generator_forward.1} parent=1 // pred_check_branch
      %95 = sbr.rel (0) target = $region45
    $region44: #{generator_forward.1} parent=1 // pred_region
      %s97 = ssub.s32 1024, 1024
      %98 = vsyncadd [#allocation11], %s97
      %s99 = sshll.u32 [#allocation12], 4
      %s100 = int_to_ptr.vmem [resolvable:$true] %s99
      %105 = dma.hbm_to_vmem [thread:$0]  %s10, 1024, %s100, [#allocation11], 64, 64, 4
    $region45: #{generator_forward.1} parent=1 // pred_fallthru
      _
    // Predicated region
    $region46: #{generator_forward.1} parent=1 // pred_check
      _
    $region47: #{generator_forward.1} parent=1 // pred_check_branch
      %107 = sbr.rel (0) target = $region49
    $region48: #{generator_forward.1} parent=1 // pred_region
      %108 = dma.done [#allocation3], 128
    $region49: #{generator_forward.1} parent=1 // pred_fallthru
      _
    // Predicated region
    $region50: #{generator_forward.1} parent=1 // pred_check
      _
    $region51: #{generator_forward.1} parent=1 // pred_check_branch
      %110 = sbr.rel (0) target = $region53
    $region52: #{generator_forward.1} parent=1 // pred_region
      %111 = dma.done [#allocation5], 4096
    $region53: #{generator_forward.1} parent=1 // pred_fallthru
      _
    // Predicated region
    $region54: #{generator_forward.1} parent=1 // pred_check
      _
    $region55: #{generator_forward.1} parent=1 // pred_check_branch
      %113 = sbr.rel (0) target = $region57
    $region56: #{generator_forward.1} parent=1 // pred_region
      %114 = dma.done [#allocation5], 128
    $region57: #{generator_forward.1} parent=1 // pred_fallthru
      _
    // Predicated region
    $region58: #{generator_forward.1} parent=1 // pred_check
      _
    $region59: #{generator_forward.1} parent=1 // pred_check_branch
      %116 = sbr.rel (0) target = $region61
    $region60: #{generator_forward.1} parent=1 // pred_region
      %117 = dma.done [#allocation8], 16384
    $region61: #{generator_forward.1} parent=1 // pred_fallthru
      _
    // Predicated region
    $region62: #{generator_forward.1} parent=1 // pred_check
      _
    $region63: #{generator_forward.1} parent=1 // pred_check_branch
      %119 = sbr.rel (0) target = $region65
    $region64: #{generator_forward.1} parent=1 // pred_region
      %120 = dma.done [#allocation8], 32
    $region65: #{generator_forward.1} parent=1 // pred_fallthru
      _
    // Predicated region
    $region66: #{generator_forward.1} parent=1 // pred_check
      _
    $region67: #{generator_forward.1} parent=1 // pred_check_branch
      %122 = sbr.rel (0) target = $region69
    $region68: #{generator_forward.1} parent=1 // pred_region
      %123 = dma.done [#allocation11], 6144
    $region69: #{generator_forward.1} parent=1 // pred_fallthru
      _
    // Predicated region
    $region70: #{generator_forward.1} parent=1 // pred_check
      _
    $region71: #{generator_forward.1} parent=1 // pred_check_branch
      %125 = sbr.rel (0) target = $region73
    $region72: #{generator_forward.1} parent=1 // pred_region
      %126 = dma.done [#allocation11], 1024
    $region73: #{generator_forward.1} parent=1 // pred_fallthru
      _
    %v128 = vld [vmem:[#allocation2] sm:$0xff]
    %v129 = vpack.c.bf16 %v128, %v128
    %v130 = vld [vmem:[#allocation4] sm:$0xff]
    %v131 = vld [vmem:[#allocation4 + $0x8] sm:$0xff]
    %v132 = vld [vmem:[#allocation4 + $0x10] sm:$0xff]
    %v133 = vld [vmem:[#allocation4 + $0x18] sm:$0xff]
    %v134 = vld [vmem:[#allocation4 + $0x20] sm:$0xff]
    %v135 = vld [vmem:[#allocation4 + $0x28] sm:$0xff]
    %v136 = vld [vmem:[#allocation4 + $0x30] sm:$0xff]
    %v137 = vld [vmem:[#allocation4 + $0x38] sm:$0xff]
    %v138 = vld [vmem:[#allocation4 + $0x40] sm:$0xff]
    %v139 = vld [vmem:[#allocation4 + $0x48] sm:$0xff]
    %v140 = vld [vmem:[#allocation4 + $0x50] sm:$0xff]
    %v141 = vld [vmem:[#allocation4 + $0x58] sm:$0xff]
    %v142 = vld [vmem:[#allocation4 + $0x60] sm:$0xff]
    %v143 = vld [vmem:[#allocation4 + $0x68] sm:$0xff]
    %v144 = vld [vmem:[#allocation4 + $0x70] sm:$0xff]
    %v145 = vld [vmem:[#allocation4 + $0x78] sm:$0xff]
    %v146 = vld [vmem:[#allocation4 + $0x80] sm:$0xff]
    %v147 = vld [vmem:[#allocation4 + $0x88] sm:$0xff]
    %v148 = vld [vmem:[#allocation4 + $0x90] sm:$0xff]
    %v149 = vld [vmem:[#allocation4 + $0x98] sm:$0xff]
    %v150 = vld [vmem:[#allocation4 + $0xa0] sm:$0xff]
    %v151 = vld [vmem:[#allocation4 + $0xa8] sm:$0xff]
    %v152 = vld [vmem:[#allocation4 + $0xb0] sm:$0xff]
    %v153 = vld [vmem:[#allocation4 + $0xb8] sm:$0xff]
    %v154 = vld [vmem:[#allocation4 + $0xc0] sm:$0xff]
    %v155 = vld [vmem:[#allocation4 + $0xc8] sm:$0xff]
    %v156 = vld [vmem:[#allocation4 + $0xd0] sm:$0xff]
    %v157 = vld [vmem:[#allocation4 + $0xd8] sm:$0xff]
    %v158 = vld [vmem:[#allocation4 + $0xe0] sm:$0xff]
    %v159 = vld [vmem:[#allocation4 + $0xe8] sm:$0xff]
    %v160 = vld [vmem:[#allocation4 + $0xf0] sm:$0xff]
    %v161 = vld [vmem:[#allocation4 + $0xf8] sm:$0xff]
    %v194 = vunpack.c.l.b16 %v130
    %v195 = vunpack.c.h.b16 %v130
    %v196 = vunpack.c.l.b16 %v131
    %v197 = vunpack.c.h.b16 %v131
    %v198 = vunpack.c.l.b16 %v132
    %v199 = vunpack.c.h.b16 %v132
    %v200 = vunpack.c.l.b16 %v133
    %v201 = vunpack.c.h.b16 %v133
    %v202 = vunpack.c.l.b16 %v134
    %v203 = vunpack.c.h.b16 %v134
    %v204 = vunpack.c.l.b16 %v135
    %v205 = vunpack.c.h.b16 %v135
    %v206 = vunpack.c.l.b16 %v136
    %v207 = vunpack.c.h.b16 %v136
    %v208 = vunpack.c.l.b16 %v137
    %v209 = vunpack.c.h.b16 %v137
    %v210 = vunpack.c.l.b16 %v138
    %v211 = vunpack.c.h.b16 %v138
    %v212 = vunpack.c.l.b16 %v139
    %v213 = vunpack.c.h.b16 %v139
    %v214 = vunpack.c.l.b16 %v140
    %v215 = vunpack.c.h.b16 %v140
    %v216 = vunpack.c.l.b16 %v141
    %v217 = vunpack.c.h.b16 %v141
    %v218 = vunpack.c.l.b16 %v142
    %v219 = vunpack.c.h.b16 %v142
    %v220 = vunpack.c.l.b16 %v143
    %v221 = vunpack.c.h.b16 %v143
    %v222 = vunpack.c.l.b16 %v144
    %v223 = vunpack.c.h.b16 %v144
    %v224 = vunpack.c.l.b16 %v145
    %v225 = vunpack.c.h.b16 %v145
    %v226 = vunpack.c.l.b16 %v146
    %v227 = vunpack.c.h.b16 %v146
    %v228 = vunpack.c.l.b16 %v147
    %v229 = vunpack.c.h.b16 %v147
    %v230 = vunpack.c.l.b16 %v148
    %v231 = vunpack.c.h.b16 %v148
    %v232 = vunpack.c.l.b16 %v149
    %v233 = vunpack.c.h.b16 %v149
    %v234 = vunpack.c.l.b16 %v150
    %v235 = vunpack.c.h.b16 %v150
    %v236 = vunpack.c.l.b16 %v151
    %v237 = vunpack.c.h.b16 %v151
    %v238 = vunpack.c.l.b16 %v152
    %v239 = vunpack.c.h.b16 %v152
    %v240 = vunpack.c.l.b16 %v153
    %v241 = vunpack.c.h.b16 %v153
    %v242 = vunpack.c.l.b16 %v154
    %v243 = vunpack.c.h.b16 %v154
    %v244 = vunpack.c.l.b16 %v155
    %v245 = vunpack.c.h.b16 %v155
    %v246 = vunpack.c.l.b16 %v156
    %v247 = vunpack.c.h.b16 %v156
    %v248 = vunpack.c.l.b16 %v157
    %v249 = vunpack.c.h.b16 %v157
    %v250 = vunpack.c.l.b16 %v158
    %v251 = vunpack.c.h.b16 %v158
    %v252 = vunpack.c.l.b16 %v159
    %v253 = vunpack.c.h.b16 %v159
    %v254 = vunpack.c.l.b16 %v160
    %v255 = vunpack.c.h.b16 %v160
    %v256 = vunpack.c.l.b16 %v161
    %v257 = vunpack.c.h.b16 %v161
    %v258 = vpack.c.b16 %v202, %v194
    %v259 = vpack.c.b16 %v203, %v195
    %v260 = vpack.c.b16 %v204, %v196
    %v261 = vpack.c.b16 %v205, %v197
    %v262 = vpack.c.b16 %v206, %v198
    %v263 = vpack.c.b16 %v207, %v199
    %v264 = vpack.c.b16 %v208, %v200
    %v265 = vpack.c.b16 %v209, %v201
    %v266 = vpack.c.b16 %v218, %v210
    %v267 = vpack.c.b16 %v219, %v211
    %v268 = vpack.c.b16 %v220, %v212
    %v269 = vpack.c.b16 %v221, %v213
    %v270 = vpack.c.b16 %v222, %v214
    %v271 = vpack.c.b16 %v223, %v215
    %v272 = vpack.c.b16 %v224, %v216
    %v273 = vpack.c.b16 %v225, %v217
    %v274 = vpack.c.b16 %v234, %v226
    %v275 = vpack.c.b16 %v235, %v227
    %v276 = vpack.c.b16 %v236, %v228
    %v277 = vpack.c.b16 %v237, %v229
    %v278 = vpack.c.b16 %v238, %v230
    %v279 = vpack.c.b16 %v239, %v231
    %v280 = vpack.c.b16 %v240, %v232
    %v281 = vpack.c.b16 %v241, %v233
    %v282 = vpack.c.b16 %v250, %v242
    %v283 = vpack.c.b16 %v251, %v243
    %v284 = vpack.c.b16 %v252, %v244
    %v285 = vpack.c.b16 %v253, %v245
    %v286 = vpack.c.b16 %v254, %v246
    %v287 = vpack.c.b16 %v255, %v247
    %v288 = vpack.c.b16 %v256, %v248
    %v289 = vpack.c.b16 %v257, %v249
    %vm322 = vcmask 523264
    %v324 = vsel %vm322, %v129, 0
    %326 = vmatprep.subr.bf16.mxu0 %v259
    %327 = vmatpush1.bf16.msra.mxu0 %v258
    %328 = vmatprep.subr.bf16.mxu0 %v267
    %329 = vmatpush1.bf16.msra.mxu0 %v266
    %330 = vmatprep.subr.bf16.mxu0 %v275
    %331 = vmatpush1.bf16.msra.mxu0 %v274
    %332 = vmatprep.subr.bf16.mxu0 %v283
    %333 = vmatpush1.bf16.msra.mxu0 %v282
    %334 = vmatprep.subr.bf16.mxu0 0
    %335 = vmatpush1.bf16.msra.mxu0 0
    %336 = vmatprep.subr.bf16.mxu0 0
    %337 = vmatpush1.bf16.msra.mxu0 0
    %338 = vmatprep.subr.bf16.mxu0 0
    %339 = vmatpush1.bf16.msra.mxu0 0
    %340 = vmatprep.subr.bf16.mxu0 0
    %341 = vmatpush1.bf16.msra.mxu0 0
    %342 = vmatprep.subr.bf16.mxu0 0
    %343 = vmatpush1.bf16.msra.mxu0 0
    %344 = vmatprep.subr.bf16.mxu0 0
    %345 = vmatpush1.bf16.msra.mxu0 0
    %346 = vmatprep.subr.bf16.mxu0 0
    %347 = vmatpush1.bf16.msra.mxu0 0
    %348 = vmatprep.subr.bf16.mxu0 0
    %349 = vmatpush1.bf16.msra.mxu0 0
    %350 = vmatprep.subr.bf16.mxu0 0
    %351 = vmatpush1.bf16.msra.mxu0 0
    %352 = vmatprep.subr.bf16.mxu0 0
    %353 = vmatpush1.bf16.msra.mxu0 0
    %354 = vmatprep.subr.bf16.mxu0 0
    %355 = vmatpush1.bf16.msra.mxu0 0
    %356 = vmatprep.subr.bf16.mxu0 0
    %357 = vmatpush1.bf16.msra.mxu0 0
    %358 = vmatprep.mubr.bf16.mxu0 0
    %359 = vmatmul.mubr.bf16.gmra.mrb[0].mxu0 %v324
    %v360 = vpop.f32.mrb[0].mxu0
    %v361 = vadd.f32 0.0, %v360
    %v362 = vpop.f32.mrb[0].mxu0
    %v363 = vadd.f32 0.0, %v362
    %v364 = vpop.f32.mrb[0].mxu0
    %v365 = vpop.f32.mrb[0].mxu0
    %366 = vdwg.mxu0
    %367 = vmatprep.subr.bf16.mxu0 %v261
    %368 = vmatpush1.bf16.msra.mxu0 %v260
    %369 = vmatprep.subr.bf16.mxu0 %v269
    %370 = vmatpush1.bf16.msra.mxu0 %v268
    %371 = vmatprep.subr.bf16.mxu0 %v277
    %372 = vmatpush1.bf16.msra.mxu0 %v276
    %373 = vmatprep.subr.bf16.mxu0 %v285
    %374 = vmatpush1.bf16.msra.mxu0 %v284
    %375 = vmatprep.subr.bf16.mxu0 0
    %376 = vmatpush1.bf16.msra.mxu0 0
    %377 = vmatprep.subr.bf16.mxu0 0
    %378 = vmatpush1.bf16.msra.mxu0 0
    %379 = vmatprep.subr.bf16.mxu0 0
    %380 = vmatpush1.bf16.msra.mxu0 0
    %381 = vmatprep.subr.bf16.mxu0 0
    %382 = vmatpush1.bf16.msra.mxu0 0
    %383 = vmatprep.subr.bf16.mxu0 0
    %384 = vmatpush1.bf16.msra.mxu0 0
    %385 = vmatprep.subr.bf16.mxu0 0
    %386 = vmatpush1.bf16.msra.mxu0 0
    %387 = vmatprep.subr.bf16.mxu0 0
    %388 = vmatpush1.bf16.msra.mxu0 0
    %389 = vmatprep.subr.bf16.mxu0 0
    %390 = vmatpush1.bf16.msra.mxu0 0
    %391 = vmatprep.subr.bf16.mxu0 0
    %392 = vmatpush1.bf16.msra.mxu0 0
    %393 = vmatprep.subr.bf16.mxu0 0
    %394 = vmatpush1.bf16.msra.mxu0 0
    %395 = vmatprep.subr.bf16.mxu0 0
    %396 = vmatpush1.bf16.msra.mxu0 0
    %397 = vmatprep.subr.bf16.mxu0 0
    %398 = vmatpush1.bf16.msra.mxu0 0
    %399 = vmatprep.mubr.bf16.mxu0 0
    %400 = vmatmul.mubr.bf16.gmra.mrb[0].mxu0 %v324
    %v401 = vpop.f32.mrb[0].mxu0
    %v402 = vadd.f32 0.0, %v401
    %v403 = vpop.f32.mrb[0].mxu0
    %v404 = vadd.f32 0.0, %v403
    %v405 = vpop.f32.mrb[0].mxu0
    %v406 = vpop.f32.mrb[0].mxu0
    %407 = vdwg.mxu0
    %408 = vmatprep.subr.bf16.mxu0 %v263
    %409 = vmatpush1.bf16.msra.mxu0 %v262
    %410 = vmatprep.subr.bf16.mxu0 %v271
    %411 = vmatpush1.bf16.msra.mxu0 %v270
    %412 = vmatprep.subr.bf16.mxu0 %v279
    %413 = vmatpush1.bf16.msra.mxu0 %v278
    %414 = vmatprep.subr.bf16.mxu0 %v287
    %415 = vmatpush1.bf16.msra.mxu0 %v286
    %416 = vmatprep.subr.bf16.mxu0 0
    %417 = vmatpush1.bf16.msra.mxu0 0
    %418 = vmatprep.subr.bf16.mxu0 0
    %419 = vmatpush1.bf16.msra.mxu0 0
    %420 = vmatprep.subr.bf16.mxu0 0
    %421 = vmatpush1.bf16.msra.mxu0 0
    %422 = vmatprep.subr.bf16.mxu0 0
    %423 = vmatpush1.bf16.msra.mxu0 0
    %424 = vmatprep.subr.bf16.mxu0 0
    %425 = vmatpush1.bf16.msra.mxu0 0
    %426 = vmatprep.subr.bf16.mxu0 0
    %427 = vmatpush1.bf16.msra.mxu0 0
    %428 = vmatprep.subr.bf16.mxu0 0
    %429 = vmatpush1.bf16.msra.mxu0 0
    %430 = vmatprep.subr.bf16.mxu0 0
    %431 = vmatpush1.bf16.msra.mxu0 0
    %432 = vmatprep.subr.bf16.mxu0 0
    %433 = vmatpush1.bf16.msra.mxu0 0
    %434 = vmatprep.subr.bf16.mxu0 0
    %435 = vmatpush1.bf16.msra.mxu0 0
    %436 = vmatprep.subr.bf16.mxu0 0
    %437 = vmatpush1.bf16.msra.mxu0 0
    %438 = vmatprep.subr.bf16.mxu0 0
    %439 = vmatpush1.bf16.msra.mxu0 0
    %440 = vmatprep.mubr.bf16.mxu0 0
    %441 = vmatmul.mubr.bf16.gmra.mrb[0].mxu0 %v324
    %v442 = vpop.f32.mrb[0].mxu0
    %v443 = vadd.f32 0.0, %v442
    %v444 = vpop.f32.mrb[0].mxu0
    %v445 = vadd.f32 0.0, %v444
    %v446 = vpop.f32.mrb[0].mxu0
    %v447 = vpop.f32.mrb[0].mxu0
    %448 = vdwg.mxu0
    %449 = vmatprep.subr.bf16.mxu0 %v265
    %450 = vmatpush1.bf16.msra.mxu0 %v264
    %451 = vmatprep.subr.bf16.mxu0 %v273
    %452 = vmatpush1.bf16.msra.mxu0 %v272
    %453 = vmatprep.subr.bf16.mxu0 %v281
    %454 = vmatpush1.bf16.msra.mxu0 %v280
    %455 = vmatprep.subr.bf16.mxu0 %v289
    %456 = vmatpush1.bf16.msra.mxu0 %v288
    %457 = vmatprep.subr.bf16.mxu0 0
    %458 = vmatpush1.bf16.msra.mxu0 0
    %459 = vmatprep.subr.bf16.mxu0 0
    %460 = vmatpush1.bf16.msra.mxu0 0
    %461 = vmatprep.subr.bf16.mxu0 0
    %462 = vmatpush1.bf16.msra.mxu0 0
    %463 = vmatprep.subr.bf16.mxu0 0
    %464 = vmatpush1.bf16.msra.mxu0 0
    %465 = vmatprep.subr.bf16.mxu0 0
    %466 = vmatpush1.bf16.msra.mxu0 0
    %467 = vmatprep.subr.bf16.mxu0 0
    %468 = vmatpush1.bf16.msra.mxu0 0
    %469 = vmatprep.subr.bf16.mxu0 0
    %470 = vmatpush1.bf16.msra.mxu0 0
    %471 = vmatprep.subr.bf16.mxu0 0
    %472 = vmatpush1.bf16.msra.mxu0 0
    %473 = vmatprep.subr.bf16.mxu0 0
    %474 = vmatpush1.bf16.msra.mxu0 0
    %475 = vmatprep.subr.bf16.mxu0 0
    %476 = vmatpush1.bf16.msra.mxu0 0
    %477 = vmatprep.subr.bf16.mxu0 0
    %478 = vmatpush1.bf16.msra.mxu0 0
    %479 = vmatprep.subr.bf16.mxu0 0
    %480 = vmatpush1.bf16.msra.mxu0 0
    %481 = vmatprep.mubr.bf16.mxu0 0
    %482 = vmatmul.mubr.bf16.gmra.mrb[0].mxu0 %v324
    %v483 = vpop.f32.mrb[0].mxu0
    %v484 = vadd.f32 0.0, %v483
    %v485 = vpop.f32.mrb[0].mxu0
    %v486 = vadd.f32 0.0, %v485
    %v487 = vpop.f32.mrb[0].mxu0
    %v488 = vpop.f32.mrb[0].mxu0
    %489 = vdwg.mxu0
    %v490 = vld [vmem:[%s2] sm:$0xff]
    %v491 = vld [vmem:[#allocation6] sm:$0xff]
    %v492 = vrot.slane %v361, 4
    %v493 = vadd.f32 %v361, %v492
    %v494 = vrot.slane %v493, 2
    %v495 = vadd.f32 %v493, %v494
    %v496 = vrot.slane %v495, 1
    %v497 = vadd.f32 %v495, %v496
    %v498 = vrot.slane %v363, 4
    %v499 = vadd.f32 %v363, %v498
    %v500 = vrot.slane %v499, 2
    %v501 = vadd.f32 %v499, %v500
    %v502 = vrot.slane %v501, 1
    %v503 = vadd.f32 %v501, %v502
    %v504 = vrot.slane %v402, 4
    %v505 = vadd.f32 %v402, %v504
    %v506 = vrot.slane %v505, 2
    %v507 = vadd.f32 %v505, %v506
    %v508 = vrot.slane %v507, 1
    %v509 = vadd.f32 %v507, %v508
    %v510 = vrot.slane %v404, 4
    %v511 = vadd.f32 %v404, %v510
    %v512 = vrot.slane %v511, 2
    %v513 = vadd.f32 %v511, %v512
    %v514 = vrot.slane %v513, 1
    %v515 = vadd.f32 %v513, %v514
    %v516 = vrot.slane %v443, 4
    %v517 = vadd.f32 %v443, %v516
    %v518 = vrot.slane %v517, 2
    %v519 = vadd.f32 %v517, %v518
    %v520 = vrot.slane %v519, 1
    %v521 = vadd.f32 %v519, %v520
    %v522 = vrot.slane %v445, 4
    %v523 = vadd.f32 %v445, %v522
    %v524 = vrot.slane %v523, 2
    %v525 = vadd.f32 %v523, %v524
    %v526 = vrot.slane %v525, 1
    %v527 = vadd.f32 %v525, %v526
    %v528 = vrot.slane %v484, 4
    %v529 = vadd.f32 %v484, %v528
    %v530 = vrot.slane %v529, 2
    %v531 = vadd.f32 %v529, %v530
    %v532 = vrot.slane %v531, 1
    %v533 = vadd.f32 %v531, %v532
    %v534 = vrot.slane %v486, 4
    %v535 = vadd.f32 %v486, %v534
    %v536 = vrot.slane %v535, 2
    %v537 = vadd.f32 %v535, %v536
    %v538 = vrot.slane %v537, 1
    %v539 = vadd.f32 %v537, %v538
    %v540 = vmul.f32 %v497, 0.125
    %v541 = vmul.f32 %v503, 0.125
    %v542 = vmul.f32 %v509, 0.125
    %v543 = vmul.f32 %v515, 0.125
    %v544 = vmul.f32 %v521, 0.125
    %v545 = vmul.f32 %v527, 0.125
    %v546 = vmul.f32 %v533, 0.125
    %v547 = vmul.f32 %v539, 0.125
    %v548 = vmul.f32 %v361, %v361
    %v549 = vmul.f32 %v363, %v363
    %v550 = vmul.f32 %v402, %v402
    %v551 = vmul.f32 %v404, %v404
    %v552 = vmul.f32 %v443, %v443
    %v553 = vmul.f32 %v445, %v445
    %v554 = vmul.f32 %v484, %v484
    %v555 = vmul.f32 %v486, %v486
    %v556 = vrot.slane %v548, 4
    %v557 = vadd.f32 %v548, %v556
    %v558 = vrot.slane %v557, 2
    %v559 = vadd.f32 %v557, %v558
    %v560 = vrot.slane %v559, 1
    %v561 = vadd.f32 %v559, %v560
    %v562 = vrot.slane %v549, 4
    %v563 = vadd.f32 %v549, %v562
    %v564 = vrot.slane %v563, 2
    %v565 = vadd.f32 %v563, %v564
    %v566 = vrot.slane %v565, 1
    %v567 = vadd.f32 %v565, %v566
    %v568 = vrot.slane %v550, 4
    %v569 = vadd.f32 %v550, %v568
    %v570 = vrot.slane %v569, 2
    %v571 = vadd.f32 %v569, %v570
    %v572 = vrot.slane %v571, 1
    %v573 = vadd.f32 %v571, %v572
    %v574 = vrot.slane %v551, 4
    %v575 = vadd.f32 %v551, %v574
    %v576 = vrot.slane %v575, 2
    %v577 = vadd.f32 %v575, %v576
    %v578 = vrot.slane %v577, 1
    %v579 = vadd.f32 %v577, %v578
    %v580 = vrot.slane %v552, 4
    %v581 = vadd.f32 %v552, %v580
    %v582 = vrot.slane %v581, 2
    %v583 = vadd.f32 %v581, %v582
    %v584 = vrot.slane %v583, 1
    %v585 = vadd.f32 %v583, %v584
    %v586 = vrot.slane %v553, 4
    %v587 = vadd.f32 %v553, %v586
    %v588 = vrot.slane %v587, 2
    %v589 = vadd.f32 %v587, %v588
    %v590 = vrot.slane %v589, 1
    %v591 = vadd.f32 %v589, %v590
    %v592 = vrot.slane %v554, 4
    %v593 = vadd.f32 %v554, %v592
    %v594 = vrot.slane %v593, 2
    %v595 = vadd.f32 %v593, %v594
    %v596 = vrot.slane %v595, 1
    %v597 = vadd.f32 %v595, %v596
    %v598 = vrot.slane %v555, 4
    %v599 = vadd.f32 %v555, %v598
    %v600 = vrot.slane %v599, 2
    %v601 = vadd.f32 %v599, %v600
    %v602 = vrot.slane %v601, 1
    %v603 = vadd.f32 %v601, %v602
    %v604 = vmul.f32 %v561, 0.125
    %v605 = vmul.f32 %v567, 0.125
    %v606 = vmul.f32 %v573, 0.125
    %v607 = vmul.f32 %v579, 0.125
    %v608 = vmul.f32 %v585, 0.125
    %v609 = vmul.f32 %v591, 0.125
    %v610 = vmul.f32 %v597, 0.125
    %v611 = vmul.f32 %v603, 0.125
    %v612 = vmul.f32 %v540, %v540
    %v613 = vmul.f32 %v541, %v541
    %v614 = vmul.f32 %v542, %v542
    %v615 = vmul.f32 %v543, %v543
    %v616 = vmul.f32 %v544, %v544
    %v617 = vmul.f32 %v545, %v545
    %v618 = vmul.f32 %v546, %v546
    %v619 = vmul.f32 %v547, %v547
    %v620 = vsub.f32 %v604, %v612
    %v621 = vsub.f32 %v605, %v613
    %v622 = vsub.f32 %v606, %v614
    %v623 = vsub.f32 %v607, %v615
    %v624 = vsub.f32 %v608, %v616
    %v625 = vsub.f32 %v609, %v617
    %v626 = vsub.f32 %v610, %v618
    %v627 = vsub.f32 %v611, %v619
    %v628 = vmax.f32 %v620, 0.0
    %v629 = vmax.f32 %v621, 0.0
    %v630 = vmax.f32 %v622, 0.0
    %v631 = vmax.f32 %v623, 0.0
    %v632 = vmax.f32 %v624, 0.0
    %v633 = vmax.f32 %v625, 0.0
    %v634 = vmax.f32 %v626, 0.0
    %v635 = vmax.f32 %v627, 0.0
    %v636 = vadd.f32 %v628, 1e-05
    %v637 = vadd.f32 %v629, 1e-05
    %v638 = vadd.f32 %v630, 1e-05
    %v639 = vadd.f32 %v631, 1e-05
    %v640 = vadd.f32 %v632, 1e-05
    %v641 = vadd.f32 %v633, 1e-05
    %v642 = vadd.f32 %v634, 1e-05
    %v643 = vadd.f32 %v635, 1e-05
    %v644 = vrsqrt.pop %v636
    %v645 = vrsqrt.pop %v637
    %v646 = vrsqrt.pop %v638
    %v647 = vrsqrt.pop %v639
    %v648 = vrsqrt.pop %v640
    %v649 = vrsqrt.pop %v641
    %v650 = vrsqrt.pop %v642
    %v651 = vrsqrt.pop %v643
    %v653 = vlaneseq
    %v654 = vshrl.u32 %v653, 7
    %v655 = vsub.s32 0, %v654
    %v656 = vrot.slane %v490, %v655
    %v657 = vlaneseq
    %v658 = vshrl.u32 %v657, 7
    %v659 = vsub.s32 1, %v658
    %v660 = vrot.slane %v490, %v659
    %v661 = vlaneseq
    %v662 = vshrl.u32 %v661, 7
    %v663 = vsub.s32 2, %v662
    %v664 = vrot.slane %v490, %v663
    %v665 = vlaneseq
    %v666 = vshrl.u32 %v665, 7
    %v667 = vsub.s32 3, %v666
    %v668 = vrot.slane %v490, %v667
    %v669 = vlaneseq
    %v670 = vshrl.u32 %v669, 7
    %v671 = vsub.s32 4, %v670
    %v672 = vrot.slane %v490, %v671
    %v673 = vlaneseq
    %v674 = vshrl.u32 %v673, 7
    %v675 = vsub.s32 5, %v674
    %v676 = vrot.slane %v490, %v675
    %v677 = vlaneseq
    %v678 = vshrl.u32 %v677, 7
    %v679 = vsub.s32 6, %v678
    %v680 = vrot.slane %v490, %v679
    %v681 = vlaneseq
    %v682 = vshrl.u32 %v681, 7
    %v683 = vsub.s32 7, %v682
    %v684 = vrot.slane %v490, %v683
    %v693 = vmul.f32 %v644, %v656
    %v694 = vmul.f32 %v645, %v660
    %v695 = vmul.f32 %v646, %v664
    %v696 = vmul.f32 %v647, %v668
    %v697 = vmul.f32 %v648, %v672
    %v698 = vmul.f32 %v649, %v676
    %v699 = vmul.f32 %v650, %v680
    %v700 = vmul.f32 %v651, %v684
    %v701 = vlaneseq
    %v702 = vshrl.u32 %v701, 7
    %v703 = vsub.s32 0, %v702
    %v704 = vrot.slane %v693, %v703
    %v705 = vlaneseq
    %v706 = vshrl.u32 %v705, 7
    %v707 = vsub.s32 0, %v706
    %v708 = vrot.slane %v694, %v707
    %v709 = vlaneseq
    %v710 = vshrl.u32 %v709, 7
    %v711 = vsub.s32 0, %v710
    %v712 = vrot.slane %v695, %v711
    %v713 = vlaneseq
    %v714 = vshrl.u32 %v713, 7
    %v715 = vsub.s32 0, %v714
    %v716 = vrot.slane %v696, %v715
    %v717 = vlaneseq
    %v718 = vshrl.u32 %v717, 7
    %v719 = vsub.s32 0, %v718
    %v720 = vrot.slane %v697, %v719
    %v721 = vlaneseq
    %v722 = vshrl.u32 %v721, 7
    %v723 = vsub.s32 0, %v722
    %v724 = vrot.slane %v698, %v723
    %v725 = vlaneseq
    %v726 = vshrl.u32 %v725, 7
    %v727 = vsub.s32 0, %v726
    %v728 = vrot.slane %v699, %v727
    %v729 = vlaneseq
    %v730 = vshrl.u32 %v729, 7
    %v731 = vsub.s32 0, %v730
    %v732 = vrot.slane %v700, %v731
    %v733 = vmul.f32 %v361, %v704
    %v734 = vmul.f32 %v363, %v708
    %v735 = vmul.f32 %v402, %v712
    %v736 = vmul.f32 %v404, %v716
    %v737 = vmul.f32 %v443, %v720
    %v738 = vmul.f32 %v445, %v724
    %v739 = vmul.f32 %v484, %v728
    %v740 = vmul.f32 %v486, %v732
    %v741 = vmul.f32 %v540, %v693
    %v742 = vmul.f32 %v541, %v694
    %v743 = vmul.f32 %v542, %v695
    %v744 = vmul.f32 %v543, %v696
    %v745 = vmul.f32 %v544, %v697
    %v746 = vmul.f32 %v545, %v698
    %v747 = vmul.f32 %v546, %v699
    %v748 = vmul.f32 %v547, %v700
    %v757 = vcombine.low %v741, %v742
    %v758 = vcombine.low %v743, %v744
    %v759 = vcombine.low %v745, %v746
    %v760 = vcombine.low %v747, %v748
    %v762 = vunpack.c.l.s4 1966171168
    %v763 = vunpack.c.0.s8 %v762
    %v764 = vlaneseq
    %v765 = vshrl.u32 %v764, 7
    %v766 = vsub.s32 %v763, %v765
    %v767 = vrot.slane %v757, %v766
    %v769 = vunpack.c.l.s4 1966171168
    %v770 = vunpack.c.0.s8 %v769
    %v771 = vlaneseq
    %v772 = vshrl.u32 %v771, 7
    %v773 = vsub.s32 %v770, %v772
    %v774 = vrot.slane %v758, %v773
    %v776 = vunpack.c.l.s4 1966171168
    %v777 = vunpack.c.0.s8 %v776
    %v778 = vlaneseq
    %v779 = vshrl.u32 %v778, 7
    %v780 = vsub.s32 %v777, %v779
    %v781 = vrot.slane %v759, %v780
    %v783 = vunpack.c.l.s4 1966171168
    %v784 = vunpack.c.0.s8 %v783
    %v785 = vlaneseq
    %v786 = vshrl.u32 %v785, 7
    %v787 = vsub.s32 %v784, %v786
    %v788 = vrot.slane %v760, %v787
    %v789 = vcombine.low %v767, %v774
    %v790 = vcombine.low %v781, %v788
    %v792 = vunpack.c.l.s4 1966171168
    %v793 = vunpack.c.0.s8 %v792
    %v794 = vlaneseq
    %v795 = vshrl.u32 %v794, 7
    %v796 = vsub.s32 %v793, %v795
    %v797 = vrot.slane %v789, %v796
    %v799 = vunpack.c.l.s4 1966171168
    %v800 = vunpack.c.0.s8 %v799
    %v801 = vlaneseq
    %v802 = vshrl.u32 %v801, 7
    %v803 = vsub.s32 %v800, %v802
    %v804 = vrot.slane %v790, %v803
    %v805 = vcombine.low %v797, %v804
    %v807 = vsub.f32 %v491, %v805
    %v809 = vlaneseq
    %v810 = vshrl.u32 %v809, 7
    %v811 = vsub.s32 0, %v810
    %v812 = vrot.slane %v807, %v811
    %v813 = vlaneseq
    %v814 = vshrl.u32 %v813, 7
    %v815 = vsub.s32 1, %v814
    %v816 = vrot.slane %v807, %v815
    %v817 = vlaneseq
    %v818 = vshrl.u32 %v817, 7
    %v819 = vsub.s32 2, %v818
    %v820 = vrot.slane %v807, %v819
    %v821 = vlaneseq
    %v822 = vshrl.u32 %v821, 7
    %v823 = vsub.s32 3, %v822
    %v824 = vrot.slane %v807, %v823
    %v825 = vlaneseq
    %v826 = vshrl.u32 %v825, 7
    %v827 = vsub.s32 4, %v826
    %v828 = vrot.slane %v807, %v827
    %v829 = vlaneseq
    %v830 = vshrl.u32 %v829, 7
    %v831 = vsub.s32 5, %v830
    %v832 = vrot.slane %v807, %v831
    %v833 = vlaneseq
    %v834 = vshrl.u32 %v833, 7
    %v835 = vsub.s32 6, %v834
    %v836 = vrot.slane %v807, %v835
    %v837 = vlaneseq
    %v838 = vshrl.u32 %v837, 7
    %v839 = vsub.s32 7, %v838
    %v840 = vrot.slane %v807, %v839
    %v849 = vadd.f32 %v733, %v812
    %v850 = vadd.f32 %v734, %v816
    %v851 = vadd.f32 %v735, %v820
    %v852 = vadd.f32 %v736, %v824
    %v853 = vadd.f32 %v737, %v828
    %v854 = vadd.f32 %v738, %v832
    %v855 = vadd.f32 %v739, %v836
    %v856 = vadd.f32 %v740, %v840
    %vm857 = vcmp.ge.f32.partialorder %v849, 0.0
    %vm858 = vcmp.ge.f32.partialorder %v850, 0.0
    %vm859 = vcmp.ge.f32.partialorder %v851, 0.0
    %vm860 = vcmp.ge.f32.partialorder %v852, 0.0
    %vm861 = vcmp.ge.f32.partialorder %v853, 0.0
    %vm862 = vcmp.ge.f32.partialorder %v854, 0.0
    %vm863 = vcmp.ge.f32.partialorder %v855, 0.0
    %vm864 = vcmp.ge.f32.partialorder %v856, 0.0
    %v865 = vmul.f32 %v849, 0.01
    %v866 = vmul.f32 %v850, 0.01
    %v867 = vmul.f32 %v851, 0.01
    %v868 = vmul.f32 %v852, 0.01
    %v869 = vmul.f32 %v853, 0.01
    %v870 = vmul.f32 %v854, 0.01
    %v871 = vmul.f32 %v855, 0.01
    %v872 = vmul.f32 %v856, 0.01
    %v873 = vsel %vm857, %v849, %v865
    %v874 = vsel %vm858, %v850, %v866
    %v875 = vsel %vm859, %v851, %v867
    %v876 = vsel %vm860, %v852, %v868
    %v877 = vsel %vm861, %v853, %v869
    %v878 = vsel %vm862, %v854, %v870
    %v879 = vsel %vm863, %v855, %v871
    %v880 = vsel %vm864, %v856, %v872
    %v881 = vpack.c.bf16 %v873, %v873
    %v882 = vpack.c.bf16 %v874, %v874
    %v883 = vpack.c.bf16 %v875, %v875
    %v884 = vpack.c.bf16 %v876, %v876
    %v885 = vpack.c.bf16 %v877, %v877
    %v886 = vpack.c.bf16 %v878, %v878
    %v887 = vpack.c.bf16 %v879, %v879
    %v888 = vpack.c.bf16 %v880, %v880
    %v889 = vld [vmem:[#allocation7] sm:$0xff]
    %v890 = vld [vmem:[#allocation7 + $0x8] sm:$0xff]
    %v891 = vld [vmem:[#allocation7 + $0x10] sm:$0xff]
    %v892 = vld [vmem:[#allocation7 + $0x18] sm:$0xff]
    %v893 = vld [vmem:[#allocation7 + $0x20] sm:$0xff]
    %v894 = vld [vmem:[#allocation7 + $0x28] sm:$0xff]
    %v895 = vld [vmem:[#allocation7 + $0x30] sm:$0xff]
    %v896 = vld [vmem:[#allocation7 + $0x38] sm:$0xff]
    %v897 = vld [vmem:[#allocation7 + $0x40] sm:$0xff]
    %v898 = vld [vmem:[#allocation7 + $0x48] sm:$0xff]
    %v899 = vld [vmem:[#allocation7 + $0x50] sm:$0xff]
    %v900 = vld [vmem:[#allocation7 + $0x58] sm:$0xff]
    %v901 = vld [vmem:[#allocation7 + $0x60] sm:$0xff]
    %v902 = vld [vmem:[#allocation7 + $0x68] sm:$0xff]
    %v903 = vld [vmem:[#allocation7 + $0x70] sm:$0xff]
    %v904 = vld [vmem:[#allocation7 + $0x78] sm:$0xff]
    %v905 = vld [vmem:[#allocation7 + $0x80] sm:$0xff]
    %v906 = vld [vmem:[#allocation7 + $0x88] sm:$0xff]
    %v907 = vld [vmem:[#allocation7 + $0x90] sm:$0xff]
    %v908 = vld [vmem:[#allocation7 + $0x98] sm:$0xff]
    %v909 = vld [vmem:[#allocation7 + $0xa0] sm:$0xff]
    %v910 = vld [vmem:[#allocation7 + $0xa8] sm:$0xff]
    %v911 = vld [vmem:[#allocation7 + $0xb0] sm:$0xff]
    %v912 = vld [vmem:[#allocation7 + $0xb8] sm:$0xff]
    %v913 = vld [vmem:[#allocation7 + $0xc0] sm:$0xff]
    %v914 = vld [vmem:[#allocation7 + $0xc8] sm:$0xff]
    %v915 = vld [vmem:[#allocation7 + $0xd0] sm:$0xff]
    %v916 = vld [vmem:[#allocation7 + $0xd8] sm:$0xff]
    %v917 = vld [vmem:[#allocation7 + $0xe0] sm:$0xff]
    %v918 = vld [vmem:[#allocation7 + $0xe8] sm:$0xff]
    %v919 = vld [vmem:[#allocation7 + $0xf0] sm:$0xff]
    %v920 = vld [vmem:[#allocation7 + $0xf8] sm:$0xff]
    %v921 = vld [vmem:[#allocation7 + $0x100] sm:$0xff]
    %v922 = vld [vmem:[#allocation7 + $0x108] sm:$0xff]
    %v923 = vld [vmem:[#allocation7 + $0x110] sm:$0xff]
    %v924 = vld [vmem:[#allocation7 + $0x118] sm:$0xff]
    %v925 = vld [vmem:[#allocation7 + $0x120] sm:$0xff]
    %v926 = vld [vmem:[#allocation7 + $0x128] sm:$0xff]
    %v927 = vld [vmem:[#allocation7 + $0x130] sm:$0xff]
    %v928 = vld [vmem:[#allocation7 + $0x138] sm:$0xff]
    %v929 = vld [vmem:[#allocation7 + $0x140] sm:$0xff]
    %v930 = vld [vmem:[#allocation7 + $0x148] sm:$0xff]
    %v931 = vld [vmem:[#allocation7 + $0x150] sm:$0xff]
    %v932 = vld [vmem:[#allocation7 + $0x158] sm:$0xff]
    %v933 = vld [vmem:[#allocation7 + $0x160] sm:$0xff]
    %v934 = vld [vmem:[#allocation7 + $0x168] sm:$0xff]
    %v935 = vld [vmem:[#allocation7 + $0x170] sm:$0xff]
    %v936 = vld [vmem:[#allocation7 + $0x178] sm:$0xff]
    %v937 = vld [vmem:[#allocation7 + $0x180] sm:$0xff]
    %v938 = vld [vmem:[#allocation7 + $0x188] sm:$0xff]
    %v939 = vld [vmem:[#allocation7 + $0x190] sm:$0xff]
    %v940 = vld [vmem:[#allocation7 + $0x198] sm:$0xff]
    %v941 = vld [vmem:[#allocation7 + $0x1a0] sm:$0xff]
    %v942 = vld [vmem:[#allocation7 + $0x1a8] sm:$0xff]
    %v943 = vld [vmem:[#allocation7 + $0x1b0] sm:$0xff]
    %v944 = vld [vmem:[#allocation7 + $0x1b8] sm:$0xff]
    %v945 = vld [vmem:[#allocation7 + $0x1c0] sm:$0xff]
    %v946 = vld [vmem:[#allocation7 + $0x1c8] sm:$0xff]
    %v947 = vld [vmem:[#allocation7 + $0x1d0] sm:$0xff]
    %v948 = vld [vmem:[#allocation7 + $0x1d8] sm:$0xff]
    %v949 = vld [vmem:[#allocation7 + $0x1e0] sm:$0xff]
    %v950 = vld [vmem:[#allocation7 + $0x1e8] sm:$0xff]
    %v951 = vld [vmem:[#allocation7 + $0x1f0] sm:$0xff]
    %v952 = vld [vmem:[#allocation7 + $0x1f8] sm:$0xff]
    %v953 = vld [vmem:[#allocation7 + $0x200] sm:$0xff]
    %v954 = vld [vmem:[#allocation7 + $0x208] sm:$0xff]
    %v955 = vld [vmem:[#allocation7 + $0x210] sm:$0xff]
    %v956 = vld [vmem:[#allocation7 + $0x218] sm:$0xff]
    %v957 = vld [vmem:[#allocation7 + $0x220] sm:$0xff]
    %v958 = vld [vmem:[#allocation7 + $0x228] sm:$0xff]
    %v959 = vld [vmem:[#allocation7 + $0x230] sm:$0xff]
    %v960 = vld [vmem:[#allocation7 + $0x238] sm:$0xff]
    %v961 = vld [vmem:[#allocation7 + $0x240] sm:$0xff]
    %v962 = vld [vmem:[#allocation7 + $0x248] sm:$0xff]
    %v963 = vld [vmem:[#allocation7 + $0x250] sm:$0xff]
    %v964 = vld [vmem:[#allocation7 + $0x258] sm:$0xff]
    %v965 = vld [vmem:[#allocation7 + $0x260] sm:$0xff]
    %v966 = vld [vmem:[#allocation7 + $0x268] sm:$0xff]
    %v967 = vld [vmem:[#allocation7 + $0x270] sm:$0xff]
    %v968 = vld [vmem:[#allocation7 + $0x278] sm:$0xff]
    %v969 = vld [vmem:[#allocation7 + $0x280] sm:$0xff]
    %v970 = vld [vmem:[#allocation7 + $0x288] sm:$0xff]
    %v971 = vld [vmem:[#allocation7 + $0x290] sm:$0xff]
    %v972 = vld [vmem:[#allocation7 + $0x298] sm:$0xff]
    %v973 = vld [vmem:[#allocation7 + $0x2a0] sm:$0xff]
    %v974 = vld [vmem:[#allocation7 + $0x2a8] sm:$0xff]
    %v975 = vld [vmem:[#allocation7 + $0x2b0] sm:$0xff]
    %v976 = vld [vmem:[#allocation7 + $0x2b8] sm:$0xff]
    %v977 = vld [vmem:[#allocation7 + $0x2c0] sm:$0xff]
    %v978 = vld [vmem:[#allocation7 + $0x2c8] sm:$0xff]
    %v979 = vld [vmem:[#allocation7 + $0x2d0] sm:$0xff]
    %v980 = vld [vmem:[#allocation7 + $0x2d8] sm:$0xff]
    %v981 = vld [vmem:[#allocation7 + $0x2e0] sm:$0xff]
    %v982 = vld [vmem:[#allocation7 + $0x2e8] sm:$0xff]
    %v983 = vld [vmem:[#allocation7 + $0x2f0] sm:$0xff]
    %v984 = vld [vmem:[#allocation7 + $0x2f8] sm:$0xff]
    %v985 = vld [vmem:[#allocation7 + $0x300] sm:$0xff]
    %v986 = vld [vmem:[#allocation7 + $0x308] sm:$0xff]
    %v987 = vld [vmem:[#allocation7 + $0x310] sm:$0xff]
    %v988 = vld [vmem:[#allocation7 + $0x318] sm:$0xff]
    %v989 = vld [vmem:[#allocation7 + $0x320] sm:$0xff]
    %v990 = vld [vmem:[#allocation7 + $0x328] sm:$0xff]
    %v991 = vld [vmem:[#allocation7 + $0x330] sm:$0xff]
    %v992 = vld [vmem:[#allocation7 + $0x338] sm:$0xff]
    %v993 = vld [vmem:[#allocation7 + $0x340] sm:$0xff]
    %v994 = vld [vmem:[#allocation7 + $0x348] sm:$0xff]
    %v995 = vld [vmem:[#allocation7 + $0x350] sm:$0xff]
    %v996 = vld [vmem:[#allocation7 + $0x358] sm:$0xff]
    %v997 = vld [vmem:[#allocation7 + $0x360] sm:$0xff]
    %v998 = vld [vmem:[#allocation7 + $0x368] sm:$0xff]
    %v999 = vld [vmem:[#allocation7 + $0x370] sm:$0xff]
    %v1000 = vld [vmem:[#allocation7 + $0x378] sm:$0xff]
    %v1001 = vld [vmem:[#allocation7 + $0x380] sm:$0xff]
    %v1002 = vld [vmem:[#allocation7 + $0x388] sm:$0xff]
    %v1003 = vld [vmem:[#allocation7 + $0x390] sm:$0xff]
    %v1004 = vld [vmem:[#allocation7 + $0x398] sm:$0xff]
    %v1005 = vld [vmem:[#allocation7 + $0x3a0] sm:$0xff]
    %v1006 = vld [vmem:[#allocation7 + $0x3a8] sm:$0xff]
    %v1007 = vld [vmem:[#allocation7 + $0x3b0] sm:$0xff]
    %v1008 = vld [vmem:[#allocation7 + $0x3b8] sm:$0xff]
    %v1009 = vld [vmem:[#allocation7 + $0x3c0] sm:$0xff]
    %v1010 = vld [vmem:[#allocation7 + $0x3c8] sm:$0xff]
    %v1011 = vld [vmem:[#allocation7 + $0x3d0] sm:$0xff]
    %v1012 = vld [vmem:[#allocation7 + $0x3d8] sm:$0xff]
    %v1013 = vld [vmem:[#allocation7 + $0x3e0] sm:$0xff]
    %v1014 = vld [vmem:[#allocation7 + $0x3e8] sm:$0xff]
    %v1015 = vld [vmem:[#allocation7 + $0x3f0] sm:$0xff]
    %v1016 = vld [vmem:[#allocation7 + $0x3f8] sm:$0xff]
    %v1145 = vunpack.c.l.b16 %v889
    %v1146 = vunpack.c.h.b16 %v889
    %v1147 = vunpack.c.l.b16 %v890
    %v1148 = vunpack.c.h.b16 %v890
    %v1149 = vunpack.c.l.b16 %v891
    %v1150 = vunpack.c.h.b16 %v891
    %v1151 = vunpack.c.l.b16 %v892
    %v1152 = vunpack.c.h.b16 %v892
    %v1153 = vunpack.c.l.b16 %v893
    %v1154 = vunpack.c.h.b16 %v893
    %v1155 = vunpack.c.l.b16 %v894
    %v1156 = vunpack.c.h.b16 %v894
    %v1157 = vunpack.c.l.b16 %v895
    %v1158 = vunpack.c.h.b16 %v895
    %v1159 = vunpack.c.l.b16 %v896
    %v1160 = vunpack.c.h.b16 %v896
    %v1161 = vunpack.c.l.b16 %v897
    %v1162 = vunpack.c.h.b16 %v897
    %v1163 = vunpack.c.l.b16 %v898
    %v1164 = vunpack.c.h.b16 %v898
    %v1165 = vunpack.c.l.b16 %v899
    %v1166 = vunpack.c.h.b16 %v899
    %v1167 = vunpack.c.l.b16 %v900
    %v1168 = vunpack.c.h.b16 %v900
    %v1169 = vunpack.c.l.b16 %v901
    %v1170 = vunpack.c.h.b16 %v901
    %v1171 = vunpack.c.l.b16 %v902
    %v1172 = vunpack.c.h.b16 %v902
    %v1173 = vunpack.c.l.b16 %v903
    %v1174 = vunpack.c.h.b16 %v903
    %v1175 = vunpack.c.l.b16 %v904
    %v1176 = vunpack.c.h.b16 %v904
    %v1177 = vunpack.c.l.b16 %v905
    %v1178 = vunpack.c.h.b16 %v905
    %v1179 = vunpack.c.l.b16 %v906
    %v1180 = vunpack.c.h.b16 %v906
    %v1181 = vunpack.c.l.b16 %v907
    %v1182 = vunpack.c.h.b16 %v907
    %v1183 = vunpack.c.l.b16 %v908
    %v1184 = vunpack.c.h.b16 %v908
    %v1185 = vunpack.c.l.b16 %v909
    %v1186 = vunpack.c.h.b16 %v909
    %v1187 = vunpack.c.l.b16 %v910
    %v1188 = vunpack.c.h.b16 %v910
    %v1189 = vunpack.c.l.b16 %v911
    %v1190 = vunpack.c.h.b16 %v911
    %v1191 = vunpack.c.l.b16 %v912
    %v1192 = vunpack.c.h.b16 %v912
    %v1193 = vunpack.c.l.b16 %v913
    %v1194 = vunpack.c.h.b16 %v913
    %v1195 = vunpack.c.l.b16 %v914
    %v1196 = vunpack.c.h.b16 %v914
    %v1197 = vunpack.c.l.b16 %v915
    %v1198 = vunpack.c.h.b16 %v915
    %v1199 = vunpack.c.l.b16 %v916
    %v1200 = vunpack.c.h.b16 %v916
    %v1201 = vunpack.c.l.b16 %v917
    %v1202 = vunpack.c.h.b16 %v917
    %v1203 = vunpack.c.l.b16 %v918
    %v1204 = vunpack.c.h.b16 %v918
    %v1205 = vunpack.c.l.b16 %v919
    %v1206 = vunpack.c.h.b16 %v919
    %v1207 = vunpack.c.l.b16 %v920
    %v1208 = vunpack.c.h.b16 %v920
    %v1209 = vunpack.c.l.b16 %v921
    %v1210 = vunpack.c.h.b16 %v921
    %v1211 = vunpack.c.l.b16 %v922
    %v1212 = vunpack.c.h.b16 %v922
    %v1213 = vunpack.c.l.b16 %v923
    %v1214 = vunpack.c.h.b16 %v923
    %v1215 = vunpack.c.l.b16 %v924
    %v1216 = vunpack.c.h.b16 %v924
    %v1217 = vunpack.c.l.b16 %v925
    %v1218 = vunpack.c.h.b16 %v925
    %v1219 = vunpack.c.l.b16 %v926
    %v1220 = vunpack.c.h.b16 %v926
    %v1221 = vunpack.c.l.b16 %v927
    %v1222 = vunpack.c.h.b16 %v927
    %v1223 = vunpack.c.l.b16 %v928
    %v1224 = vunpack.c.h.b16 %v928
    %v1225 = vunpack.c.l.b16 %v929
    %v1226 = vunpack.c.h.b16 %v929
    %v1227 = vunpack.c.l.b16 %v930
    %v1228 = vunpack.c.h.b16 %v930
    %v1229 = vunpack.c.l.b16 %v931
    %v1230 = vunpack.c.h.b16 %v931
    %v1231 = vunpack.c.l.b16 %v932
    %v1232 = vunpack.c.h.b16 %v932
    %v1233 = vunpack.c.l.b16 %v933
    %v1234 = vunpack.c.h.b16 %v933
    %v1235 = vunpack.c.l.b16 %v934
    %v1236 = vunpack.c.h.b16 %v934
    %v1237 = vunpack.c.l.b16 %v935
    %v1238 = vunpack.c.h.b16 %v935
    %v1239 = vunpack.c.l.b16 %v936
    %v1240 = vunpack.c.h.b16 %v936
    %v1241 = vunpack.c.l.b16 %v937
    %v1242 = vunpack.c.h.b16 %v937
    %v1243 = vunpack.c.l.b16 %v938
    %v1244 = vunpack.c.h.b16 %v938
    %v1245 = vunpack.c.l.b16 %v939
    %v1246 = vunpack.c.h.b16 %v939
    %v1247 = vunpack.c.l.b16 %v940
    %v1248 = vunpack.c.h.b16 %v940
    %v1249 = vunpack.c.l.b16 %v941
    %v1250 = vunpack.c.h.b16 %v941
    %v1251 = vunpack.c.l.b16 %v942
    %v1252 = vunpack.c.h.b16 %v942
    %v1253 = vunpack.c.l.b16 %v943
    %v1254 = vunpack.c.h.b16 %v943
    %v1255 = vunpack.c.l.b16 %v944
    %v1256 = vunpack.c.h.b16 %v944
    %v1257 = vunpack.c.l.b16 %v945
    %v1258 = vunpack.c.h.b16 %v945
    %v1259 = vunpack.c.l.b16 %v946
    %v1260 = vunpack.c.h.b16 %v946
    %v1261 = vunpack.c.l.b16 %v947
    %v1262 = vunpack.c.h.b16 %v947
    %v1263 = vunpack.c.l.b16 %v948
    %v1264 = vunpack.c.h.b16 %v948
    %v1265 = vunpack.c.l.b16 %v949
    %v1266 = vunpack.c.h.b16 %v949
    %v1267 = vunpack.c.l.b16 %v950
    %v1268 = vunpack.c.h.b16 %v950
    %v1269 = vunpack.c.l.b16 %v951
    %v1270 = vunpack.c.h.b16 %v951
    %v1271 = vunpack.c.l.b16 %v952
    %v1272 = vunpack.c.h.b16 %v952
    %v1273 = vunpack.c.l.b16 %v953
    %v1274 = vunpack.c.h.b16 %v953
    %v1275 = vunpack.c.l.b16 %v954
    %v1276 = vunpack.c.h.b16 %v954
    %v1277 = vunpack.c.l.b16 %v955
    %v1278 = vunpack.c.h.b16 %v955
    %v1279 = vunpack.c.l.b16 %v956
    %v1280 = vunpack.c.h.b16 %v956
    %v1281 = vunpack.c.l.b16 %v957
    %v1282 = vunpack.c.h.b16 %v957
    %v1283 = vunpack.c.l.b16 %v958
    %v1284 = vunpack.c.h.b16 %v958
    %v1285 = vunpack.c.l.b16 %v959
    %v1286 = vunpack.c.h.b16 %v959
    %v1287 = vunpack.c.l.b16 %v960
    %v1288 = vunpack.c.h.b16 %v960
    %v1289 = vunpack.c.l.b16 %v961
    %v1290 = vunpack.c.h.b16 %v961
    %v1291 = vunpack.c.l.b16 %v962
    %v1292 = vunpack.c.h.b16 %v962
    %v1293 = vunpack.c.l.b16 %v963
    %v1294 = vunpack.c.h.b16 %v963
    %v1295 = vunpack.c.l.b16 %v964
    %v1296 = vunpack.c.h.b16 %v964
    %v1297 = vunpack.c.l.b16 %v965
    %v1298 = vunpack.c.h.b16 %v965
    %v1299 = vunpack.c.l.b16 %v966
    %v1300 = vunpack.c.h.b16 %v966
    %v1301 = vunpack.c.l.b16 %v967
    %v1302 = vunpack.c.h.b16 %v967
    %v1303 = vunpack.c.l.b16 %v968
    %v1304 = vunpack.c.h.b16 %v968
    %v1305 = vunpack.c.l.b16 %v969
    %v1306 = vunpack.c.h.b16 %v969
    %v1307 = vunpack.c.l.b16 %v970
    %v1308 = vunpack.c.h.b16 %v970
    %v1309 = vunpack.c.l.b16 %v971
    %v1310 = vunpack.c.h.b16 %v971
    %v1311 = vunpack.c.l.b16 %v972
    %v1312 = vunpack.c.h.b16 %v972
    %v1313 = vunpack.c.l.b16 %v973
    %v1314 = vunpack.c.h.b16 %v973
    %v1315 = vunpack.c.l.b16 %v974
    %v1316 = vunpack.c.h.b16 %v974
    %v1317 = vunpack.c.l.b16 %v975
    %v1318 = vunpack.c.h.b16 %v975
    %v1319 = vunpack.c.l.b16 %v976
    %v1320 = vunpack.c.h.b16 %v976
    %v1321 = vunpack.c.l.b16 %v977
    %v1322 = vunpack.c.h.b16 %v977
    %v1323 = vunpack.c.l.b16 %v978
    %v1324 = vunpack.c.h.b16 %v978
    %v1325 = vunpack.c.l.b16 %v979
    %v1326 = vunpack.c.h.b16 %v979
    %v1327 = vunpack.c.l.b16 %v980
    %v1328 = vunpack.c.h.b16 %v980
    %v1329 = vunpack.c.l.b16 %v981
    %v1330 = vunpack.c.h.b16 %v981
    %v1331 = vunpack.c.l.b16 %v982
    %v1332 = vunpack.c.h.b16 %v982
    %v1333 = vunpack.c.l.b16 %v983
    %v1334 = vunpack.c.h.b16 %v983
    %v1335 = vunpack.c.l.b16 %v984
    %v1336 = vunpack.c.h.b16 %v984
    %v1337 = vunpack.c.l.b16 %v985
    %v1338 = vunpack.c.h.b16 %v985
    %v1339 = vunpack.c.l.b16 %v986
    %v1340 = vunpack.c.h.b16 %v986
    %v1341 = vunpack.c.l.b16 %v987
    %v1342 = vunpack.c.h.b16 %v987
    %v1343 = vunpack.c.l.b16 %v988
    %v1344 = vunpack.c.h.b16 %v988
    %v1345 = vunpack.c.l.b16 %v989
    %v1346 = vunpack.c.h.b16 %v989
    %v1347 = vunpack.c.l.b16 %v990
    %v1348 = vunpack.c.h.b16 %v990
    %v1349 = vunpack.c.l.b16 %v991
    %v1350 = vunpack.c.h.b16 %v991
    %v1351 = vunpack.c.l.b16 %v992
    %v1352 = vunpack.c.h.b16 %v992
    %v1353 = vunpack.c.l.b16 %v993
    %v1354 = vunpack.c.h.b16 %v993
    %v1355 = vunpack.c.l.b16 %v994
    %v1356 = vunpack.c.h.b16 %v994
    %v1357 = vunpack.c.l.b16 %v995
    %v1358 = vunpack.c.h.b16 %v995
    %v1359 = vunpack.c.l.b16 %v996
    %v1360 = vunpack.c.h.b16 %v996
    %v1361 = vunpack.c.l.b16 %v997
    %v1362 = vunpack.c.h.b16 %v997
    %v1363 = vunpack.c.l.b16 %v998
    %v1364 = vunpack.c.h.b16 %v998
    %v1365 = vunpack.c.l.b16 %v999
    %v1366 = vunpack.c.h.b16 %v999
    %v1367 = vunpack.c.l.b16 %v1000
    %v1368 = vunpack.c.h.b16 %v1000
    %v1369 = vunpack.c.l.b16 %v1001
    %v1370 = vunpack.c.h.b16 %v1001
    %v1371 = vunpack.c.l.b16 %v1002
    %v1372 = vunpack.c.h.b16 %v1002
    %v1373 = vunpack.c.l.b16 %v1003
    %v1374 = vunpack.c.h.b16 %v1003
    %v1375 = vunpack.c.l.b16 %v1004
    %v1376 = vunpack.c.h.b16 %v1004
    %v1377 = vunpack.c.l.b16 %v1005
    %v1378 = vunpack.c.h.b16 %v1005
    %v1379 = vunpack.c.l.b16 %v1006
    %v1380 = vunpack.c.h.b16 %v1006
    %v1381 = vunpack.c.l.b16 %v1007
    %v1382 = vunpack.c.h.b16 %v1007
    %v1383 = vunpack.c.l.b16 %v1008
    %v1384 = vunpack.c.h.b16 %v1008
    %v1385 = vunpack.c.l.b16 %v1009
    %v1386 = vunpack.c.h.b16 %v1009
    %v1387 = vunpack.c.l.b16 %v1010
    %v1388 = vunpack.c.h.b16 %v1010
    %v1389 = vunpack.c.l.b16 %v1011
    %v1390 = vunpack.c.h.b16 %v1011
    %v1391 = vunpack.c.l.b16 %v1012
    %v1392 = vunpack.c.h.b16 %v1012
    %v1393 = vunpack.c.l.b16 %v1013
    %v1394 = vunpack.c.h.b16 %v1013
    %v1395 = vunpack.c.l.b16 %v1014
    %v1396 = vunpack.c.h.b16 %v1014
    %v1397 = vunpack.c.l.b16 %v1015
    %v1398 = vunpack.c.h.b16 %v1015
    %v1399 = vunpack.c.l.b16 %v1016
    %v1400 = vunpack.c.h.b16 %v1016
    %v1401 = vpack.c.b16 %v1147, %v1145
    %v1402 = vpack.c.b16 %v1148, %v1146
    %v1403 = vpack.c.b16 %v1151, %v1149
    %v1404 = vpack.c.b16 %v1152, %v1150
    %v1405 = vpack.c.b16 %v1155, %v1153
    %v1406 = vpack.c.b16 %v1156, %v1154
    %v1407 = vpack.c.b16 %v1159, %v1157
    %v1408 = vpack.c.b16 %v1160, %v1158
    %v1409 = vpack.c.b16 %v1163, %v1161
    %v1410 = vpack.c.b16 %v1164, %v1162
    %v1411 = vpack.c.b16 %v1167, %v1165
    %v1412 = vpack.c.b16 %v1168, %v1166
    %v1413 = vpack.c.b16 %v1171, %v1169
    %v1414 = vpack.c.b16 %v1172, %v1170
    %v1415 = vpack.c.b16 %v1175, %v1173
    %v1416 = vpack.c.b16 %v1176, %v1174
    %v1417 = vpack.c.b16 %v1179, %v1177
    %v1418 = vpack.c.b16 %v1180, %v1178
    %v1419 = vpack.c.b16 %v1183, %v1181
    %v1420 = vpack.c.b16 %v1184, %v1182
    %v1421 = vpack.c.b16 %v1187, %v1185
    %v1422 = vpack.c.b16 %v1188, %v1186
    %v1423 = vpack.c.b16 %v1191, %v1189
    %v1424 = vpack.c.b16 %v1192, %v1190
    %v1425 = vpack.c.b16 %v1195, %v1193
    %v1426 = vpack.c.b16 %v1196, %v1194
    %v1427 = vpack.c.b16 %v1199, %v1197
    %v1428 = vpack.c.b16 %v1200, %v1198
    %v1429 = vpack.c.b16 %v1203, %v1201
    %v1430 = vpack.c.b16 %v1204, %v1202
    %v1431 = vpack.c.b16 %v1207, %v1205
    %v1432 = vpack.c.b16 %v1208, %v1206
    %v1433 = vpack.c.b16 %v1211, %v1209
    %v1434 = vpack.c.b16 %v1212, %v1210
    %v1435 = vpack.c.b16 %v1215, %v1213
    %v1436 = vpack.c.b16 %v1216, %v1214
    %v1437 = vpack.c.b16 %v1219, %v1217
    %v1438 = vpack.c.b16 %v1220, %v1218
    %v1439 = vpack.c.b16 %v1223, %v1221
    %v1440 = vpack.c.b16 %v1224, %v1222
    %v1441 = vpack.c.b16 %v1227, %v1225
    %v1442 = vpack.c.b16 %v1228, %v1226
    %v1443 = vpack.c.b16 %v1231, %v1229
    %v1444 = vpack.c.b16 %v1232, %v1230
    %v1445 = vpack.c.b16 %v1235, %v1233
    %v1446 = vpack.c.b16 %v1236, %v1234
    %v1447 = vpack.c.b16 %v1239, %v1237
    %v1448 = vpack.c.b16 %v1240, %v1238
    %v1449 = vpack.c.b16 %v1243, %v1241
    %v1450 = vpack.c.b16 %v1244, %v1242
    %v1451 = vpack.c.b16 %v1247, %v1245
    %v1452 = vpack.c.b16 %v1248, %v1246
    %v1453 = vpack.c.b16 %v1251, %v1249
    %v1454 = vpack.c.b16 %v1252, %v1250
    %v1455 = vpack.c.b16 %v1255, %v1253
    %v1456 = vpack.c.b16 %v1256, %v1254
    %v1457 = vpack.c.b16 %v1259, %v1257
    %v1458 = vpack.c.b16 %v1260, %v1258
    %v1459 = vpack.c.b16 %v1263, %v1261
    %v1460 = vpack.c.b16 %v1264, %v1262
    %v1461 = vpack.c.b16 %v1267, %v1265
    %v1462 = vpack.c.b16 %v1268, %v1266
    %v1463 = vpack.c.b16 %v1271, %v1269
    %v1464 = vpack.c.b16 %v1272, %v1270
    %v1465 = vpack.c.b16 %v1275, %v1273
    %v1466 = vpack.c.b16 %v1276, %v1274
    %v1467 = vpack.c.b16 %v1279, %v1277
    %v1468 = vpack.c.b16 %v1280, %v1278
    %v1469 = vpack.c.b16 %v1283, %v1281
    %v1470 = vpack.c.b16 %v1284, %v1282
    %v1471 = vpack.c.b16 %v1287, %v1285
    %v1472 = vpack.c.b16 %v1288, %v1286
    %v1473 = vpack.c.b16 %v1291, %v1289
    %v1474 = vpack.c.b16 %v1292, %v1290
    %v1475 = vpack.c.b16 %v1295, %v1293
    %v1476 = vpack.c.b16 %v1296, %v1294
    %v1477 = vpack.c.b16 %v1299, %v1297
    %v1478 = vpack.c.b16 %v1300, %v1298
    %v1479 = vpack.c.b16 %v1303, %v1301
    %v1480 = vpack.c.b16 %v1304, %v1302
    %v1481 = vpack.c.b16 %v1307, %v1305
    %v1482 = vpack.c.b16 %v1308, %v1306
    %v1483 = vpack.c.b16 %v1311, %v1309
    %v1484 = vpack.c.b16 %v1312, %v1310
    %v1485 = vpack.c.b16 %v1315, %v1313
    %v1486 = vpack.c.b16 %v1316, %v1314
    %v1487 = vpack.c.b16 %v1319, %v1317
    %v1488 = vpack.c.b16 %v1320, %v1318
    %v1489 = vpack.c.b16 %v1323, %v1321
    %v1490 = vpack.c.b16 %v1324, %v1322
    %v1491 = vpack.c.b16 %v1327, %v1325
    %v1492 = vpack.c.b16 %v1328, %v1326
    %v1493 = vpack.c.b16 %v1331, %v1329
    %v1494 = vpack.c.b16 %v1332, %v1330
    %v1495 = vpack.c.b16 %v1335, %v1333
    %v1496 = vpack.c.b16 %v1336, %v1334
    %v1497 = vpack.c.b16 %v1339, %v1337
    %v1498 = vpack.c.b16 %v1340, %v1338
    %v1499 = vpack.c.b16 %v1343, %v1341
    %v1500 = vpack.c.b16 %v1344, %v1342
    %v1501 = vpack.c.b16 %v1347, %v1345
    %v1502 = vpack.c.b16 %v1348, %v1346
    %v1503 = vpack.c.b16 %v1351, %v1349
    %v1504 = vpack.c.b16 %v1352, %v1350
    %v1505 = vpack.c.b16 %v1355, %v1353
    %v1506 = vpack.c.b16 %v1356, %v1354
    %v1507 = vpack.c.b16 %v1359, %v1357
    %v1508 = vpack.c.b16 %v1360, %v1358
    %v1509 = vpack.c.b16 %v1363, %v1361
    %v1510 = vpack.c.b16 %v1364, %v1362
    %v1511 = vpack.c.b16 %v1367, %v1365
    %v1512 = vpack.c.b16 %v1368, %v1366
    %v1513 = vpack.c.b16 %v1371, %v1369
    %v1514 = vpack.c.b16 %v1372, %v1370
    %v1515 = vpack.c.b16 %v1375, %v1373
    %v1516 = vpack.c.b16 %v1376, %v1374
    %v1517 = vpack.c.b16 %v1379, %v1377
    %v1518 = vpack.c.b16 %v1380, %v1378
    %v1519 = vpack.c.b16 %v1383, %v1381
    %v1520 = vpack.c.b16 %v1384, %v1382
    %v1521 = vpack.c.b16 %v1387, %v1385
    %v1522 = vpack.c.b16 %v1388, %v1386
    %v1523 = vpack.c.b16 %v1391, %v1389
    %v1524 = vpack.c.b16 %v1392, %v1390
    %v1525 = vpack.c.b16 %v1395, %v1393
    %v1526 = vpack.c.b16 %v1396, %v1394
    %v1527 = vpack.c.b16 %v1399, %v1397
    %v1528 = vpack.c.b16 %v1400, %v1398
    %1657 = vmatprep.subr.bf16.mxu0 %v1402
    %1658 = vmatpush1.bf16.msra.mxu0 %v1401
    %1659 = vmatprep.subr.bf16.mxu0 %v1404
    %1660 = vmatpush1.bf16.msra.mxu0 %v1403
    %1661 = vmatprep.subr.bf16.mxu0 %v1406
    %1662 = vmatpush1.bf16.msra.mxu0 %v1405
    %1663 = vmatprep.subr.bf16.mxu0 %v1408
    %1664 = vmatpush1.bf16.msra.mxu0 %v1407
    %1665 = vmatprep.subr.bf16.mxu0 %v1410
    %1666 = vmatpush1.bf16.msra.mxu0 %v1409
    %1667 = vmatprep.subr.bf16.mxu0 %v1412
    %1668 = vmatpush1.bf16.msra.mxu0 %v1411
    %1669 = vmatprep.subr.bf16.mxu0 %v1414
    %1670 = vmatpush1.bf16.msra.mxu0 %v1413
    %1671 = vmatprep.subr.bf16.mxu0 %v1416
    %1672 = vmatpush1.bf16.msra.mxu0 %v1415
    %1673 = vmatprep.subr.bf16.mxu0 %v1418
    %1674 = vmatpush1.bf16.msra.mxu0 %v1417
    %1675 = vmatprep.subr.bf16.mxu0 %v1420
    %1676 = vmatpush1.bf16.msra.mxu0 %v1419
    %1677 = vmatprep.subr.bf16.mxu0 %v1422
    %1678 = vmatpush1.bf16.msra.mxu0 %v1421
    %1679 = vmatprep.subr.bf16.mxu0 %v1424
    %1680 = vmatpush1.bf16.msra.mxu0 %v1423
    %1681 = vmatprep.subr.bf16.mxu0 %v1426
    %1682 = vmatpush1.bf16.msra.mxu0 %v1425
    %1683 = vmatprep.subr.bf16.mxu0 %v1428
    %1684 = vmatpush1.bf16.msra.mxu0 %v1427
    %1685 = vmatprep.subr.bf16.mxu0 %v1430
    %1686 = vmatpush1.bf16.msra.mxu0 %v1429
    %1687 = vmatprep.subr.bf16.mxu0 %v1432
    %1688 = vmatpush1.bf16.msra.mxu0 %v1431
    %1689 = vmatprep.mubr.bf16.mxu0 %v882
    %1690 = vmatmul.mubr.bf16.gmra.mrb[0].mxu0 %v881
    %v1691 = vpop.f32.mrb[0].mxu0
    %v1692 = vadd.f32 0.0, %v1691
    %v1693 = vpop.f32.mrb[0].mxu0
    %v1694 = vadd.f32 0.0, %v1693
    %v1695 = vpop.f32.mrb[0].mxu0
    %v1696 = vpop.f32.mrb[0].mxu0
    %1697 = vdwg.mxu0
    %1698 = vmatprep.subr.bf16.mxu0 %v1434
    %1699 = vmatpush1.bf16.msra.mxu0 %v1433
    %1700 = vmatprep.subr.bf16.mxu0 %v1436
    %1701 = vmatpush1.bf16.msra.mxu0 %v1435
    %1702 = vmatprep.subr.bf16.mxu0 %v1438
    %1703 = vmatpush1.bf16.msra.mxu0 %v1437
    %1704 = vmatprep.subr.bf16.mxu0 %v1440
    %1705 = vmatpush1.bf16.msra.mxu0 %v1439
    %1706 = vmatprep.subr.bf16.mxu0 %v1442
    %1707 = vmatpush1.bf16.msra.mxu0 %v1441
    %1708 = vmatprep.subr.bf16.mxu0 %v1444
    %1709 = vmatpush1.bf16.msra.mxu0 %v1443
    %1710 = vmatprep.subr.bf16.mxu0 %v1446
    %1711 = vmatpush1.bf16.msra.mxu0 %v1445
    %1712 = vmatprep.subr.bf16.mxu0 %v1448
    %1713 = vmatpush1.bf16.msra.mxu0 %v1447
    %1714 = vmatprep.subr.bf16.mxu0 %v1450
    %1715 = vmatpush1.bf16.msra.mxu0 %v1449
    %1716 = vmatprep.subr.bf16.mxu0 %v1452
    %1717 = vmatpush1.bf16.msra.mxu0 %v1451
    %1718 = vmatprep.subr.bf16.mxu0 %v1454
    %1719 = vmatpush1.bf16.msra.mxu0 %v1453
    %1720 = vmatprep.subr.bf16.mxu0 %v1456
    %1721 = vmatpush1.bf16.msra.mxu0 %v1455
    %1722 = vmatprep.subr.bf16.mxu0 %v1458
    %1723 = vmatpush1.bf16.msra.mxu0 %v1457
    %1724 = vmatprep.subr.bf16.mxu0 %v1460
    %1725 = vmatpush1.bf16.msra.mxu0 %v1459
    %1726 = vmatprep.subr.bf16.mxu0 %v1462
    %1727 = vmatpush1.bf16.msra.mxu0 %v1461
    %1728 = vmatprep.subr.bf16.mxu0 %v1464
    %1729 = vmatpush1.bf16.msra.mxu0 %v1463
    %1730 = vmatprep.mubr.bf16.mxu0 %v884
    %1731 = vmatmul.mubr.bf16.gmra.mrb[0].mxu0 %v883
    %v1732 = vpop.f32.mrb[0].mxu0
    %v1733 = vadd.f32 %v1692, %v1732
    %v1734 = vpop.f32.mrb[0].mxu0
    %v1735 = vadd.f32 %v1694, %v1734
    %v1736 = vpop.f32.mrb[0].mxu0
    %v1737 = vpop.f32.mrb[0].mxu0
    %1738 = vdwg.mxu0
    %1739 = vmatprep.subr.bf16.mxu0 %v1466
    %1740 = vmatpush1.bf16.msra.mxu0 %v1465
    %1741 = vmatprep.subr.bf16.mxu0 %v1468
    %1742 = vmatpush1.bf16.msra.mxu0 %v1467
    %1743 = vmatprep.subr.bf16.mxu0 %v1470
    %1744 = vmatpush1.bf16.msra.mxu0 %v1469
    %1745 = vmatprep.subr.bf16.mxu0 %v1472
    %1746 = vmatpush1.bf16.msra.mxu0 %v1471
    %1747 = vmatprep.subr.bf16.mxu0 %v1474
    %1748 = vmatpush1.bf16.msra.mxu0 %v1473
    %1749 = vmatprep.subr.bf16.mxu0 %v1476
    %1750 = vmatpush1.bf16.msra.mxu0 %v1475
    %1751 = vmatprep.subr.bf16.mxu0 %v1478
    %1752 = vmatpush1.bf16.msra.mxu0 %v1477
    %1753 = vmatprep.subr.bf16.mxu0 %v1480
    %1754 = vmatpush1.bf16.msra.mxu0 %v1479
    %1755 = vmatprep.subr.bf16.mxu0 %v1482
    %1756 = vmatpush1.bf16.msra.mxu0 %v1481
    %1757 = vmatprep.subr.bf16.mxu0 %v1484
    %1758 = vmatpush1.bf16.msra.mxu0 %v1483
    %1759 = vmatprep.subr.bf16.mxu0 %v1486
    %1760 = vmatpush1.bf16.msra.mxu0 %v1485
    %1761 = vmatprep.subr.bf16.mxu0 %v1488
    %1762 = vmatpush1.bf16.msra.mxu0 %v1487
    %1763 = vmatprep.subr.bf16.mxu0 %v1490
    %1764 = vmatpush1.bf16.msra.mxu0 %v1489
    %1765 = vmatprep.subr.bf16.mxu0 %v1492
    %1766 = vmatpush1.bf16.msra.mxu0 %v1491
    %1767 = vmatprep.subr.bf16.mxu0 %v1494
    %1768 = vmatpush1.bf16.msra.mxu0 %v1493
    %1769 = vmatprep.subr.bf16.mxu0 %v1496
    %1770 = vmatpush1.bf16.msra.mxu0 %v1495
    %1771 = vmatprep.mubr.bf16.mxu0 %v886
    %1772 = vmatmul.mubr.bf16.gmra.mrb[0].mxu0 %v885
    %v1773 = vpop.f32.mrb[0].mxu0
    %v1774 = vadd.f32 %v1733, %v1773
    %v1775 = vpop.f32.mrb[0].mxu0
    %v1776 = vadd.f32 %v1735, %v1775
    %v1777 = vpop.f32.mrb[0].mxu0
    %v1778 = vpop.f32.mrb[0].mxu0
    %1779 = vdwg.mxu0
    %1780 = vmatprep.subr.bf16.mxu0 %v1498
    %1781 = vmatpush1.bf16.msra.mxu0 %v1497
    %1782 = vmatprep.subr.bf16.mxu0 %v1500
    %1783 = vmatpush1.bf16.msra.mxu0 %v1499
    %1784 = vmatprep.subr.bf16.mxu0 %v1502
    %1785 = vmatpush1.bf16.msra.mxu0 %v1501
    %1786 = vmatprep.subr.bf16.mxu0 %v1504
    %1787 = vmatpush1.bf16.msra.mxu0 %v1503
    %1788 = vmatprep.subr.bf16.mxu0 %v1506
    %1789 = vmatpush1.bf16.msra.mxu0 %v1505
    %1790 = vmatprep.subr.bf16.mxu0 %v1508
    %1791 = vmatpush1.bf16.msra.mxu0 %v1507
    %1792 = vmatprep.subr.bf16.mxu0 %v1510
    %1793 = vmatpush1.bf16.msra.mxu0 %v1509
    %1794 = vmatprep.subr.bf16.mxu0 %v1512
    %1795 = vmatpush1.bf16.msra.mxu0 %v1511
    %1796 = vmatprep.subr.bf16.mxu0 %v1514
    %1797 = vmatpush1.bf16.msra.mxu0 %v1513
    %1798 = vmatprep.subr.bf16.mxu0 %v1516
    %1799 = vmatpush1.bf16.msra.mxu0 %v1515
    %1800 = vmatprep.subr.bf16.mxu0 %v1518
    %1801 = vmatpush1.bf16.msra.mxu0 %v1517
    %1802 = vmatprep.subr.bf16.mxu0 %v1520
    %1803 = vmatpush1.bf16.msra.mxu0 %v1519
    %1804 = vmatprep.subr.bf16.mxu0 %v1522
    %1805 = vmatpush1.bf16.msra.mxu0 %v1521
    %1806 = vmatprep.subr.bf16.mxu0 %v1524
    %1807 = vmatpush1.bf16.msra.mxu0 %v1523
    %1808 = vmatprep.subr.bf16.mxu0 %v1526
    %1809 = vmatpush1.bf16.msra.mxu0 %v1525
    %1810 = vmatprep.subr.bf16.mxu0 %v1528
    %1811 = vmatpush1.bf16.msra.mxu0 %v1527
    %1812 = vmatprep.mubr.bf16.mxu0 %v888
    %1813 = vmatmul.mubr.bf16.gmra.mrb[0].mxu0 %v887
    %v1814 = vpop.f32.mrb[0].mxu0
    %v1815 = vadd.f32 %v1774, %v1814
    %v1816 = vpop.f32.mrb[0].mxu0
    %v1817 = vadd.f32 %v1776, %v1816
    %v1818 = vpop.f32.mrb[0].mxu0
    %v1819 = vpop.f32.mrb[0].mxu0
    %1820 = vdwg.mxu0
    %v1821 = vld [vmem:[%s5] sm:$0x3]
    %v1822 = vld [vmem:[#allocation9] sm:$0x3]
    %v1823 = vrot.slane %v1815, 4
    %v1824 = vadd.f32 %v1815, %v1823
    %v1825 = vrot.slane %v1824, 2
    %v1826 = vadd.f32 %v1824, %v1825
    %v1827 = vrot.slane %v1826, 1
    %v1828 = vadd.f32 %v1826, %v1827
    %v1829 = vrot.slane %v1817, 4
    %v1830 = vadd.f32 %v1817, %v1829
    %v1831 = vrot.slane %v1830, 2
    %v1832 = vadd.f32 %v1830, %v1831
    %v1833 = vrot.slane %v1832, 1
    %v1834 = vadd.f32 %v1832, %v1833
    %v1835 = vmul.f32 %v1828, 0.125
    %v1836 = vmul.f32 %v1834, 0.125
    %v1837 = vmul.f32 %v1815, %v1815
    %v1838 = vmul.f32 %v1817, %v1817
    %v1839 = vrot.slane %v1837, 4
    %v1840 = vadd.f32 %v1837, %v1839
    %v1841 = vrot.slane %v1840, 2
    %v1842 = vadd.f32 %v1840, %v1841
    %v1843 = vrot.slane %v1842, 1
    %v1844 = vadd.f32 %v1842, %v1843
    %v1845 = vrot.slane %v1838, 4
    %v1846 = vadd.f32 %v1838, %v1845
    %v1847 = vrot.slane %v1846, 2
    %v1848 = vadd.f32 %v1846, %v1847
    %v1849 = vrot.slane %v1848, 1
    %v1850 = vadd.f32 %v1848, %v1849
    %v1851 = vmul.f32 %v1844, 0.125
    %v1852 = vmul.f32 %v1850, 0.125
    %v1853 = vmul.f32 %v1835, %v1835
    %v1854 = vmul.f32 %v1836, %v1836
    %v1855 = vsub.f32 %v1851, %v1853
    %v1856 = vsub.f32 %v1852, %v1854
    %v1857 = vmax.f32 %v1855, 0.0
    %v1858 = vmax.f32 %v1856, 0.0
    %v1859 = vadd.f32 %v1857, 1e-05
    %v1860 = vadd.f32 %v1858, 1e-05
    %v1861 = vrsqrt.pop %v1859
    %v1862 = vrsqrt.pop %v1860
    %v1864 = vlaneseq
    %v1865 = vshrl.u32 %v1864, 7
    %v1866 = vsub.s32 0, %v1865
    %v1867 = vrot.slane %v1821, %v1866
    %v1868 = vlaneseq
    %v1869 = vshrl.u32 %v1868, 7
    %v1870 = vsub.s32 1, %v1869
    %v1871 = vrot.slane %v1821, %v1870
    %v1874 = vmul.f32 %v1861, %v1867
    %v1875 = vmul.f32 %v1862, %v1871
    %v1876 = vlaneseq
    %v1877 = vshrl.u32 %v1876, 7
    %v1878 = vsub.s32 0, %v1877
    %v1879 = vrot.slane %v1874, %v1878
    %v1880 = vlaneseq
    %v1881 = vshrl.u32 %v1880, 7
    %v1882 = vsub.s32 0, %v1881
    %v1883 = vrot.slane %v1875, %v1882
    %v1884 = vmul.f32 %v1815, %v1879
    %v1885 = vmul.f32 %v1817, %v1883
    %v1886 = vmul.f32 %v1835, %v1874
    %v1887 = vmul.f32 %v1836, %v1875
    %v1890 = vcombine.low %v1886, %v1887
    %v1892 = vunpack.c.l.s4 1966171168
    %v1893 = vunpack.c.0.s8 %v1892
    %v1894 = vlaneseq
    %v1895 = vshrl.u32 %v1894, 7
    %v1896 = vsub.s32 %v1893, %v1895
    %v1897 = vrot.slane %v1890, %v1896
    %v1899 = vunpack.c.l.s4 1966171168
    %v1900 = vunpack.c.0.s8 %v1899
    %v1901 = vlaneseq
    %v1902 = vshrl.u32 %v1901, 7
    %v1903 = vsub.s32 %v1900, %v1902
    %v1904 = vrot.slane %v1897, %v1903
    %v1906 = vsub.f32 %v1822, %v1904
    %v1908 = vlaneseq
    %v1909 = vshrl.u32 %v1908, 7
    %v1910 = vsub.s32 0, %v1909
    %v1911 = vrot.slane %v1906, %v1910
    %v1912 = vlaneseq
    %v1913 = vshrl.u32 %v1912, 7
    %v1914 = vsub.s32 1, %v1913
    %v1915 = vrot.slane %v1906, %v1914
    %v1918 = vadd.f32 %v1884, %v1911
    %v1919 = vadd.f32 %v1885, %v1915
    %vm1920 = vcmp.ge.f32.partialorder %v1918, 0.0
    %vm1921 = vcmp.ge.f32.partialorder %v1919, 0.0
    %v1922 = vmul.f32 %v1918, 0.01
    %v1923 = vmul.f32 %v1919, 0.01
    %v1924 = vsel %vm1920, %v1918, %v1922
    %v1925 = vsel %vm1921, %v1919, %v1923
    %v1926 = vld [vmem:[#allocation10] sm:$0xff]
    %v1927 = vld [vmem:[#allocation10 + $0x8] sm:$0xff]
    %v1928 = vld [vmem:[#allocation10 + $0x10] sm:$0xff]
    %v1929 = vld [vmem:[#allocation10 + $0x18] sm:$0xff]
    %v1930 = vld [vmem:[#allocation10 + $0x20] sm:$0xff]
    %v1931 = vld [vmem:[#allocation10 + $0x28] sm:$0xff]
    %v1932 = vld [vmem:[#allocation10 + $0x30] sm:$0xff]
    %v1933 = vld [vmem:[#allocation10 + $0x38] sm:$0xff]
    %v1934 = vld [vmem:[#allocation10 + $0x40] sm:$0xff]
    %v1935 = vld [vmem:[#allocation10 + $0x48] sm:$0xff]
    %v1936 = vld [vmem:[#allocation10 + $0x50] sm:$0xff]
    %v1937 = vld [vmem:[#allocation10 + $0x58] sm:$0xff]
    %v1938 = vld [vmem:[#allocation10 + $0x60] sm:$0xff]
    %v1939 = vld [vmem:[#allocation10 + $0x68] sm:$0xff]
    %v1940 = vld [vmem:[#allocation10 + $0x70] sm:$0xff]
    %v1941 = vld [vmem:[#allocation10 + $0x78] sm:$0xff]
    %v1942 = vld [vmem:[%s8] sm:$0x1]
    %v1943 = vld [vmem:[%s9] sm:$0x1]
    %v1944 = vpack.c.bf16 %v1925, %v1924
    %v1961 = vunpack.c.l.b16 %v1926
    %v1962 = vunpack.c.h.b16 %v1926
    %v1963 = vunpack.c.l.b16 %v1927
    %v1964 = vunpack.c.h.b16 %v1927
    %v1965 = vunpack.c.l.b16 %v1928
    %v1966 = vunpack.c.h.b16 %v1928
    %v1967 = vunpack.c.l.b16 %v1929
    %v1968 = vunpack.c.h.b16 %v1929
    %v1969 = vunpack.c.l.b16 %v1930
    %v1970 = vunpack.c.h.b16 %v1930
    %v1971 = vunpack.c.l.b16 %v1931
    %v1972 = vunpack.c.h.b16 %v1931
    %v1973 = vunpack.c.l.b16 %v1932
    %v1974 = vunpack.c.h.b16 %v1932
    %v1975 = vunpack.c.l.b16 %v1933
    %v1976 = vunpack.c.h.b16 %v1933
    %v1977 = vunpack.c.l.b16 %v1934
    %v1978 = vunpack.c.h.b16 %v1934
    %v1979 = vunpack.c.l.b16 %v1935
    %v1980 = vunpack.c.h.b16 %v1935
    %v1981 = vunpack.c.l.b16 %v1936
    %v1982 = vunpack.c.h.b16 %v1936
    %v1983 = vunpack.c.l.b16 %v1937
    %v1984 = vunpack.c.h.b16 %v1937
    %v1985 = vunpack.c.l.b16 %v1938
    %v1986 = vunpack.c.h.b16 %v1938
    %v1987 = vunpack.c.l.b16 %v1939
    %v1988 = vunpack.c.h.b16 %v1939
    %v1989 = vunpack.c.l.b16 %v1940
    %v1990 = vunpack.c.h.b16 %v1940
    %v1991 = vunpack.c.l.b16 %v1941
    %v1992 = vunpack.c.h.b16 %v1941
    %v1993 = vpack.c.b16 %v1963, %v1961
    %v1994 = vpack.c.b16 %v1964, %v1962
    %v1995 = vpack.c.b16 %v1967, %v1965
    %v1996 = vpack.c.b16 %v1968, %v1966
    %v1997 = vpack.c.b16 %v1971, %v1969
    %v1998 = vpack.c.b16 %v1972, %v1970
    %v1999 = vpack.c.b16 %v1975, %v1973
    %v2000 = vpack.c.b16 %v1976, %v1974
    %v2001 = vpack.c.b16 %v1979, %v1977
    %v2002 = vpack.c.b16 %v1980, %v1978
    %v2003 = vpack.c.b16 %v1983, %v1981
    %v2004 = vpack.c.b16 %v1984, %v1982
    %v2005 = vpack.c.b16 %v1987, %v1985
    %v2006 = vpack.c.b16 %v1988, %v1986
    %v2007 = vpack.c.b16 %v1991, %v1989
    %v2008 = vpack.c.b16 %v1992, %v1990
    %2025 = vmatprep.subr.bf16.mxu0 %v1994
    %2026 = vmatpush1.bf16.msra.mxu0 %v1993
    %2027 = vmatprep.subr.bf16.mxu0 %v1996
    %2028 = vmatpush1.bf16.msra.mxu0 %v1995
    %2029 = vmatprep.subr.bf16.mxu0 %v1998
    %2030 = vmatpush1.bf16.msra.mxu0 %v1997
    %2031 = vmatprep.subr.bf16.mxu0 %v2000
    %2032 = vmatpush1.bf16.msra.mxu0 %v1999
    %2033 = vmatprep.subr.bf16.mxu0 %v2002
    %2034 = vmatpush1.bf16.msra.mxu0 %v2001
    %2035 = vmatprep.subr.bf16.mxu0 %v2004
    %2036 = vmatpush1.bf16.msra.mxu0 %v2003
    %2037 = vmatprep.subr.bf16.mxu0 %v2006
    %2038 = vmatpush1.bf16.msra.mxu0 %v2005
    %2039 = vmatprep.subr.bf16.mxu0 %v2008
    %2040 = vmatpush1.bf16.msra.mxu0 %v2007
    %2041 = vmatprep.subr.bf16.mxu0 0
    %2042 = vmatpush1.bf16.msra.mxu0 0
    %2043 = vmatprep.subr.bf16.mxu0 0
    %2044 = vmatpush1.bf16.msra.mxu0 0
    %2045 = vmatprep.subr.bf16.mxu0 0
    %2046 = vmatpush1.bf16.msra.mxu0 0
    %2047 = vmatprep.subr.bf16.mxu0 0
    %2048 = vmatpush1.bf16.msra.mxu0 0
    %2049 = vmatprep.subr.bf16.mxu0 0
    %2050 = vmatpush1.bf16.msra.mxu0 0
    %2051 = vmatprep.subr.bf16.mxu0 0
    %2052 = vmatpush1.bf16.msra.mxu0 0
    %2053 = vmatprep.subr.bf16.mxu0 0
    %2054 = vmatpush1.bf16.msra.mxu0 0
    %2055 = vmatprep.subr.bf16.mxu0 0
    %2056 = vmatpush1.bf16.msra.mxu0 0
    %2057 = vmatprep.mubr.bf16.mxu0 0
    %2058 = vmatmul.mubr.bf16.gmra.mrb[0].mxu0 %v1944
    %v2059 = vpop.f32.mrb[0].mxu0
    %v2060 = vadd.f32 0.0, %v2059
    %v2061 = vpop.f32.mrb[0].mxu0
    %v2062 = vadd.f32 0.0, %v2061
    %v2063 = vpop.f32.mrb[0].mxu0
    %v2064 = vadd.f32 0.0, %v2063
    %v2065 = vpop.f32.mrb[0].mxu0
    %v2066 = vadd.f32 0.0, %v2065
    %2067 = vdwg.mxu0
    %v2068 = vadd.f32 %v2060, %v2064
    %v2069 = vrot.slane %v2068, 4
    %v2070 = vadd.f32 %v2068, %v2069
    %v2071 = vrot.slane %v2070, 2
    %v2072 = vadd.f32 %v2070, %v2071
    %v2073 = vrot.slane %v2072, 1
    %v2074 = vadd.f32 %v2072, %v2073
    %v2075 = vadd.f32 %v2062, %v2066
    %v2076 = vrot.slane %v2075, 4
    %v2077 = vadd.f32 %v2075, %v2076
    %v2078 = vrot.slane %v2077, 2
    %v2079 = vadd.f32 %v2077, %v2078
    %v2080 = vrot.slane %v2079, 1
    %v2081 = vadd.f32 %v2079, %v2080
    %v2082 = vmul.f32 %v2060, %v2060
    %v2083 = vmul.f32 %v2062, %v2062
    %v2084 = vmul.f32 %v2064, %v2064
    %v2085 = vmul.f32 %v2066, %v2066
    %v2086 = vadd.f32 %v2082, %v2084
    %v2087 = vrot.slane %v2086, 4
    %v2088 = vadd.f32 %v2086, %v2087
    %v2089 = vrot.slane %v2088, 2
    %v2090 = vadd.f32 %v2088, %v2089
    %v2091 = vrot.slane %v2090, 1
    %v2092 = vadd.f32 %v2090, %v2091
    %v2093 = vadd.f32 %v2083, %v2085
    %v2094 = vrot.slane %v2093, 4
    %v2095 = vadd.f32 %v2093, %v2094
    %v2096 = vrot.slane %v2095, 2
    %v2097 = vadd.f32 %v2095, %v2096
    %v2098 = vrot.slane %v2097, 1
    %v2099 = vadd.f32 %v2097, %v2098
    %v2100 = vadd.f32 %v2074, %v2081
    %v2101 = vmul.f32 %v2100, 0.03125
    %v2102 = vadd.f32 %v2092, %v2099
    %v2103 = vmul.f32 %v2102, 0.03125
    %v2104 = vmul.f32 %v2101, %v2101
    %v2105 = vsub.f32 %v2103, %v2104
    %v2106 = vmax.f32 %v2105, 0.0
    %v2107 = vadd.f32 %v2106, 1e-05
    %v2108 = vrsqrt.pop %v2107
    %v2109 = vmul.f32 %v2108, %v1942
    %v2110 = vmul.f32 %v2101, %v2109
    %v2111 = vsub.f32 %v1943, %v2110
    %v2112 = vlaneseq
    %v2113 = vshrl.u32 %v2112, 7
    %v2114 = vsub.s32 0, %v2113
    %v2115 = vrot.slane %v2109, %v2114
    %v2116 = vmul.f32 %v2060, %v2115
    %v2117 = vmul.f32 %v2062, %v2115
    %v2118 = vmul.f32 %v2064, %v2115
    %v2119 = vmul.f32 %v2066, %v2115
    %v2121 = vlaneseq
    %v2122 = vshrl.u32 %v2121, 7
    %v2123 = vsub.s32 0, %v2122
    %v2124 = vrot.slane %v2111, %v2123
    %v2126 = vadd.f32 %v2116, %v2124
    %v2127 = vadd.f32 %v2117, %v2124
    %v2128 = vadd.f32 %v2118, %v2124
    %v2129 = vadd.f32 %v2119, %v2124
    %vm2130 = vcmp.ge.f32.partialorder %v2126, 0.0
    %vm2131 = vcmp.ge.f32.partialorder %v2127, 0.0
    %vm2132 = vcmp.ge.f32.partialorder %v2128, 0.0
    %vm2133 = vcmp.ge.f32.partialorder %v2129, 0.0
    %v2134 = vmul.f32 %v2126, 0.01
    %v2135 = vmul.f32 %v2127, 0.01
    %v2136 = vmul.f32 %v2128, 0.01
    %v2137 = vmul.f32 %v2129, 0.01
    %v2138 = vsel %vm2130, %v2126, %v2134
    %v2139 = vsel %vm2131, %v2127, %v2135
    %v2140 = vsel %vm2132, %v2128, %v2136
    %v2141 = vsel %vm2133, %v2129, %v2137
    %s2142 = scalar_lea.vmem [#allocation10], 128
    %v2143 = vld [vmem:[%s2142] sm:$0xff]
    %v2144 = vld [vmem:[%s2142 + $0x8] sm:$0xff]
    %v2145 = vld [vmem:[%s2142 + $0x10] sm:$0xff]
    %v2146 = vld [vmem:[%s2142 + $0x18] sm:$0xff]
    %v2147 = vld [vmem:[%s2142 + $0x20] sm:$0xff]
    %v2148 = vld [vmem:[%s2142 + $0x28] sm:$0xff]
    %v2149 = vld [vmem:[%s2142 + $0x30] sm:$0xff]
    %v2150 = vld [vmem:[%s2142 + $0x38] sm:$0xff]
    %v2151 = vld [vmem:[%s2142 + $0x40] sm:$0xff]
    %v2152 = vld [vmem:[%s2142 + $0x48] sm:$0xff]
    %v2153 = vld [vmem:[%s2142 + $0x50] sm:$0xff]
    %v2154 = vld [vmem:[%s2142 + $0x58] sm:$0xff]
    %v2155 = vld [vmem:[%s2142 + $0x60] sm:$0xff]
    %v2156 = vld [vmem:[%s2142 + $0x68] sm:$0xff]
    %v2157 = vld [vmem:[%s2142 + $0x70] sm:$0xff]
    %v2158 = vld [vmem:[%s2142 + $0x78] sm:$0xff]
    %s2159 = scalar_lea.vmem %s8, 1
    %v2160 = vld [vmem:[%s2159] sm:$0x1]
    %s2161 = scalar_lea.vmem %s9, 1
    %v2162 = vld [vmem:[%s2161] sm:$0x1]
    %v2163 = vpack.c.bf16 %v2139, %v2138
    %v2164 = vpack.c.bf16 %v2141, %v2140
    %v2181 = vunpack.c.l.b16 %v2143
    %v2182 = vunpack.c.h.b16 %v2143
    %v2183 = vunpack.c.l.b16 %v2144
    %v2184 = vunpack.c.h.b16 %v2144
    %v2185 = vunpack.c.l.b16 %v2145
    %v2186 = vunpack.c.h.b16 %v2145
    %v2187 = vunpack.c.l.b16 %v2146
    %v2188 = vunpack.c.h.b16 %v2146
    %v2189 = vunpack.c.l.b16 %v2147
    %v2190 = vunpack.c.h.b16 %v2147
    %v2191 = vunpack.c.l.b16 %v2148
    %v2192 = vunpack.c.h.b16 %v2148
    %v2193 = vunpack.c.l.b16 %v2149
    %v2194 = vunpack.c.h.b16 %v2149
    %v2195 = vunpack.c.l.b16 %v2150
    %v2196 = vunpack.c.h.b16 %v2150
    %v2197 = vunpack.c.l.b16 %v2151
    %v2198 = vunpack.c.h.b16 %v2151
    %v2199 = vunpack.c.l.b16 %v2152
    %v2200 = vunpack.c.h.b16 %v2152
    %v2201 = vunpack.c.l.b16 %v2153
    %v2202 = vunpack.c.h.b16 %v2153
    %v2203 = vunpack.c.l.b16 %v2154
    %v2204 = vunpack.c.h.b16 %v2154
    %v2205 = vunpack.c.l.b16 %v2155
    %v2206 = vunpack.c.h.b16 %v2155
    %v2207 = vunpack.c.l.b16 %v2156
    %v2208 = vunpack.c.h.b16 %v2156
    %v2209 = vunpack.c.l.b16 %v2157
    %v2210 = vunpack.c.h.b16 %v2157
    %v2211 = vunpack.c.l.b16 %v2158
    %v2212 = vunpack.c.h.b16 %v2158
    %v2213 = vpack.c.b16 %v2183, %v2181
    %v2214 = vpack.c.b16 %v2184, %v2182
    %v2215 = vpack.c.b16 %v2187, %v2185
    %v2216 = vpack.c.b16 %v2188, %v2186
    %v2217 = vpack.c.b16 %v2191, %v2189
    %v2218 = vpack.c.b16 %v2192, %v2190
    %v2219 = vpack.c.b16 %v2195, %v2193
    %v2220 = vpack.c.b16 %v2196, %v2194
    %v2221 = vpack.c.b16 %v2199, %v2197
    %v2222 = vpack.c.b16 %v2200, %v2198
    %v2223 = vpack.c.b16 %v2203, %v2201
    %v2224 = vpack.c.b16 %v2204, %v2202
    %v2225 = vpack.c.b16 %v2207, %v2205
    %v2226 = vpack.c.b16 %v2208, %v2206
    %v2227 = vpack.c.b16 %v2211, %v2209
    %v2228 = vpack.c.b16 %v2212, %v2210
    %2245 = vmatprep.subr.bf16.mxu0 %v2214
    %2246 = vmatpush1.bf16.msra.mxu0 %v2213
    %2247 = vmatprep.subr.bf16.mxu0 %v2216
    %2248 = vmatpush1.bf16.msra.mxu0 %v2215
    %2249 = vmatprep.subr.bf16.mxu0 %v2218
    %2250 = vmatpush1.bf16.msra.mxu0 %v2217
    %2251 = vmatprep.subr.bf16.mxu0 %v2220
    %2252 = vmatpush1.bf16.msra.mxu0 %v2219
    %2253 = vmatprep.subr.bf16.mxu0 %v2222
    %2254 = vmatpush1.bf16.msra.mxu0 %v2221
    %2255 = vmatprep.subr.bf16.mxu0 %v2224
    %2256 = vmatpush1.bf16.msra.mxu0 %v2223
    %2257 = vmatprep.subr.bf16.mxu0 %v2226
    %2258 = vmatpush1.bf16.msra.mxu0 %v2225
    %2259 = vmatprep.subr.bf16.mxu0 %v2228
    %2260 = vmatpush1.bf16.msra.mxu0 %v2227
    %2261 = vmatprep.subr.bf16.mxu0 0
    %2262 = vmatpush1.bf16.msra.mxu0 0
    %2263 = vmatprep.subr.bf16.mxu0 0
    %2264 = vmatpush1.bf16.msra.mxu0 0
    %2265 = vmatprep.subr.bf16.mxu0 0
    %2266 = vmatpush1.bf16.msra.mxu0 0
    %2267 = vmatprep.subr.bf16.mxu0 0
    %2268 = vmatpush1.bf16.msra.mxu0 0
    %2269 = vmatprep.subr.bf16.mxu0 0
    %2270 = vmatpush1.bf16.msra.mxu0 0
    %2271 = vmatprep.subr.bf16.mxu0 0
    %2272 = vmatpush1.bf16.msra.mxu0 0
    %2273 = vmatprep.subr.bf16.mxu0 0
    %2274 = vmatpush1.bf16.msra.mxu0 0
    %2275 = vmatprep.subr.bf16.mxu0 0
    %2276 = vmatpush1.bf16.msra.mxu0 0
    %2277 = vmatprep.mubr.bf16.mxu0 0
    %2278 = vmatmul.mubr.bf16.gmra.mrb[0].mxu0 %v2163
    %v2279 = vpop.f32.mrb[0].mxu0
    %v2280 = vadd.f32 0.0, %v2279
    %v2281 = vpop.f32.mrb[0].mxu0
    %v2282 = vadd.f32 0.0, %v2281
    %v2283 = vpop.f32.mrb[0].mxu0
    %v2284 = vadd.f32 0.0, %v2283
    %v2285 = vpop.f32.mrb[0].mxu0
    %v2286 = vadd.f32 0.0, %v2285
    %2287 = vmatprep.mubr.bf16.mxu0 0
    %2288 = vmatmul.mubr.bf16.gmra.mrb[0].mxu0 %v2164
    %v2289 = vpop.f32.mrb[0].mxu0
    %v2290 = vadd.f32 0.0, %v2289
    %v2291 = vpop.f32.mrb[0].mxu0
    %v2292 = vadd.f32 0.0, %v2291
    %v2293 = vpop.f32.mrb[0].mxu0
    %v2294 = vadd.f32 0.0, %v2293
    %v2295 = vpop.f32.mrb[0].mxu0
    %v2296 = vadd.f32 0.0, %v2295
    %2297 = vdwg.mxu0
    %v2298 = vadd.f32 %v2280, %v2284
    %v2299 = vadd.f32 %v2298, %v2290
    %v2300 = vadd.f32 %v2299, %v2294
    %v2301 = vrot.slane %v2300, 4
    %v2302 = vadd.f32 %v2300, %v2301
    %v2303 = vrot.slane %v2302, 2
    %v2304 = vadd.f32 %v2302, %v2303
    %v2305 = vrot.slane %v2304, 1
    %v2306 = vadd.f32 %v2304, %v2305
    %v2307 = vadd.f32 %v2282, %v2286
    %v2308 = vadd.f32 %v2307, %v2292
    %v2309 = vadd.f32 %v2308, %v2296
    %v2310 = vrot.slane %v2309, 4
    %v2311 = vadd.f32 %v2309, %v2310
    %v2312 = vrot.slane %v2311, 2
    %v2313 = vadd.f32 %v2311, %v2312
    %v2314 = vrot.slane %v2313, 1
    %v2315 = vadd.f32 %v2313, %v2314
    %v2316 = vmul.f32 %v2280, %v2280
    %v2317 = vmul.f32 %v2282, %v2282
    %v2318 = vmul.f32 %v2284, %v2284
    %v2319 = vmul.f32 %v2286, %v2286
    %v2320 = vmul.f32 %v2290, %v2290
    %v2321 = vmul.f32 %v2292, %v2292
    %v2322 = vmul.f32 %v2294, %v2294
    %v2323 = vmul.f32 %v2296, %v2296
    %v2324 = vadd.f32 %v2316, %v2318
    %v2325 = vadd.f32 %v2324, %v2320
    %v2326 = vadd.f32 %v2325, %v2322
    %v2327 = vrot.slane %v2326, 4
    %v2328 = vadd.f32 %v2326, %v2327
    %v2329 = vrot.slane %v2328, 2
    %v2330 = vadd.f32 %v2328, %v2329
    %v2331 = vrot.slane %v2330, 1
    %v2332 = vadd.f32 %v2330, %v2331
    %v2333 = vadd.f32 %v2317, %v2319
    %v2334 = vadd.f32 %v2333, %v2321
    %v2335 = vadd.f32 %v2334, %v2323
    %v2336 = vrot.slane %v2335, 4
    %v2337 = vadd.f32 %v2335, %v2336
    %v2338 = vrot.slane %v2337, 2
    %v2339 = vadd.f32 %v2337, %v2338
    %v2340 = vrot.slane %v2339, 1
    %v2341 = vadd.f32 %v2339, %v2340
    %v2342 = vadd.f32 %v2306, %v2315
    %v2343 = vmul.f32 %v2342, 0.015625
    %v2344 = vadd.f32 %v2332, %v2341
    %v2345 = vmul.f32 %v2344, 0.015625
    %v2346 = vmul.f32 %v2343, %v2343
    %v2347 = vsub.f32 %v2345, %v2346
    %v2348 = vmax.f32 %v2347, 0.0
    %v2349 = vadd.f32 %v2348, 1e-05
    %v2350 = vrsqrt.pop %v2349
    %v2351 = vmul.f32 %v2350, %v2160
    %v2352 = vmul.f32 %v2343, %v2351
    %v2353 = vsub.f32 %v2162, %v2352
    %v2354 = vlaneseq
    %v2355 = vshrl.u32 %v2354, 7
    %v2356 = vsub.s32 0, %v2355
    %v2357 = vrot.slane %v2351, %v2356
    %v2358 = vmul.f32 %v2280, %v2357
    %v2359 = vmul.f32 %v2282, %v2357
    %v2360 = vmul.f32 %v2284, %v2357
    %v2361 = vmul.f32 %v2286, %v2357
    %v2362 = vmul.f32 %v2290, %v2357
    %v2363 = vmul.f32 %v2292, %v2357
    %v2364 = vmul.f32 %v2294, %v2357
    %v2365 = vmul.f32 %v2296, %v2357
    %v2367 = vlaneseq
    %v2368 = vshrl.u32 %v2367, 7
    %v2369 = vsub.s32 0, %v2368
    %v2370 = vrot.slane %v2353, %v2369
    %v2372 = vadd.f32 %v2358, %v2370
    %v2373 = vadd.f32 %v2359, %v2370
    %v2374 = vadd.f32 %v2360, %v2370
    %v2375 = vadd.f32 %v2361, %v2370
    %v2376 = vadd.f32 %v2362, %v2370
    %v2377 = vadd.f32 %v2363, %v2370
    %v2378 = vadd.f32 %v2364, %v2370
    %v2379 = vadd.f32 %v2365, %v2370
    %vm2380 = vcmp.ge.f32.partialorder %v2372, 0.0
    %vm2381 = vcmp.ge.f32.partialorder %v2373, 0.0
    %vm2382 = vcmp.ge.f32.partialorder %v2374, 0.0
    %vm2383 = vcmp.ge.f32.partialorder %v2375, 0.0
    %vm2384 = vcmp.ge.f32.partialorder %v2376, 0.0
    %vm2385 = vcmp.ge.f32.partialorder %v2377, 0.0
    %vm2386 = vcmp.ge.f32.partialorder %v2378, 0.0
    %vm2387 = vcmp.ge.f32.partialorder %v2379, 0.0
    %v2388 = vmul.f32 %v2372, 0.01
    %v2389 = vmul.f32 %v2373, 0.01
    %v2390 = vmul.f32 %v2374, 0.01
    %v2391 = vmul.f32 %v2375, 0.01
    %v2392 = vmul.f32 %v2376, 0.01
    %v2393 = vmul.f32 %v2377, 0.01
    %v2394 = vmul.f32 %v2378, 0.01
    %v2395 = vmul.f32 %v2379, 0.01
    %v2396 = vsel %vm2380, %v2372, %v2388
    %v2397 = vsel %vm2381, %v2373, %v2389
    %v2398 = vsel %vm2382, %v2374, %v2390
    %v2399 = vsel %vm2383, %v2375, %v2391
    %v2400 = vsel %vm2384, %v2376, %v2392
    %v2401 = vsel %vm2385, %v2377, %v2393
    %v2402 = vsel %vm2386, %v2378, %v2394
    %v2403 = vsel %vm2387, %v2379, %v2395
    %s2404 = scalar_lea.vmem [#allocation10], 256
    %v2405 = vld [vmem:[%s2404] sm:$0xff]
    %v2406 = vld [vmem:[%s2404 + $0x8] sm:$0xff]
    %v2407 = vld [vmem:[%s2404 + $0x10] sm:$0xff]
    %v2408 = vld [vmem:[%s2404 + $0x18] sm:$0xff]
    %v2409 = vld [vmem:[%s2404 + $0x20] sm:$0xff]
    %v2410 = vld [vmem:[%s2404 + $0x28] sm:$0xff]
    %v2411 = vld [vmem:[%s2404 + $0x30] sm:$0xff]
    %v2412 = vld [vmem:[%s2404 + $0x38] sm:$0xff]
    %v2413 = vld [vmem:[%s2404 + $0x40] sm:$0xff]
    %v2414 = vld [vmem:[%s2404 + $0x48] sm:$0xff]
    %v2415 = vld [vmem:[%s2404 + $0x50] sm:$0xff]
    %v2416 = vld [vmem:[%s2404 + $0x58] sm:$0xff]
    %v2417 = vld [vmem:[%s2404 + $0x60] sm:$0xff]
    %v2418 = vld [vmem:[%s2404 + $0x68] sm:$0xff]
    %v2419 = vld [vmem:[%s2404 + $0x70] sm:$0xff]
    %v2420 = vld [vmem:[%s2404 + $0x78] sm:$0xff]
    %s2421 = scalar_lea.vmem %s8, 2
    %v2422 = vld [vmem:[%s2421] sm:$0x1]
    %s2423 = scalar_lea.vmem %s9, 2
    %v2424 = vld [vmem:[%s2423] sm:$0x1]
    %v2425 = vpack.c.bf16 %v2397, %v2396
    %v2426 = vpack.c.bf16 %v2399, %v2398
    %v2427 = vpack.c.bf16 %v2401, %v2400
    %v2428 = vpack.c.bf16 %v2403, %v2402
    %v2445 = vunpack.c.l.b16 %v2405
    %v2446 = vunpack.c.h.b16 %v2405
    %v2447 = vunpack.c.l.b16 %v2406
    %v2448 = vunpack.c.h.b16 %v2406
    %v2449 = vunpack.c.l.b16 %v2407
    %v2450 = vunpack.c.h.b16 %v2407
    %v2451 = vunpack.c.l.b16 %v2408
    %v2452 = vunpack.c.h.b16 %v2408
    %v2453 = vunpack.c.l.b16 %v2409
    %v2454 = vunpack.c.h.b16 %v2409
    %v2455 = vunpack.c.l.b16 %v2410
    %v2456 = vunpack.c.h.b16 %v2410
    %v2457 = vunpack.c.l.b16 %v2411
    %v2458 = vunpack.c.h.b16 %v2411
    %v2459 = vunpack.c.l.b16 %v2412
    %v2460 = vunpack.c.h.b16 %v2412
    %v2461 = vunpack.c.l.b16 %v2413
    %v2462 = vunpack.c.h.b16 %v2413
    %v2463 = vunpack.c.l.b16 %v2414
    %v2464 = vunpack.c.h.b16 %v2414
    %v2465 = vunpack.c.l.b16 %v2415
    %v2466 = vunpack.c.h.b16 %v2415
    %v2467 = vunpack.c.l.b16 %v2416
    %v2468 = vunpack.c.h.b16 %v2416
    %v2469 = vunpack.c.l.b16 %v2417
    %v2470 = vunpack.c.h.b16 %v2417
    %v2471 = vunpack.c.l.b16 %v2418
    %v2472 = vunpack.c.h.b16 %v2418
    %v2473 = vunpack.c.l.b16 %v2419
    %v2474 = vunpack.c.h.b16 %v2419
    %v2475 = vunpack.c.l.b16 %v2420
    %v2476 = vunpack.c.h.b16 %v2420
    %v2477 = vpack.c.b16 %v2447, %v2445
    %v2478 = vpack.c.b16 %v2448, %v2446
    %v2479 = vpack.c.b16 %v2451, %v2449
    %v2480 = vpack.c.b16 %v2452, %v2450
    %v2481 = vpack.c.b16 %v2455, %v2453
    %v2482 = vpack.c.b16 %v2456, %v2454
    %v2483 = vpack.c.b16 %v2459, %v2457
    %v2484 = vpack.c.b16 %v2460, %v2458
    %v2485 = vpack.c.b16 %v2463, %v2461
    %v2486 = vpack.c.b16 %v2464, %v2462
    %v2487 = vpack.c.b16 %v2467, %v2465
    %v2488 = vpack.c.b16 %v2468, %v2466
    %v2489 = vpack.c.b16 %v2471, %v2469
    %v2490 = vpack.c.b16 %v2472, %v2470
    %v2491 = vpack.c.b16 %v2475, %v2473
    %v2492 = vpack.c.b16 %v2476, %v2474
    %2509 = vmatprep.subr.bf16.mxu0 %v2478
    %2510 = vmatpush1.bf16.msra.mxu0 %v2477
    %2511 = vmatprep.subr.bf16.mxu0 %v2480
    %2512 = vmatpush1.bf16.msra.mxu0 %v2479
    %2513 = vmatprep.subr.bf16.mxu0 %v2482
    %2514 = vmatpush1.bf16.msra.mxu0 %v2481
    %2515 = vmatprep.subr.bf16.mxu0 %v2484
    %2516 = vmatpush1.bf16.msra.mxu0 %v2483
    %2517 = vmatprep.subr.bf16.mxu0 %v2486
    %2518 = vmatpush1.bf16.msra.mxu0 %v2485
    %2519 = vmatprep.subr.bf16.mxu0 %v2488
    %2520 = vmatpush1.bf16.msra.mxu0 %v2487
    %2521 = vmatprep.subr.bf16.mxu0 %v2490
    %2522 = vmatpush1.bf16.msra.mxu0 %v2489
    %2523 = vmatprep.subr.bf16.mxu0 %v2492
    %2524 = vmatpush1.bf16.msra.mxu0 %v2491
    %2525 = vmatprep.subr.bf16.mxu0 0
    %2526 = vmatpush1.bf16.msra.mxu0 0
    %2527 = vmatprep.subr.bf16.mxu0 0
    %2528 = vmatpush1.bf16.msra.mxu0 0
    %2529 = vmatprep.subr.bf16.mxu0 0
    %2530 = vmatpush1.bf16.msra.mxu0 0
    %2531 = vmatprep.subr.bf16.mxu0 0
    %2532 = vmatpush1.bf16.msra.mxu0 0
    %2533 = vmatprep.subr.bf16.mxu0 0
    %2534 = vmatpush1.bf16.msra.mxu0 0
    %2535 = vmatprep.subr.bf16.mxu0 0
    %2536 = vmatpush1.bf16.msra.mxu0 0
    %2537 = vmatprep.subr.bf16.mxu0 0
    %2538 = vmatpush1.bf16.msra.mxu0 0
    %2539 = vmatprep.subr.bf16.mxu0 0
    %2540 = vmatpush1.bf16.msra.mxu0 0
    %2541 = vmatprep.mubr.bf16.mxu0 0
    %2542 = vmatmul.mubr.bf16.gmra.mrb[0].mxu0 %v2425
    %v2543 = vpop.f32.mrb[0].mxu0
    %v2544 = vadd.f32 0.0, %v2543
    %v2545 = vpop.f32.mrb[0].mxu0
    %v2546 = vadd.f32 0.0, %v2545
    %v2547 = vpop.f32.mrb[0].mxu0
    %v2548 = vadd.f32 0.0, %v2547
    %v2549 = vpop.f32.mrb[0].mxu0
    %v2550 = vadd.f32 0.0, %v2549
    %2551 = vmatprep.mubr.bf16.mxu0 0
    %2552 = vmatmul.mubr.bf16.gmra.mrb[0].mxu0 %v2426
    %v2553 = vpop.f32.mrb[0].mxu0
    %v2554 = vadd.f32 0.0, %v2553
    %v2555 = vpop.f32.mrb[0].mxu0
    %v2556 = vadd.f32 0.0, %v2555
    %v2557 = vpop.f32.mrb[0].mxu0
    %v2558 = vadd.f32 0.0, %v2557
    %v2559 = vpop.f32.mrb[0].mxu0
    %v2560 = vadd.f32 0.0, %v2559
    %2561 = vmatprep.mubr.bf16.mxu0 0
    %2562 = vmatmul.mubr.bf16.gmra.mrb[0].mxu0 %v2427
    %v2563 = vpop.f32.mrb[0].mxu0
    %v2564 = vadd.f32 0.0, %v2563
    %v2565 = vpop.f32.mrb[0].mxu0
    %v2566 = vadd.f32 0.0, %v2565
    %v2567 = vpop.f32.mrb[0].mxu0
    %v2568 = vadd.f32 0.0, %v2567
    %v2569 = vpop.f32.mrb[0].mxu0
    %v2570 = vadd.f32 0.0, %v2569
    %2571 = vmatprep.mubr.bf16.mxu0 0
    %2572 = vmatmul.mubr.bf16.gmra.mrb[0].mxu0 %v2428
    %v2573 = vpop.f32.mrb[0].mxu0
    %v2574 = vadd.f32 0.0, %v2573
    %v2575 = vpop.f32.mrb[0].mxu0
    %v2576 = vadd.f32 0.0, %v2575
    %v2577 = vpop.f32.mrb[0].mxu0
    %v2578 = vadd.f32 0.0, %v2577
    %v2579 = vpop.f32.mrb[0].mxu0
    %v2580 = vadd.f32 0.0, %v2579
    %2581 = vdwg.mxu0
    %v2582 = vadd.f32 %v2544, %v2548
    %v2583 = vadd.f32 %v2582, %v2554
    %v2584 = vadd.f32 %v2583, %v2558
    %v2585 = vadd.f32 %v2584, %v2564
    %v2586 = vadd.f32 %v2585, %v2568
    %v2587 = vadd.f32 %v2586, %v2574
    %v2588 = vadd.f32 %v2587, %v2578
    %v2589 = vrot.slane %v2588, 4
    %v2590 = vadd.f32 %v2588, %v2589
    %v2591 = vrot.slane %v2590, 2
    %v2592 = vadd.f32 %v2590, %v2591
    %v2593 = vrot.slane %v2592, 1
    %v2594 = vadd.f32 %v2592, %v2593
    %v2595 = vadd.f32 %v2546, %v2550
    %v2596 = vadd.f32 %v2595, %v2556
    %v2597 = vadd.f32 %v2596, %v2560
    %v2598 = vadd.f32 %v2597, %v2566
    %v2599 = vadd.f32 %v2598, %v2570
    %v2600 = vadd.f32 %v2599, %v2576
    %v2601 = vadd.f32 %v2600, %v2580
    %v2602 = vrot.slane %v2601, 4
    %v2603 = vadd.f32 %v2601, %v2602
    %v2604 = vrot.slane %v2603, 2
    %v2605 = vadd.f32 %v2603, %v2604
    %v2606 = vrot.slane %v2605, 1
    %v2607 = vadd.f32 %v2605, %v2606
    %v2608 = vmul.f32 %v2544, %v2544
    %v2609 = vmul.f32 %v2546, %v2546
    %v2610 = vmul.f32 %v2548, %v2548
    %v2611 = vmul.f32 %v2550, %v2550
    %v2612 = vmul.f32 %v2554, %v2554
    %v2613 = vmul.f32 %v2556, %v2556
    %v2614 = vmul.f32 %v2558, %v2558
    %v2615 = vmul.f32 %v2560, %v2560
    %v2616 = vmul.f32 %v2564, %v2564
    %v2617 = vmul.f32 %v2566, %v2566
    %v2618 = vmul.f32 %v2568, %v2568
    %v2619 = vmul.f32 %v2570, %v2570
    %v2620 = vmul.f32 %v2574, %v2574
    %v2621 = vmul.f32 %v2576, %v2576
    %v2622 = vmul.f32 %v2578, %v2578
    %v2623 = vmul.f32 %v2580, %v2580
    %v2624 = vadd.f32 %v2608, %v2610
    %v2625 = vadd.f32 %v2624, %v2612
    %v2626 = vadd.f32 %v2625, %v2614
    %v2627 = vadd.f32 %v2626, %v2616
    %v2628 = vadd.f32 %v2627, %v2618
    %v2629 = vadd.f32 %v2628, %v2620
    %v2630 = vadd.f32 %v2629, %v2622
    %v2631 = vrot.slane %v2630, 4
    %v2632 = vadd.f32 %v2630, %v2631
    %v2633 = vrot.slane %v2632, 2
    %v2634 = vadd.f32 %v2632, %v2633
    %v2635 = vrot.slane %v2634, 1
    %v2636 = vadd.f32 %v2634, %v2635
    %v2637 = vadd.f32 %v2609, %v2611
    %v2638 = vadd.f32 %v2637, %v2613
    %v2639 = vadd.f32 %v2638, %v2615
    %v2640 = vadd.f32 %v2639, %v2617
    %v2641 = vadd.f32 %v2640, %v2619
    %v2642 = vadd.f32 %v2641, %v2621
    %v2643 = vadd.f32 %v2642, %v2623
    %v2644 = vrot.slane %v2643, 4
    %v2645 = vadd.f32 %v2643, %v2644
    %v2646 = vrot.slane %v2645, 2
    %v2647 = vadd.f32 %v2645, %v2646
    %v2648 = vrot.slane %v2647, 1
    %v2649 = vadd.f32 %v2647, %v2648
    %v2650 = vadd.f32 %v2594, %v2607
    %v2651 = vmul.f32 %v2650, 0.0078125
    %v2652 = vadd.f32 %v2636, %v2649
    %v2653 = vmul.f32 %v2652, 0.0078125
    %v2654 = vmul.f32 %v2651, %v2651
    %v2655 = vsub.f32 %v2653, %v2654
    %v2656 = vmax.f32 %v2655, 0.0
    %v2657 = vadd.f32 %v2656, 1e-05
    %v2658 = vrsqrt.pop %v2657
    %v2659 = vmul.f32 %v2658, %v2422
    %v2660 = vmul.f32 %v2651, %v2659
    %v2661 = vsub.f32 %v2424, %v2660
    %v2662 = vlaneseq
    %v2663 = vshrl.u32 %v2662, 7
    %v2664 = vsub.s32 0, %v2663
    %v2665 = vrot.slane %v2659, %v2664
    %v2666 = vmul.f32 %v2544, %v2665
    %v2667 = vmul.f32 %v2546, %v2665
    %v2668 = vmul.f32 %v2548, %v2665
    %v2669 = vmul.f32 %v2550, %v2665
    %v2670 = vmul.f32 %v2554, %v2665
    %v2671 = vmul.f32 %v2556, %v2665
    %v2672 = vmul.f32 %v2558, %v2665
    %v2673 = vmul.f32 %v2560, %v2665
    %v2674 = vmul.f32 %v2564, %v2665
    %v2675 = vmul.f32 %v2566, %v2665
    %v2676 = vmul.f32 %v2568, %v2665
    %v2677 = vmul.f32 %v2570, %v2665
    %v2678 = vmul.f32 %v2574, %v2665
    %v2679 = vmul.f32 %v2576, %v2665
    %v2680 = vmul.f32 %v2578, %v2665
    %v2681 = vmul.f32 %v2580, %v2665
    %v2683 = vlaneseq
    %v2684 = vshrl.u32 %v2683, 7
    %v2685 = vsub.s32 0, %v2684
    %v2686 = vrot.slane %v2661, %v2685
    %v2688 = vadd.f32 %v2666, %v2686
    %v2689 = vadd.f32 %v2667, %v2686
    %v2690 = vadd.f32 %v2668, %v2686
    %v2691 = vadd.f32 %v2669, %v2686
    %v2692 = vadd.f32 %v2670, %v2686
    %v2693 = vadd.f32 %v2671, %v2686
    %v2694 = vadd.f32 %v2672, %v2686
    %v2695 = vadd.f32 %v2673, %v2686
    %v2696 = vadd.f32 %v2674, %v2686
    %v2697 = vadd.f32 %v2675, %v2686
    %v2698 = vadd.f32 %v2676, %v2686
    %v2699 = vadd.f32 %v2677, %v2686
    %v2700 = vadd.f32 %v2678, %v2686
    %v2701 = vadd.f32 %v2679, %v2686
    %v2702 = vadd.f32 %v2680, %v2686
    %v2703 = vadd.f32 %v2681, %v2686
    %vm2704 = vcmp.ge.f32.partialorder %v2688, 0.0
    %vm2705 = vcmp.ge.f32.partialorder %v2689, 0.0
    %vm2706 = vcmp.ge.f32.partialorder %v2690, 0.0
    %vm2707 = vcmp.ge.f32.partialorder %v2691, 0.0
    %vm2708 = vcmp.ge.f32.partialorder %v2692, 0.0
    %vm2709 = vcmp.ge.f32.partialorder %v2693, 0.0
    %vm2710 = vcmp.ge.f32.partialorder %v2694, 0.0
    %vm2711 = vcmp.ge.f32.partialorder %v2695, 0.0
    %vm2712 = vcmp.ge.f32.partialorder %v2696, 0.0
    %vm2713 = vcmp.ge.f32.partialorder %v2697, 0.0
    %vm2714 = vcmp.ge.f32.partialorder %v2698, 0.0
    %vm2715 = vcmp.ge.f32.partialorder %v2699, 0.0
    %vm2716 = vcmp.ge.f32.partialorder %v2700, 0.0
    %vm2717 = vcmp.ge.f32.partialorder %v2701, 0.0
    %vm2718 = vcmp.ge.f32.partialorder %v2702, 0.0
    %vm2719 = vcmp.ge.f32.partialorder %v2703, 0.0
    %v2720 = vmul.f32 %v2688, 0.01
    %v2721 = vmul.f32 %v2689, 0.01
    %v2722 = vmul.f32 %v2690, 0.01
    %v2723 = vmul.f32 %v2691, 0.01
    %v2724 = vmul.f32 %v2692, 0.01
    %v2725 = vmul.f32 %v2693, 0.01
    %v2726 = vmul.f32 %v2694, 0.01
    %v2727 = vmul.f32 %v2695, 0.01
    %v2728 = vmul.f32 %v2696, 0.01
    %v2729 = vmul.f32 %v2697, 0.01
    %v2730 = vmul.f32 %v2698, 0.01
    %v2731 = vmul.f32 %v2699, 0.01
    %v2732 = vmul.f32 %v2700, 0.01
    %v2733 = vmul.f32 %v2701, 0.01
    %v2734 = vmul.f32 %v2702, 0.01
    %v2735 = vmul.f32 %v2703, 0.01
    %v2736 = vsel %vm2704, %v2688, %v2720
    %v2737 = vsel %vm2705, %v2689, %v2721
    %v2738 = vsel %vm2706, %v2690, %v2722
    %v2739 = vsel %vm2707, %v2691, %v2723
    %v2740 = vsel %vm2708, %v2692, %v2724
    %v2741 = vsel %vm2709, %v2693, %v2725
    %v2742 = vsel %vm2710, %v2694, %v2726
    %v2743 = vsel %vm2711, %v2695, %v2727
    %v2744 = vsel %vm2712, %v2696, %v2728
    %v2745 = vsel %vm2713, %v2697, %v2729
    %v2746 = vsel %vm2714, %v2698, %v2730
    %v2747 = vsel %vm2715, %v2699, %v2731
    %v2748 = vsel %vm2716, %v2700, %v2732
    %v2749 = vsel %vm2717, %v2701, %v2733
    %v2750 = vsel %vm2718, %v2702, %v2734
    %v2751 = vsel %vm2719, %v2703, %v2735
    %v2752 = vpack.c.bf16 %v2737, %v2736
    %v2753 = vpack.c.bf16 %v2739, %v2738
    %v2754 = vpack.c.bf16 %v2741, %v2740
    %v2755 = vpack.c.bf16 %v2743, %v2742
    %v2756 = vpack.c.bf16 %v2745, %v2744
    %v2757 = vpack.c.bf16 %v2747, %v2746
    %v2758 = vpack.c.bf16 %v2749, %v2748
    %v2759 = vpack.c.bf16 %v2751, %v2750
    %v2760 = vld [vmem:[#allocation12] sm:$0xf]
    %v2761 = vld [vmem:[#allocation12 + $0x4] sm:$0xf]
    %v2762 = vld [vmem:[#allocation12 + $0x8] sm:$0xf]
    %v2763 = vld [vmem:[#allocation12 + $0xc] sm:$0xf]
    %v2764 = vld [vmem:[#allocation12 + $0x10] sm:$0xf]
    %v2765 = vld [vmem:[#allocation12 + $0x14] sm:$0xf]
    %v2766 = vld [vmem:[#allocation12 + $0x18] sm:$0xf]
    %v2767 = vld [vmem:[#allocation12 + $0x1c] sm:$0xf]
    %v2768 = vld [vmem:[#allocation12 + $0x20] sm:$0xf]
    %v2769 = vld [vmem:[#allocation12 + $0x24] sm:$0xf]
    %v2770 = vld [vmem:[#allocation12 + $0x28] sm:$0xf]
    %v2771 = vld [vmem:[#allocation12 + $0x2c] sm:$0xf]
    %v2772 = vld [vmem:[#allocation12 + $0x30] sm:$0xf]
    %v2773 = vld [vmem:[#allocation12 + $0x34] sm:$0xf]
    %v2774 = vld [vmem:[#allocation12 + $0x38] sm:$0xf]
    %v2775 = vld [vmem:[#allocation12 + $0x3c] sm:$0xf]
    %v2792 = vunpack.c.l.b16 %v2760
    %v2793 = vunpack.c.l.b16 %v2761
    %v2794 = vunpack.c.l.b16 %v2762
    %v2795 = vunpack.c.l.b16 %v2763
    %v2796 = vunpack.c.l.b16 %v2764
    %v2797 = vunpack.c.l.b16 %v2765
    %v2798 = vunpack.c.l.b16 %v2766
    %v2799 = vunpack.c.l.b16 %v2767
    %v2800 = vunpack.c.l.b16 %v2768
    %v2801 = vunpack.c.l.b16 %v2769
    %v2802 = vunpack.c.l.b16 %v2770
    %v2803 = vunpack.c.l.b16 %v2771
    %v2804 = vunpack.c.l.b16 %v2772
    %v2805 = vunpack.c.l.b16 %v2773
    %v2806 = vunpack.c.l.b16 %v2774
    %v2807 = vunpack.c.l.b16 %v2775
    %v2808 = vpack.c.b16 %v2793, %v2792
    %v2809 = vpack.c.b16 %v2795, %v2794
    %v2810 = vpack.c.b16 %v2797, %v2796
    %v2811 = vpack.c.b16 %v2799, %v2798
    %v2812 = vpack.c.b16 %v2801, %v2800
    %v2813 = vpack.c.b16 %v2803, %v2802
    %v2814 = vpack.c.b16 %v2805, %v2804
    %v2815 = vpack.c.b16 %v2807, %v2806
    %2824 = vmatprep.subr.bf16.mxu0 0
    %2825 = vmatpush1.bf16.msra.mxu0 %v2808
    %2826 = vmatprep.subr.bf16.mxu0 0
    %2827 = vmatpush1.bf16.msra.mxu0 %v2809
    %2828 = vmatprep.subr.bf16.mxu0 0
    %2829 = vmatpush1.bf16.msra.mxu0 %v2810
    %2830 = vmatprep.subr.bf16.mxu0 0
    %2831 = vmatpush1.bf16.msra.mxu0 %v2811
    %2832 = vmatprep.subr.bf16.mxu0 0
    %2833 = vmatpush1.bf16.msra.mxu0 %v2812
    %2834 = vmatprep.subr.bf16.mxu0 0
    %2835 = vmatpush1.bf16.msra.mxu0 %v2813
    %2836 = vmatprep.subr.bf16.mxu0 0
    %2837 = vmatpush1.bf16.msra.mxu0 %v2814
    %2838 = vmatprep.subr.bf16.mxu0 0
    %2839 = vmatpush1.bf16.msra.mxu0 %v2815
    %2840 = vmatprep.subr.bf16.mxu0 0
    %2841 = vmatpush1.bf16.msra.mxu0 0
    %2842 = vmatprep.subr.bf16.mxu0 0
    %2843 = vmatpush1.bf16.msra.mxu0 0
    %2844 = vmatprep.subr.bf16.mxu0 0
    %2845 = vmatpush1.bf16.msra.mxu0 0
    %2846 = vmatprep.subr.bf16.mxu0 0
    %2847 = vmatpush1.bf16.msra.mxu0 0
    %2848 = vmatprep.subr.bf16.mxu0 0
    %2849 = vmatpush1.bf16.msra.mxu0 0
    %2850 = vmatprep.subr.bf16.mxu0 0
    %2851 = vmatpush1.bf16.msra.mxu0 0
    %2852 = vmatprep.subr.bf16.mxu0 0
    %2853 = vmatpush1.bf16.msra.mxu0 0
    %2854 = vmatprep.subr.bf16.mxu0 0
    %2855 = vmatpush1.bf16.msra.mxu0 0
    %2856 = vmatprep.mubr.bf16.mxu0 0
    %2857 = vmatmul.mubr.bf16.gmra.mrb[0].mxu0 %v2752
    %v2858 = vpop.f32.mrb[0].mxu0
    %v2859 = vadd.f32 0.0, %v2858
    %v2860 = vpop.f32.mrb[0].mxu0
    %v2861 = vpop.f32.mrb[0].mxu0
    %v2862 = vadd.f32 0.0, %v2861
    %v2863 = vpop.f32.mrb[0].mxu0
    %2864 = vmatprep.mubr.bf16.mxu0 0
    %2865 = vmatmul.mubr.bf16.gmra.mrb[0].mxu0 %v2753
    %v2866 = vpop.f32.mrb[0].mxu0
    %v2867 = vadd.f32 0.0, %v2866
    %v2868 = vpop.f32.mrb[0].mxu0
    %v2869 = vpop.f32.mrb[0].mxu0
    %v2870 = vadd.f32 0.0, %v2869
    %v2871 = vpop.f32.mrb[0].mxu0
    %2872 = vmatprep.mubr.bf16.mxu0 0
    %2873 = vmatmul.mubr.bf16.gmra.mrb[0].mxu0 %v2754
    %v2874 = vpop.f32.mrb[0].mxu0
    %v2875 = vadd.f32 0.0, %v2874
    %v2876 = vpop.f32.mrb[0].mxu0
    %v2877 = vpop.f32.mrb[0].mxu0
    %v2878 = vadd.f32 0.0, %v2877
    %v2879 = vpop.f32.mrb[0].mxu0
    %2880 = vmatprep.mubr.bf16.mxu0 0
    %2881 = vmatmul.mubr.bf16.gmra.mrb[0].mxu0 %v2755
    %v2882 = vpop.f32.mrb[0].mxu0
    %v2883 = vadd.f32 0.0, %v2882
    %v2884 = vpop.f32.mrb[0].mxu0
    %v2885 = vpop.f32.mrb[0].mxu0
    %v2886 = vadd.f32 0.0, %v2885
    %v2887 = vpop.f32.mrb[0].mxu0
    %2888 = vmatprep.mubr.bf16.mxu0 0
    %2889 = vmatmul.mubr.bf16.gmra.mrb[0].mxu0 %v2756
    %v2890 = vpop.f32.mrb[0].mxu0
    %v2891 = vadd.f32 0.0, %v2890
    %v2892 = vpop.f32.mrb[0].mxu0
    %v2893 = vpop.f32.mrb[0].mxu0
    %v2894 = vadd.f32 0.0, %v2893
    %v2895 = vpop.f32.mrb[0].mxu0
    %2896 = vmatprep.mubr.bf16.mxu0 0
    %2897 = vmatmul.mubr.bf16.gmra.mrb[0].mxu0 %v2757
    %v2898 = vpop.f32.mrb[0].mxu0
    %v2899 = vadd.f32 0.0, %v2898
    %v2900 = vpop.f32.mrb[0].mxu0
    %v2901 = vpop.f32.mrb[0].mxu0
    %v2902 = vadd.f32 0.0, %v2901
    %v2903 = vpop.f32.mrb[0].mxu0
    %2904 = vmatprep.mubr.bf16.mxu0 0
    %2905 = vmatmul.mubr.bf16.gmra.mrb[0].mxu0 %v2758
    %v2906 = vpop.f32.mrb[0].mxu0
    %v2907 = vadd.f32 0.0, %v2906
    %v2908 = vpop.f32.mrb[0].mxu0
    %v2909 = vpop.f32.mrb[0].mxu0
    %v2910 = vadd.f32 0.0, %v2909
    %v2911 = vpop.f32.mrb[0].mxu0
    %2912 = vmatprep.mubr.bf16.mxu0 0
    %2913 = vmatmul.mubr.bf16.gmra.mrb[0].mxu0 %v2759
    %v2914 = vpop.f32.mrb[0].mxu0
    %v2915 = vadd.f32 0.0, %v2914
    %v2916 = vpop.f32.mrb[0].mxu0
    %v2917 = vpop.f32.mrb[0].mxu0
    %v2918 = vadd.f32 0.0, %v2917
    %v2919 = vpop.f32.mrb[0].mxu0
    %2920 = vdwg.mxu0
    %v2921 = vlaneseq
    %v2922 = vand.u32 %v2921, 127
    %2923 = vmax.xlane.f32.xlu0 %v2859
    %v2924 = vpop.xlane.xlu0 %2923
    %2925 = vmax.xlane.f32.xlu0 %v2862
    %v2926 = vpop.xlane.xlu0 %2925
    %2927 = vmax.xlane.f32.xlu0 %v2867
    %v2928 = vpop.xlane.xlu0 %2927
    %2929 = vmax.xlane.f32.xlu0 %v2870
    %v2930 = vpop.xlane.xlu0 %2929
    %2931 = vmax.xlane.f32.xlu0 %v2875
    %v2932 = vpop.xlane.xlu0 %2931
    %2933 = vmax.xlane.f32.xlu0 %v2878
    %v2934 = vpop.xlane.xlu0 %2933
    %2935 = vmax.xlane.f32.xlu0 %v2883
    %v2936 = vpop.xlane.xlu0 %2935
    %2937 = vmax.xlane.f32.xlu0 %v2886
    %v2938 = vpop.xlane.xlu0 %2937
    %2939 = vmax.xlane.f32.xlu0 %v2891
    %v2940 = vpop.xlane.xlu0 %2939
    %2941 = vmax.xlane.f32.xlu0 %v2894
    %v2942 = vpop.xlane.xlu0 %2941
    %2943 = vmax.xlane.f32.xlu0 %v2899
    %v2944 = vpop.xlane.xlu0 %2943
    %2945 = vmax.xlane.f32.xlu0 %v2902
    %v2946 = vpop.xlane.xlu0 %2945
    %2947 = vmax.xlane.f32.xlu0 %v2907
    %v2948 = vpop.xlane.xlu0 %2947
    %2949 = vmax.xlane.f32.xlu0 %v2910
    %v2950 = vpop.xlane.xlu0 %2949
    %2951 = vmax.xlane.f32.xlu0 %v2915
    %v2952 = vpop.xlane.xlu0 %2951
    %2953 = vmax.xlane.f32.xlu0 %v2918
    %v2954 = vpop.xlane.xlu0 %2953
    %vm2955 = vcmp.ge.f32.partialorder %v2859, %v2924
    %vm2956 = vcmp.ge.f32.partialorder %v2862, %v2926
    %vm2957 = vcmp.ge.f32.partialorder %v2867, %v2928
    %vm2958 = vcmp.ge.f32.partialorder %v2870, %v2930
    %vm2959 = vcmp.ge.f32.partialorder %v2875, %v2932
    %vm2960 = vcmp.ge.f32.partialorder %v2878, %v2934
    %vm2961 = vcmp.ge.f32.partialorder %v2883, %v2936
    %vm2962 = vcmp.ge.f32.partialorder %v2886, %v2938
    %vm2963 = vcmp.ge.f32.partialorder %v2891, %v2940
    %vm2964 = vcmp.ge.f32.partialorder %v2894, %v2942
    %vm2965 = vcmp.ge.f32.partialorder %v2899, %v2944
    %vm2966 = vcmp.ge.f32.partialorder %v2902, %v2946
    %vm2967 = vcmp.ge.f32.partialorder %v2907, %v2948
    %vm2968 = vcmp.ge.f32.partialorder %v2910, %v2950
    %vm2969 = vcmp.ge.f32.partialorder %v2915, %v2952
    %vm2970 = vcmp.ge.f32.partialorder %v2918, %v2954
    %v2971 = vsel %vm2955, %v2922, 128
    %v2972 = vsel %vm2956, %v2922, 128
    %v2973 = vsel %vm2957, %v2922, 128
    %v2974 = vsel %vm2958, %v2922, 128
    %v2975 = vsel %vm2959, %v2922, 128
    %v2976 = vsel %vm2960, %v2922, 128
    %v2977 = vsel %vm2961, %v2922, 128
    %v2978 = vsel %vm2962, %v2922, 128
    %v2979 = vsel %vm2963, %v2922, 128
    %v2980 = vsel %vm2964, %v2922, 128
    %v2981 = vsel %vm2965, %v2922, 128
    %v2982 = vsel %vm2966, %v2922, 128
    %v2983 = vsel %vm2967, %v2922, 128
    %v2984 = vsel %vm2968, %v2922, 128
    %v2985 = vsel %vm2969, %v2922, 128
    %v2986 = vsel %vm2970, %v2922, 128
    %v2987 = vand.u32 %v2971, 65535
    %v2988 = vshra.s32 %v2971, 16
    %v2989 = vcvt.s32.f32 %v2987
    %v2990 = vcvt.s32.f32 %v2988
    %2991 = vmin.xlane.f32.xlu0 %v2990
    %v2992 = vpop.xlane.xlu0 %2991
    %vm2993 = vcmp.eq.f32.partialorder %v2990, %v2992
    %v2994 = vsel %vm2993, %v2989, inf
    %2995 = vmin.xlane.f32.xlu0 %v2994
    %v2996 = vpop.xlane.xlu0 %2995
    %v2997 = vcvt.f32.s32 %v2996
    %v2998 = vcvt.f32.s32 %v2992
    %v2999 = vshll.u32 %v2998, 16
    %v3000 = vadd.s32 %v2999, %v2997
    %v3001 = vand.u32 %v2972, 65535
    %v3002 = vshra.s32 %v2972, 16
    %v3003 = vcvt.s32.f32 %v3001
    %v3004 = vcvt.s32.f32 %v3002
    %3005 = vmin.xlane.f32.xlu0 %v3004
    %v3006 = vpop.xlane.xlu0 %3005
    %vm3007 = vcmp.eq.f32.partialorder %v3004, %v3006
    %v3008 = vsel %vm3007, %v3003, inf
    %3009 = vmin.xlane.f32.xlu0 %v3008
    %v3010 = vpop.xlane.xlu0 %3009
    %v3011 = vcvt.f32.s32 %v3010
    %v3012 = vcvt.f32.s32 %v3006
    %v3013 = vshll.u32 %v3012, 16
    %v3014 = vadd.s32 %v3013, %v3011
    %v3015 = vand.u32 %v2973, 65535
    %v3016 = vshra.s32 %v2973, 16
    %v3017 = vcvt.s32.f32 %v3015
    %v3018 = vcvt.s32.f32 %v3016
    %3019 = vmin.xlane.f32.xlu0 %v3018
    %v3020 = vpop.xlane.xlu0 %3019
    %vm3021 = vcmp.eq.f32.partialorder %v3018, %v3020
    %v3022 = vsel %vm3021, %v3017, inf
    %3023 = vmin.xlane.f32.xlu0 %v3022
    %v3024 = vpop.xlane.xlu0 %3023
    %v3025 = vcvt.f32.s32 %v3024
    %v3026 = vcvt.f32.s32 %v3020
    %v3027 = vshll.u32 %v3026, 16
    %v3028 = vadd.s32 %v3027, %v3025
    %v3029 = vand.u32 %v2974, 65535
    %v3030 = vshra.s32 %v2974, 16
    %v3031 = vcvt.s32.f32 %v3029
    %v3032 = vcvt.s32.f32 %v3030
    %3033 = vmin.xlane.f32.xlu0 %v3032
    %v3034 = vpop.xlane.xlu0 %3033
    %vm3035 = vcmp.eq.f32.partialorder %v3032, %v3034
    %v3036 = vsel %vm3035, %v3031, inf
    %3037 = vmin.xlane.f32.xlu0 %v3036
    %v3038 = vpop.xlane.xlu0 %3037
    %v3039 = vcvt.f32.s32 %v3038
    %v3040 = vcvt.f32.s32 %v3034
    %v3041 = vshll.u32 %v3040, 16
    %v3042 = vadd.s32 %v3041, %v3039
    %v3043 = vand.u32 %v2975, 65535
    %v3044 = vshra.s32 %v2975, 16
    %v3045 = vcvt.s32.f32 %v3043
    %v3046 = vcvt.s32.f32 %v3044
    %3047 = vmin.xlane.f32.xlu0 %v3046
    %v3048 = vpop.xlane.xlu0 %3047
    %vm3049 = vcmp.eq.f32.partialorder %v3046, %v3048
    %v3050 = vsel %vm3049, %v3045, inf
    %3051 = vmin.xlane.f32.xlu0 %v3050
    %v3052 = vpop.xlane.xlu0 %3051
    %v3053 = vcvt.f32.s32 %v3052
    %v3054 = vcvt.f32.s32 %v3048
    %v3055 = vshll.u32 %v3054, 16
    %v3056 = vadd.s32 %v3055, %v3053
    %v3057 = vand.u32 %v2976, 65535
    %v3058 = vshra.s32 %v2976, 16
    %v3059 = vcvt.s32.f32 %v3057
    %v3060 = vcvt.s32.f32 %v3058
    %3061 = vmin.xlane.f32.xlu0 %v3060
    %v3062 = vpop.xlane.xlu0 %3061
    %vm3063 = vcmp.eq.f32.partialorder %v3060, %v3062
    %v3064 = vsel %vm3063, %v3059, inf
    %3065 = vmin.xlane.f32.xlu0 %v3064
    %v3066 = vpop.xlane.xlu0 %3065
    %v3067 = vcvt.f32.s32 %v3066
    %v3068 = vcvt.f32.s32 %v3062
    %v3069 = vshll.u32 %v3068, 16
    %v3070 = vadd.s32 %v3069, %v3067
    %v3071 = vand.u32 %v2977, 65535
    %v3072 = vshra.s32 %v2977, 16
    %v3073 = vcvt.s32.f32 %v3071
    %v3074 = vcvt.s32.f32 %v3072
    %3075 = vmin.xlane.f32.xlu0 %v3074
    %v3076 = vpop.xlane.xlu0 %3075
    %vm3077 = vcmp.eq.f32.partialorder %v3074, %v3076
    %v3078 = vsel %vm3077, %v3073, inf
    %3079 = vmin.xlane.f32.xlu0 %v3078
    %v3080 = vpop.xlane.xlu0 %3079
    %v3081 = vcvt.f32.s32 %v3080
    %v3082 = vcvt.f32.s32 %v3076
    %v3083 = vshll.u32 %v3082, 16
    %v3084 = vadd.s32 %v3083, %v3081
    %v3085 = vand.u32 %v2978, 65535
    %v3086 = vshra.s32 %v2978, 16
    %v3087 = vcvt.s32.f32 %v3085
    %v3088 = vcvt.s32.f32 %v3086
    %3089 = vmin.xlane.f32.xlu0 %v3088
    %v3090 = vpop.xlane.xlu0 %3089
    %vm3091 = vcmp.eq.f32.partialorder %v3088, %v3090
    %v3092 = vsel %vm3091, %v3087, inf
    %3093 = vmin.xlane.f32.xlu0 %v3092
    %v3094 = vpop.xlane.xlu0 %3093
    %v3095 = vcvt.f32.s32 %v3094
    %v3096 = vcvt.f32.s32 %v3090
    %v3097 = vshll.u32 %v3096, 16
    %v3098 = vadd.s32 %v3097, %v3095
    %v3099 = vand.u32 %v2979, 65535
    %v3100 = vshra.s32 %v2979, 16
    %v3101 = vcvt.s32.f32 %v3099
    %v3102 = vcvt.s32.f32 %v3100
    %3103 = vmin.xlane.f32.xlu0 %v3102
    %v3104 = vpop.xlane.xlu0 %3103
    %vm3105 = vcmp.eq.f32.partialorder %v3102, %v3104
    %v3106 = vsel %vm3105, %v3101, inf
    %3107 = vmin.xlane.f32.xlu0 %v3106
    %v3108 = vpop.xlane.xlu0 %3107
    %v3109 = vcvt.f32.s32 %v3108
    %v3110 = vcvt.f32.s32 %v3104
    %v3111 = vshll.u32 %v3110, 16
    %v3112 = vadd.s32 %v3111, %v3109
    %v3113 = vand.u32 %v2980, 65535
    %v3114 = vshra.s32 %v2980, 16
    %v3115 = vcvt.s32.f32 %v3113
    %v3116 = vcvt.s32.f32 %v3114
    %3117 = vmin.xlane.f32.xlu0 %v3116
    %v3118 = vpop.xlane.xlu0 %3117
    %vm3119 = vcmp.eq.f32.partialorder %v3116, %v3118
    %v3120 = vsel %vm3119, %v3115, inf
    %3121 = vmin.xlane.f32.xlu0 %v3120
    %v3122 = vpop.xlane.xlu0 %3121
    %v3123 = vcvt.f32.s32 %v3122
    %v3124 = vcvt.f32.s32 %v3118
    %v3125 = vshll.u32 %v3124, 16
    %v3126 = vadd.s32 %v3125, %v3123
    %v3127 = vand.u32 %v2981, 65535
    %v3128 = vshra.s32 %v2981, 16
    %v3129 = vcvt.s32.f32 %v3127
    %v3130 = vcvt.s32.f32 %v3128
    %3131 = vmin.xlane.f32.xlu0 %v3130
    %v3132 = vpop.xlane.xlu0 %3131
    %vm3133 = vcmp.eq.f32.partialorder %v3130, %v3132
    %v3134 = vsel %vm3133, %v3129, inf
    %3135 = vmin.xlane.f32.xlu0 %v3134
    %v3136 = vpop.xlane.xlu0 %3135
    %v3137 = vcvt.f32.s32 %v3136
    %v3138 = vcvt.f32.s32 %v3132
    %v3139 = vshll.u32 %v3138, 16
    %v3140 = vadd.s32 %v3139, %v3137
    %v3141 = vand.u32 %v2982, 65535
    %v3142 = vshra.s32 %v2982, 16
    %v3143 = vcvt.s32.f32 %v3141
    %v3144 = vcvt.s32.f32 %v3142
    %3145 = vmin.xlane.f32.xlu0 %v3144
    %v3146 = vpop.xlane.xlu0 %3145
    %vm3147 = vcmp.eq.f32.partialorder %v3144, %v3146
    %v3148 = vsel %vm3147, %v3143, inf
    %3149 = vmin.xlane.f32.xlu0 %v3148
    %v3150 = vpop.xlane.xlu0 %3149
    %v3151 = vcvt.f32.s32 %v3150
    %v3152 = vcvt.f32.s32 %v3146
    %v3153 = vshll.u32 %v3152, 16
    %v3154 = vadd.s32 %v3153, %v3151
    %v3155 = vand.u32 %v2983, 65535
    %v3156 = vshra.s32 %v2983, 16
    %v3157 = vcvt.s32.f32 %v3155
    %v3158 = vcvt.s32.f32 %v3156
    %3159 = vmin.xlane.f32.xlu0 %v3158
    %v3160 = vpop.xlane.xlu0 %3159
    %vm3161 = vcmp.eq.f32.partialorder %v3158, %v3160
    %v3162 = vsel %vm3161, %v3157, inf
    %3163 = vmin.xlane.f32.xlu0 %v3162
    %v3164 = vpop.xlane.xlu0 %3163
    %v3165 = vcvt.f32.s32 %v3164
    %v3166 = vcvt.f32.s32 %v3160
    %v3167 = vshll.u32 %v3166, 16
    %v3168 = vadd.s32 %v3167, %v3165
    %v3169 = vand.u32 %v2984, 65535
    %v3170 = vshra.s32 %v2984, 16
    %v3171 = vcvt.s32.f32 %v3169
    %v3172 = vcvt.s32.f32 %v3170
    %3173 = vmin.xlane.f32.xlu0 %v3172
    %v3174 = vpop.xlane.xlu0 %3173
    %vm3175 = vcmp.eq.f32.partialorder %v3172, %v3174
    %v3176 = vsel %vm3175, %v3171, inf
    %3177 = vmin.xlane.f32.xlu0 %v3176
    %v3178 = vpop.xlane.xlu0 %3177
    %v3179 = vcvt.f32.s32 %v3178
    %v3180 = vcvt.f32.s32 %v3174
    %v3181 = vshll.u32 %v3180, 16
    %v3182 = vadd.s32 %v3181, %v3179
    %v3183 = vand.u32 %v2985, 65535
    %v3184 = vshra.s32 %v2985, 16
    %v3185 = vcvt.s32.f32 %v3183
    %v3186 = vcvt.s32.f32 %v3184
    %3187 = vmin.xlane.f32.xlu0 %v3186
    %v3188 = vpop.xlane.xlu0 %3187
    %vm3189 = vcmp.eq.f32.partialorder %v3186, %v3188
    %v3190 = vsel %vm3189, %v3185, inf
    %3191 = vmin.xlane.f32.xlu0 %v3190
    %v3192 = vpop.xlane.xlu0 %3191
    %v3193 = vcvt.f32.s32 %v3192
    %v3194 = vcvt.f32.s32 %v3188
    %v3195 = vshll.u32 %v3194, 16
    %v3196 = vadd.s32 %v3195, %v3193
    %v3197 = vand.u32 %v2986, 65535
    %v3198 = vshra.s32 %v2986, 16
    %v3199 = vcvt.s32.f32 %v3197
    %v3200 = vcvt.s32.f32 %v3198
    %3201 = vmin.xlane.f32.xlu0 %v3200
    %v3202 = vpop.xlane.xlu0 %3201
    %vm3203 = vcmp.eq.f32.partialorder %v3200, %v3202
    %v3204 = vsel %vm3203, %v3199, inf
    %3205 = vmin.xlane.f32.xlu0 %v3204
    %v3206 = vpop.xlane.xlu0 %3205
    %v3207 = vcvt.f32.s32 %v3206
    %v3208 = vcvt.f32.s32 %v3202
    %v3209 = vshll.u32 %v3208, 16
    %v3210 = vadd.s32 %v3209, %v3207
    %vm3211 = vcmp.eq.s32.totalorder %v2922, %v3000
    %vm3212 = vcmp.eq.s32.totalorder %v2922, %v3014
    %vm3213 = vcmp.eq.s32.totalorder %v2922, %v3028
    %vm3214 = vcmp.eq.s32.totalorder %v2922, %v3042
    %vm3215 = vcmp.eq.s32.totalorder %v2922, %v3056
    %vm3216 = vcmp.eq.s32.totalorder %v2922, %v3070
    %vm3217 = vcmp.eq.s32.totalorder %v2922, %v3084
    %vm3218 = vcmp.eq.s32.totalorder %v2922, %v3098
    %vm3219 = vcmp.eq.s32.totalorder %v2922, %v3112
    %vm3220 = vcmp.eq.s32.totalorder %v2922, %v3126
    %vm3221 = vcmp.eq.s32.totalorder %v2922, %v3140
    %vm3222 = vcmp.eq.s32.totalorder %v2922, %v3154
    %vm3223 = vcmp.eq.s32.totalorder %v2922, %v3168
    %vm3224 = vcmp.eq.s32.totalorder %v2922, %v3182
    %vm3225 = vcmp.eq.s32.totalorder %v2922, %v3196
    %vm3226 = vcmp.eq.s32.totalorder %v2922, %v3210
    %v3227 = vsel %vm3211, 1, 0
    %v3228 = vsel %vm3212, 1, 0
    %v3229 = vsel %vm3213, 1, 0
    %v3230 = vsel %vm3214, 1, 0
    %v3231 = vsel %vm3215, 1, 0
    %v3232 = vsel %vm3216, 1, 0
    %v3233 = vsel %vm3217, 1, 0
    %v3234 = vsel %vm3218, 1, 0
    %v3235 = vsel %vm3219, 1, 0
    %v3236 = vsel %vm3220, 1, 0
    %v3237 = vsel %vm3221, 1, 0
    %v3238 = vsel %vm3222, 1, 0
    %v3239 = vsel %vm3223, 1, 0
    %v3240 = vsel %vm3224, 1, 0
    %v3241 = vsel %vm3225, 1, 0
    %v3242 = vsel %vm3226, 1, 0
    %v3243 = vcvt.s32.f32 %v3227
    %v3244 = vcvt.s32.f32 %v3228
    %v3245 = vcvt.s32.f32 %v3229
    %v3246 = vcvt.s32.f32 %v3230
    %v3247 = vcvt.s32.f32 %v3231
    %v3248 = vcvt.s32.f32 %v3232
    %v3249 = vcvt.s32.f32 %v3233
    %v3250 = vcvt.s32.f32 %v3234
    %v3251 = vcvt.s32.f32 %v3235
    %v3252 = vcvt.s32.f32 %v3236
    %v3253 = vcvt.s32.f32 %v3237
    %v3254 = vcvt.s32.f32 %v3238
    %v3255 = vcvt.s32.f32 %v3239
    %v3256 = vcvt.s32.f32 %v3240
    %v3257 = vcvt.s32.f32 %v3241
    %v3258 = vcvt.s32.f32 %v3242
    %3259 = vst [vmem:[%s11] sm:$0xff] %v3243
    %3260 = vst [vmem:[%s11 + $0x8] sm:$0xff] %v3244
    %3261 = vst [vmem:[%s11 + $0x10] sm:$0xff] %v3245
    %3262 = vst [vmem:[%s11 + $0x18] sm:$0xff] %v3246
    %3263 = vst [vmem:[%s11 + $0x20] sm:$0xff] %v3247
    %3264 = vst [vmem:[%s11 + $0x28] sm:$0xff] %v3248
    %3265 = vst [vmem:[%s11 + $0x30] sm:$0xff] %v3249
    %3266 = vst [vmem:[%s11 + $0x38] sm:$0xff] %v3250
    %3267 = vst [vmem:[%s11 + $0x40] sm:$0xff] %v3251
    %3268 = vst [vmem:[%s11 + $0x48] sm:$0xff] %v3252
    %3269 = vst [vmem:[%s11 + $0x50] sm:$0xff] %v3253
    %3270 = vst [vmem:[%s11 + $0x58] sm:$0xff] %v3254
    %3271 = vst [vmem:[%s11 + $0x60] sm:$0xff] %v3255
    %3272 = vst [vmem:[%s11 + $0x68] sm:$0xff] %v3256
    %3273 = vst [vmem:[%s11 + $0x70] sm:$0xff] %v3257
    %3274 = vst [vmem:[%s11 + $0x78] sm:$0xff] %v3258
    // Predicated region
    $region74: #{generator_forward.1} parent=1 // pred_check
      _
    $region75: #{generator_forward.1} parent=1 // pred_check_branch
      %3276 = sbr.rel (0) target = $region77
    $region76: #{generator_forward.1} parent=1 // pred_region
      _
    $region77: #{generator_forward.1} parent=1 // pred_fallthru
      _
    // Predicated region
    $region78: #{generator_forward.1} parent=1 // pred_check
      _
    $region79: #{generator_forward.1} parent=1 // pred_check_branch
      %3278 = sbr.rel (0) target = $region81
    $region80: #{generator_forward.1} parent=1 // pred_region
      _
    $region81: #{generator_forward.1} parent=1 // pred_fallthru
      _
    %3279 = vsyncpa [#allocation3], 1
    %3280 = vsyncpa [#allocation5], 1
    %3281 = vsyncpa [#allocation8], 1
    %3282 = vsyncpa [#allocation11], 1

</llo_original>
